<compile_context>
chip_gen: v7x
topology: tpu7x:2x2x1
jax: 0.10.0
libtpu: 0.0.40
codegen_flags: <defaults>
</compile_context>

<pallas_src>
import functools

import jax
import jax.numpy as jnp
import numpy as np
from jax.experimental import pallas as pl
from jax.experimental.pallas import tpu as pltpu


# ----------------------------------------------------------------------------
# Fused kernel: 3x [Conv1d(k=5,'same') + ReLU]  ->  2-layer GRU(hidden=256)
# ----------------------------------------------------------------------------
def _cpc_fused_kernel(
    len_ref,                                    # SMEM (1,) int32: L = start + 1
    x_ref,
    w1_ref, b1_ref, w2_ref, b2_ref, w3_ref, b3_ref,
    wih1_ref, whh1_ref, bih1_ref, bhh1_ref,
    wih2_ref, whh2_ref, bih2_ref, bhh2_ref,
    z_ref, r_ref,
    vp1_ref, vp2_ref, vp3_ref, gi1_sc,
    *, K, H, L_MAX):
    B, T, _ = x_ref.shape
    pad = (K - 1) // 2

    # ---------------- conv stack (intermediates stay in VMEM) ---------------
    def conv_block(v, w_ref, b_ref, vp_ref):
        # v: (B, T, Cin) f32 value; w_ref: (K, Cin, Cout) bf16; b_ref: (1, Cout) f32
        Cin = v.shape[-1]
        Cout = w_ref.shape[-1]
        vp_ref[...] = jnp.zeros_like(vp_ref)           # halo rows := 0 ('same' pad)
        vp_ref[:, pad:pad + T, :] = v                  # body rows
        acc = jnp.zeros((B * T, Cout), jnp.float32)
        for k in range(K):                             # K accumulating tap matmuls
            vk = vp_ref[:, k:k + T, :]                 # shifted view, (B, T, Cin)
            acc = acc + jnp.dot(
                vk.reshape(B * T, Cin).astype(jnp.bfloat16), w_ref[k],
                preferred_element_type=jnp.float32)
        # TODO(synk): nn.Dropout after each conv = eval-mode identity here.
        return jnp.maximum(acc + b_ref[...], 0.0).reshape(B, T, Cout)

    h = conv_block(x_ref[...], w1_ref, b1_ref, vp1_ref)     # (B, T, 32)
    h = conv_block(h, w2_ref, b2_ref, vp2_ref)               # (B, T, 64)
    z = conv_block(h, w3_ref, b3_ref, vp3_ref)               # (B, T, 128)
    z_ref[...] = z

    # ---------------- 2-layer GRU over z[:, :L, :] ---------------------------
    L = jnp.clip(len_ref[0], 0, L_MAX)     # dynamic -> one compile for every start

    # Layer-1 input gates for every candidate timestep in ONE matmul
    # (off the recurrent critical path; rows past L are a few wasted MXU rows).
    zc = z[:, :L_MAX, :].reshape(B * L_MAX, -1).astype(jnp.bfloat16)
    gi1 = jnp.dot(zc, wih1_ref[...],
                  preferred_element_type=jnp.float32) + bih1_ref[...]
    gi1_sc[...] = gi1.reshape(B, L_MAX, 3 * H)

    def gru_gates(gi, gh, h_prev):
        # PyTorch GRU gate packing [r | z | n]; bhh_n stays inside the r-product.
        r = jax.nn.sigmoid(gi[:, :H] + gh[:, :H])
        u = jax.nn.sigmoid(gi[:, H:2 * H] + gh[:, H:2 * H])
        n = jnp.tanh(gi[:, 2 * H:] + r * gh[:, 2 * H:])
        return (1.0 - u) * n + u * h_prev

    def step(t, carry):
        h1, h2 = carry                                       # (B, H) f32 values
        gi1_t = gi1_sc[:, pl.ds(t, 1), :][:, 0, :]           # one dslice load -> (B, 3H)
        # Both hidden-state matmuls depend only on the carry: issue back-to-back
        # so the MXU streams them while the EUP runs the layer-1 nonlinearities.
        gh1 = jnp.dot(h1.astype(jnp.bfloat16), whh1_ref[...],
                      preferred_element_type=jnp.float32) + bhh1_ref[...]
        gh2 = jnp.dot(h2.astype(jnp.bfloat16), whh2_ref[...],
                      preferred_element_type=jnp.float32) + bhh2_ref[...]
        h1n = gru_gates(gi1_t, gh1, h1)
        # TODO(synk): GRU inter-layer dropout = eval-mode identity here.
        gi2 = jnp.dot(h1n.astype(jnp.bfloat16), wih2_ref[...],
                      preferred_element_type=jnp.float32) + bih2_ref[...]
        h2n = gru_gates(gi2, gh2, h2)
        r_ref[:, pl.ds(t, 1), :] = h2n[:, None, :]           # one store per step
        return (h1n, h2n)

    h0 = jnp.zeros((B, H), jnp.float32)
    # Dynamic trip count (data-dependent L) -> no unroll; the recurrence is
    # latency-serial, and the dynamic bound removes the per-start recompile.
    jax.lax.fori_loop(0, L, step, (h0, h0))


# ----------------------------------------------------------------------------
# Wrapper: one pallas_call for the whole forward pass
# ----------------------------------------------------------------------------
def cpc_forward(inputs, params, start, num_steps_prediction):
    """inputs: (B, T, C) f32. Returns (z, r_out, start) like the torch module."""
    B, T, C = inputs.shape
    K = params["convs"][0][0].shape[0]
    H = params["gru"]["whh1"].shape[0]
    L_MAX = T - num_steps_prediction            # largest possible start + 1 (static)

    # Wrapper-side plumbing: bf16 matmul-operand weights, f32 (1, Cout) biases.
    # (If loading real torch weights: conv weight (Cout,Cin,K)->(K,Cin,Cout),
    #  GRU weight_ih/hh (3H,in)->(in,3H); gate order [r|z|n] already matches.)
    conv_args, cins = [], []
    cin = C
    for (w, b) in params["convs"]:
        conv_args += [w.astype(jnp.bfloat16), b.reshape(1, -1).astype(jnp.float32)]
        cins.append(cin)
        cin = w.shape[-1]
    g = params["gru"]
    gru_args = [g["wih1"].astype(jnp.bfloat16), g["whh1"].astype(jnp.bfloat16),
                g["bih1"].astype(jnp.float32), g["bhh1"].astype(jnp.float32),
                g["wih2"].astype(jnp.bfloat16), g["whh2"].astype(jnp.bfloat16),
                g["bih2"].astype(jnp.float32), g["bhh2"].astype(jnp.float32)]
    c_out = params["convs"][-1][0].shape[-1]

    kernel = functools.partial(_cpc_fused_kernel, K=K, H=H, L_MAX=L_MAX)
    vmem = pl.BlockSpec(memory_space=pltpu.MemorySpace.VMEM)
    smem = pl.BlockSpec(memory_space=pltpu.MemorySpace.SMEM)

    seq_len = jnp.asarray([start + 1], jnp.int32)   # dynamic; no per-start recompile

    z, r_full = pl.pallas_call(
        kernel,
        out_shape=(jax.ShapeDtypeStruct((B, T, c_out), jnp.float32),
                   jax.ShapeDtypeStruct((B, L_MAX, H), jnp.float32)),
        in_specs=[smem] + [vmem] * (1 + len(conv_args) + len(gru_args)),
        out_specs=(vmem, vmem),
        scratch_shapes=(
            [pltpu.VMEM((B, T + K - 1, ci), jnp.float32) for ci in cins]   # padded convs
            + [pltpu.VMEM((B, L_MAX, 3 * H), jnp.float32)]),               # precomputed gi1
        compiler_params=pltpu.CompilerParams(vmem_limit_bytes=32 * 1024 * 1024),
    )(seq_len, inputs.astype(jnp.float32), *conv_args, *gru_args)

    # batch_first output of length start+1, matching the torch module.
    return z, r_full[:, :start + 1, :], start


# ----------------------------------------------------------------------------
# Deterministic parameter construction (synthetic, no checkpoint)
# ----------------------------------------------------------------------------
def make_params(key, in_size, hidden=256):
    filters = [32, 64, 128]
    K = 5
    keys = jax.random.split(key, 16)
    ki = iter(keys)

    convs = []
    cin = in_size
    for cout in filters:
        scale = 1.0 / np.sqrt(cin * K)
        w = scale * jax.random.normal(next(ki), (K, cin, cout), jnp.float32)
        b = scale * jax.random.normal(next(ki), (cout,), jnp.float32)
        convs.append((w, b))
        cin = cout

    def gru_layer(cin):
        s = 1.0 / np.sqrt(hidden)
        return dict(
            wih=s * jax.random.normal(next(ki), (cin, 3 * hidden), jnp.float32),
            whh=s * jax.random.normal(next(ki), (hidden, 3 * hidden), jnp.float32),
            bih=s * jax.random.normal(next(ki), (1, 3 * hidden), jnp.float32),
            bhh=s * jax.random.normal(next(ki), (1, 3 * hidden), jnp.float32),
        )

    l1 = gru_layer(filters[-1])
    l2 = gru_layer(hidden)
    gru = dict(wih1=l1["wih"], whh1=l1["whh"], bih1=l1["bih"], bhh1=l1["bhh"],
               wih2=l2["wih"], whh2=l2["whh"], bih2=l2["bih"], bhh2=l2["bhh"])
    return dict(convs=convs, gru=gru)


# ----------------------------------------------------------------------------
# Pure-JAX reference with the same precision policy (bf16 matmul operands,
# f32 accumulation / gates) for a tight numerical sanity check.
# ----------------------------------------------------------------------------
def _ref_forward(inputs, params, start):
    h = inputs
    for (w, b) in params["convs"]:
        K, Cin, Cout = w.shape
        pad = (K - 1) // 2
        B, T, _ = h.shape
        xp = jnp.pad(h, ((0, 0), (pad, pad), (0, 0)))
        cols = jnp.concatenate([xp[:, k:k + T, :] for k in range(K)], axis=-1)
        y = jnp.einsum("btc,cd->btd",
                       cols.astype(jnp.bfloat16),
                       w.reshape(K * Cin, Cout).astype(jnp.bfloat16),
                       preferred_element_type=jnp.float32) + b[None, None, :]
        h = jax.nn.relu(y)
    z = h
    p = params["gru"]
    H = p["whh1"].shape[0]
    B = z.shape[0]

    def cell(xin, hh, wih, whh, bih, bhh):
        gi = jnp.dot(xin.astype(jnp.bfloat16), wih.astype(jnp.bfloat16),
                     preferred_element_type=jnp.float32) + bih
        gh = jnp.dot(hh.astype(jnp.bfloat16), whh.astype(jnp.bfloat16),
                     preferred_element_type=jnp.float32) + bhh
        r = jax.nn.sigmoid(gi[:, :H] + gh[:, :H])
        u = jax.nn.sigmoid(gi[:, H:2 * H] + gh[:, H:2 * H])
        n = jnp.tanh(gi[:, 2 * H:] + r * gh[:, 2 * H:])
        return (1.0 - u) * n + u * hh

    def step(carry, xt):
        h1, h2 = carry
        h1 = cell(xt, h1, p["wih1"], p["whh1"], p["bih1"], p["bhh1"])
        h2 = cell(h1, h2, p["wih2"], p["whh2"], p["bih2"], p["bhh2"])
        return (h1, h2), h2

    rnn_in = jnp.transpose(z[:, :start + 1, :], (1, 0, 2))
    h0 = jnp.zeros((B, H), jnp.float32)
    _, outs = jax.lax.scan(step, (h0, h0), rnn_in)
    return z, jnp.transpose(outs, (1, 0, 2))


# ----------------------------------------------------------------------------
if __name__ == "__main__":
    B, T, C = 2, 32, 4
    num_steps_prediction = 8

    root = jax.random.PRNGKey(0)
    k_in, k_par, k_start = jax.random.split(root, 3)

    inputs = jax.random.normal(k_in, (B, T, C), jnp.float32)
    params = make_params(k_par, in_size=C)

    # torch.randint(T - num_steps_prediction) equivalent, fixed deterministically.
    start = int(jax.random.randint(k_start, (), 0, T - num_steps_prediction))

    # Run two different starts: the kernel is compiled once for L_MAX and the
    # sequence length is a runtime SMEM scalar, so no per-start recompile.
    for s in (start, 0):
        z, r_out, s_out = cpc_forward(inputs, params, s, num_steps_prediction)
        jax.block_until_ready((z, r_out))

        assert z.shape == (B, T, 128)
        assert r_out.shape == (B, s + 1, 256)
        assert s_out == s

        z_exp, r_exp = _ref_forward(inputs, params, s)
        np.testing.assert_allclose(np.asarray(z), np.asarray(z_exp),
                                   rtol=1e-2, atol=1e-2)
        np.testing.assert_allclose(np.asarray(r_out), np.asarray(r_exp),
                                   rtol=1e-2, atol=1e-2)

    print("KERNEL_OK")
</pallas_src>

<mosaic_0001>
module attributes {stable_mosaic.version = 11 : i64} {
  func.func @_cpc_fused_kernel(%arg0: memref<1xi32, #tpu.memory_space<smem>>, %arg1: memref<2x32x4xf32, #tpu.memory_space<vmem>>, %arg2: memref<5x4x32xbf16, #tpu.memory_space<vmem>>, %arg3: memref<1x32xf32, #tpu.memory_space<vmem>>, %arg4: memref<5x32x64xbf16, #tpu.memory_space<vmem>>, %arg5: memref<1x64xf32, #tpu.memory_space<vmem>>, %arg6: memref<5x64x128xbf16, #tpu.memory_space<vmem>>, %arg7: memref<1x128xf32, #tpu.memory_space<vmem>>, %arg8: memref<128x768xbf16, #tpu.memory_space<vmem>>, %arg9: memref<256x768xbf16, #tpu.memory_space<vmem>>, %arg10: memref<1x768xf32, #tpu.memory_space<vmem>>, %arg11: memref<1x768xf32, #tpu.memory_space<vmem>>, %arg12: memref<256x768xbf16, #tpu.memory_space<vmem>>, %arg13: memref<256x768xbf16, #tpu.memory_space<vmem>>, %arg14: memref<1x768xf32, #tpu.memory_space<vmem>>, %arg15: memref<1x768xf32, #tpu.memory_space<vmem>>, %arg16: memref<2x32x128xf32, #tpu.memory_space<vmem>>, %arg17: memref<2x24x256xf32, #tpu.memory_space<vmem>>, %arg18: memref<2x36x4xf32, #tpu.memory_space<vmem>>, %arg19: memref<2x36x32xf32, #tpu.memory_space<vmem>>, %arg20: memref<2x36x64xf32, #tpu.memory_space<vmem>>, %arg21: memref<2x24x768xf32, #tpu.memory_space<vmem>>) attributes {dimension_semantics = [], scalar_prefetch = 0 : i64, scratch_operands = 4 : i64, tpu.core_type = #tpu.core_type<tc>} {
    %c0 = arith.constant 0 : index
    %c0_0 = arith.constant 0 : index
    %c0_1 = arith.constant 0 : index
    %0 = vector.load %arg1[%c0, %c0_0, %c0_1] : memref<2x32x4xf32, #tpu.memory_space<vmem>>, vector<2x32x4xf32>
    %cst = arith.constant 0.000000e+00 : f32
    %1 = vector.broadcast %cst : f32 to vector<2x36x4xf32>
    %c0_2 = arith.constant 0 : index
    %c0_3 = arith.constant 0 : index
    %c0_4 = arith.constant 0 : index
    %2 = vector.load %arg18[%c0_2, %c0_3, %c0_4] : memref<2x36x4xf32, #tpu.memory_space<vmem>>, vector<2x36x4xf32>
    tpu.vector_store %arg18[%c0_2, %c0_3, %c0_4], %1 {strides = array<i32>} : memref<2x36x4xf32, #tpu.memory_space<vmem>>, vector<2x36x4xf32>,
    %c0_5 = arith.constant 0 : index
    %c2 = arith.constant 2 : index
    %c0_6 = arith.constant 0 : index
    %3 = vector.load %arg18[%c0_5, %c2, %c0_6] : memref<2x36x4xf32, #tpu.memory_space<vmem>>, vector<2x32x4xf32>
    tpu.vector_store %arg18[%c0_5, %c2, %c0_6], %0 {strides = array<i32>} : memref<2x36x4xf32, #tpu.memory_space<vmem>>, vector<2x32x4xf32>,
    %cst_7 = arith.constant 0.000000e+00 : f32
    %4 = vector.broadcast %cst_7 : f32 to vector<64x32xf32>
    %c0_8 = arith.constant 0 : index
    %c0_9 = arith.constant 0 : index
    %c0_10 = arith.constant 0 : index
    %5 = vector.load %arg18[%c0_8, %c0_9, %c0_10] : memref<2x36x4xf32, #tpu.memory_space<vmem>>, vector<2x32x4xf32>
    %6 = vector.shape_cast %5 : vector<2x32x4xf32> to vector<64x4xf32>
    %7 = arith.truncf %6 : vector<64x4xf32> to vector<64x4xbf16>
    %c0_11 = arith.constant 0 : index
    %c0_12 = arith.constant 0 : index
    %c0_13 = arith.constant 0 : index
    %8 = vector.load %arg2[%c0_11, %c0_12, %c0_13] : memref<5x4x32xbf16, #tpu.memory_space<vmem>>, vector<1x4x32xbf16>
    %9 = vector.shape_cast %8 : vector<1x4x32xbf16> to vector<4x32xbf16>
    %cst_14 = arith.constant dense<0.000000e+00> : vector<64x32xf32>
    %10 = tpu.matmul %7, %9, %cst_14 {dimension_numbers = #tpu.dot_dimension_numbers<[1], [0], [0], [1], [0, 0, 1, 1], [], []>} : vector<64x4xbf16>, vector<4x32xbf16>, vector<64x32xf32> -> vector<64x32xf32>
    %11 = arith.addf %4, %10 : vector<64x32xf32>
    %c0_15 = arith.constant 0 : index
    %c1 = arith.constant 1 : index
    %c0_16 = arith.constant 0 : index
    %12 = vector.load %arg18[%c0_15, %c1, %c0_16] : memref<2x36x4xf32, #tpu.memory_space<vmem>>, vector<2x32x4xf32>
    %13 = vector.shape_cast %12 : vector<2x32x4xf32> to vector<64x4xf32>
    %14 = arith.truncf %13 : vector<64x4xf32> to vector<64x4xbf16>
    %c1_17 = arith.constant 1 : index
    %c0_18 = arith.constant 0 : index
    %c0_19 = arith.constant 0 : index
    %15 = vector.load %arg2[%c1_17, %c0_18, %c0_19] : memref<5x4x32xbf16, #tpu.memory_space<vmem>>, vector<1x4x32xbf16>
    %16 = vector.shape_cast %15 : vector<1x4x32xbf16> to vector<4x32xbf16>
    %cst_20 = arith.constant dense<0.000000e+00> : vector<64x32xf32>
    %17 = tpu.matmul %14, %16, %cst_20 {dimension_numbers = #tpu.dot_dimension_numbers<[1], [0], [0], [1], [0, 0, 1, 1], [], []>} : vector<64x4xbf16>, vector<4x32xbf16>, vector<64x32xf32> -> vector<64x32xf32>
    %18 = arith.addf %11, %17 : vector<64x32xf32>
    %c0_21 = arith.constant 0 : index
    %c2_22 = arith.constant 2 : index
    %c0_23 = arith.constant 0 : index
    %19 = vector.load %arg18[%c0_21, %c2_22, %c0_23] : memref<2x36x4xf32, #tpu.memory_space<vmem>>, vector<2x32x4xf32>
    %20 = vector.shape_cast %19 : vector<2x32x4xf32> to vector<64x4xf32>
    %21 = arith.truncf %20 : vector<64x4xf32> to vector<64x4xbf16>
    %c2_24 = arith.constant 2 : index
    %c0_25 = arith.constant 0 : index
    %c0_26 = arith.constant 0 : index
    %22 = vector.load %arg2[%c2_24, %c0_25, %c0_26] : memref<5x4x32xbf16, #tpu.memory_space<vmem>>, vector<1x4x32xbf16>
    %23 = vector.shape_cast %22 : vector<1x4x32xbf16> to vector<4x32xbf16>
    %cst_27 = arith.constant dense<0.000000e+00> : vector<64x32xf32>
    %24 = tpu.matmul %21, %23, %cst_27 {dimension_numbers = #tpu.dot_dimension_numbers<[1], [0], [0], [1], [0, 0, 1, 1], [], []>} : vector<64x4xbf16>, vector<4x32xbf16>, vector<64x32xf32> -> vector<64x32xf32>
    %25 = arith.addf %18, %24 : vector<64x32xf32>
    %c0_28 = arith.constant 0 : index
    %c3 = arith.constant 3 : index
    %c0_29 = arith.constant 0 : index
    %26 = vector.load %arg18[%c0_28, %c3, %c0_29] : memref<2x36x4xf32, #tpu.memory_space<vmem>>, vector<2x32x4xf32>
    %27 = vector.shape_cast %26 : vector<2x32x4xf32> to vector<64x4xf32>
    %28 = arith.truncf %27 : vector<64x4xf32> to vector<64x4xbf16>
    %c3_30 = arith.constant 3 : index
    %c0_31 = arith.constant 0 : index
    %c0_32 = arith.constant 0 : index
    %29 = vector.load %arg2[%c3_30, %c0_31, %c0_32] : memref<5x4x32xbf16, #tpu.memory_space<vmem>>, vector<1x4x32xbf16>
    %30 = vector.shape_cast %29 : vector<1x4x32xbf16> to vector<4x32xbf16>
    %cst_33 = arith.constant dense<0.000000e+00> : vector<64x32xf32>
    %31 = tpu.matmul %28, %30, %cst_33 {dimension_numbers = #tpu.dot_dimension_numbers<[1], [0], [0], [1], [0, 0, 1, 1], [], []>} : vector<64x4xbf16>, vector<4x32xbf16>, vector<64x32xf32> -> vector<64x32xf32>
    %32 = arith.addf %25, %31 : vector<64x32xf32>
    %c0_34 = arith.constant 0 : index
    %c4 = arith.constant 4 : index
    %c0_35 = arith.constant 0 : index
    %33 = vector.load %arg18[%c0_34, %c4, %c0_35] : memref<2x36x4xf32, #tpu.memory_space<vmem>>, vector<2x32x4xf32>
    %34 = vector.shape_cast %33 : vector<2x32x4xf32> to vector<64x4xf32>
    %35 = arith.truncf %34 : vector<64x4xf32> to vector<64x4xbf16>
    %c4_36 = arith.constant 4 : index
    %c0_37 = arith.constant 0 : index
    %c0_38 = arith.constant 0 : index
    %36 = vector.load %arg2[%c4_36, %c0_37, %c0_38] : memref<5x4x32xbf16, #tpu.memory_space<vmem>>, vector<1x4x32xbf16>
    %37 = vector.shape_cast %36 : vector<1x4x32xbf16> to vector<4x32xbf16>
    %cst_39 = arith.constant dense<0.000000e+00> : vector<64x32xf32>
    %38 = tpu.matmul %35, %37, %cst_39 {dimension_numbers = #tpu.dot_dimension_numbers<[1], [0], [0], [1], [0, 0, 1, 1], [], []>} : vector<64x4xbf16>, vector<4x32xbf16>, vector<64x32xf32> -> vector<64x32xf32>
    %39 = arith.addf %32, %38 : vector<64x32xf32>
    %c0_40 = arith.constant 0 : index
    %c0_41 = arith.constant 0 : index
    %40 = vector.load %arg3[%c0_40, %c0_41] : memref<1x32xf32, #tpu.memory_space<vmem>>, vector<1x32xf32>
    %41 = vector.broadcast %40 : vector<1x32xf32> to vector<64x32xf32>
    %42 = arith.addf %39, %41 : vector<64x32xf32>
    %cst_42 = arith.constant 0.000000e+00 : f32
    %43 = vector.broadcast %cst_42 : f32 to vector<64x32xf32>
    %44 = arith.maximumf %42, %43 : vector<64x32xf32>
    %45 = vector.shape_cast %44 : vector<64x32xf32> to vector<2x32x32xf32>
    %cst_43 = arith.constant 0.000000e+00 : f32
    %46 = vector.broadcast %cst_43 : f32 to vector<2x36x32xf32>
    %c0_44 = arith.constant 0 : index
    %c0_45 = arith.constant 0 : index
    %c0_46 = arith.constant 0 : index
    %47 = vector.load %arg19[%c0_44, %c0_45, %c0_46] : memref<2x36x32xf32, #tpu.memory_space<vmem>>, vector<2x36x32xf32>
    tpu.vector_store %arg19[%c0_44, %c0_45, %c0_46], %46 {strides = array<i32>} : memref<2x36x32xf32, #tpu.memory_space<vmem>>, vector<2x36x32xf32>,
    %c0_47 = arith.constant 0 : index
    %c2_48 = arith.constant 2 : index
    %c0_49 = arith.constant 0 : index
    %48 = vector.load %arg19[%c0_47, %c2_48, %c0_49] : memref<2x36x32xf32, #tpu.memory_space<vmem>>, vector<2x32x32xf32>
    tpu.vector_store %arg19[%c0_47, %c2_48, %c0_49], %45 {strides = array<i32>} : memref<2x36x32xf32, #tpu.memory_space<vmem>>, vector<2x32x32xf32>,
    %cst_50 = arith.constant 0.000000e+00 : f32
    %49 = vector.broadcast %cst_50 : f32 to vector<64x64xf32>
    %c0_51 = arith.constant 0 : index
    %c0_52 = arith.constant 0 : index
    %c0_53 = arith.constant 0 : index
    %50 = vector.load %arg19[%c0_51, %c0_52, %c0_53] : memref<2x36x32xf32, #tpu.memory_space<vmem>>, vector<2x32x32xf32>
    %51 = vector.shape_cast %50 : vector<2x32x32xf32> to vector<64x32xf32>
    %52 = arith.truncf %51 : vector<64x32xf32> to vector<64x32xbf16>
    %c0_54 = arith.constant 0 : index
    %c0_55 = arith.constant 0 : index
    %c0_56 = arith.constant 0 : index
    %53 = vector.load %arg4[%c0_54, %c0_55, %c0_56] : memref<5x32x64xbf16, #tpu.memory_space<vmem>>, vector<1x32x64xbf16>
    %54 = vector.shape_cast %53 : vector<1x32x64xbf16> to vector<32x64xbf16>
    %cst_57 = arith.constant dense<0.000000e+00> : vector<64x64xf32>
    %55 = tpu.matmul %52, %54, %cst_57 {dimension_numbers = #tpu.dot_dimension_numbers<[1], [0], [0], [1], [0, 0, 1, 1], [], []>} : vector<64x32xbf16>, vector<32x64xbf16>, vector<64x64xf32> -> vector<64x64xf32>
    %56 = arith.addf %49, %55 : vector<64x64xf32>
    %c0_58 = arith.constant 0 : index
    %c1_59 = arith.constant 1 : index
    %c0_60 = arith.constant 0 : index
    %57 = vector.load %arg19[%c0_58, %c1_59, %c0_60] : memref<2x36x32xf32, #tpu.memory_space<vmem>>, vector<2x32x32xf32>
    %58 = vector.shape_cast %57 : vector<2x32x32xf32> to vector<64x32xf32>
    %59 = arith.truncf %58 : vector<64x32xf32> to vector<64x32xbf16>
    %c1_61 = arith.constant 1 : index
    %c0_62 = arith.constant 0 : index
    %c0_63 = arith.constant 0 : index
    %60 = vector.load %arg4[%c1_61, %c0_62, %c0_63] : memref<5x32x64xbf16, #tpu.memory_space<vmem>>, vector<1x32x64xbf16>
    %61 = vector.shape_cast %60 : vector<1x32x64xbf16> to vector<32x64xbf16>
    %cst_64 = arith.constant dense<0.000000e+00> : vector<64x64xf32>
    %62 = tpu.matmul %59, %61, %cst_64 {dimension_numbers = #tpu.dot_dimension_numbers<[1], [0], [0], [1], [0, 0, 1, 1], [], []>} : vector<64x32xbf16>, vector<32x64xbf16>, vector<64x64xf32> -> vector<64x64xf32>
    %63 = arith.addf %56, %62 : vector<64x64xf32>
    %c0_65 = arith.constant 0 : index
    %c2_66 = arith.constant 2 : index
    %c0_67 = arith.constant 0 : index
    %64 = vector.load %arg19[%c0_65, %c2_66, %c0_67] : memref<2x36x32xf32, #tpu.memory_space<vmem>>, vector<2x32x32xf32>
    %65 = vector.shape_cast %64 : vector<2x32x32xf32> to vector<64x32xf32>
    %66 = arith.truncf %65 : vector<64x32xf32> to vector<64x32xbf16>
    %c2_68 = arith.constant 2 : index
    %c0_69 = arith.constant 0 : index
    %c0_70 = arith.constant 0 : index
    %67 = vector.load %arg4[%c2_68, %c0_69, %c0_70] : memref<5x32x64xbf16, #tpu.memory_space<vmem>>, vector<1x32x64xbf16>
    %68 = vector.shape_cast %67 : vector<1x32x64xbf16> to vector<32x64xbf16>
    %cst_71 = arith.constant dense<0.000000e+00> : vector<64x64xf32>
    %69 = tpu.matmul %66, %68, %cst_71 {dimension_numbers = #tpu.dot_dimension_numbers<[1], [0], [0], [1], [0, 0, 1, 1], [], []>} : vector<64x32xbf16>, vector<32x64xbf16>, vector<64x64xf32> -> vector<64x64xf32>
    %70 = arith.addf %63, %69 : vector<64x64xf32>
    %c0_72 = arith.constant 0 : index
    %c3_73 = arith.constant 3 : index
    %c0_74 = arith.constant 0 : index
    %71 = vector.load %arg19[%c0_72, %c3_73, %c0_74] : memref<2x36x32xf32, #tpu.memory_space<vmem>>, vector<2x32x32xf32>
    %72 = vector.shape_cast %71 : vector<2x32x32xf32> to vector<64x32xf32>
    %73 = arith.truncf %72 : vector<64x32xf32> to vector<64x32xbf16>
    %c3_75 = arith.constant 3 : index
    %c0_76 = arith.constant 0 : index
    %c0_77 = arith.constant 0 : index
    %74 = vector.load %arg4[%c3_75, %c0_76, %c0_77] : memref<5x32x64xbf16, #tpu.memory_space<vmem>>, vector<1x32x64xbf16>
    %75 = vector.shape_cast %74 : vector<1x32x64xbf16> to vector<32x64xbf16>
    %cst_78 = arith.constant dense<0.000000e+00> : vector<64x64xf32>
    %76 = tpu.matmul %73, %75, %cst_78 {dimension_numbers = #tpu.dot_dimension_numbers<[1], [0], [0], [1], [0, 0, 1, 1], [], []>} : vector<64x32xbf16>, vector<32x64xbf16>, vector<64x64xf32> -> vector<64x64xf32>
    %77 = arith.addf %70, %76 : vector<64x64xf32>
    %c0_79 = arith.constant 0 : index
    %c4_80 = arith.constant 4 : index
    %c0_81 = arith.constant 0 : index
    %78 = vector.load %arg19[%c0_79, %c4_80, %c0_81] : memref<2x36x32xf32, #tpu.memory_space<vmem>>, vector<2x32x32xf32>
    %79 = vector.shape_cast %78 : vector<2x32x32xf32> to vector<64x32xf32>
    %80 = arith.truncf %79 : vector<64x32xf32> to vector<64x32xbf16>
    %c4_82 = arith.constant 4 : index
    %c0_83 = arith.constant 0 : index
    %c0_84 = arith.constant 0 : index
    %81 = vector.load %arg4[%c4_82, %c0_83, %c0_84] : memref<5x32x64xbf16, #tpu.memory_space<vmem>>, vector<1x32x64xbf16>
    %82 = vector.shape_cast %81 : vector<1x32x64xbf16> to vector<32x64xbf16>
    %cst_85 = arith.constant dense<0.000000e+00> : vector<64x64xf32>
    %83 = tpu.matmul %80, %82, %cst_85 {dimension_numbers = #tpu.dot_dimension_numbers<[1], [0], [0], [1], [0, 0, 1, 1], [], []>} : vector<64x32xbf16>, vector<32x64xbf16>, vector<64x64xf32> -> vector<64x64xf32>
    %84 = arith.addf %77, %83 : vector<64x64xf32>
    %c0_86 = arith.constant 0 : index
    %c0_87 = arith.constant 0 : index
    %85 = vector.load %arg5[%c0_86, %c0_87] : memref<1x64xf32, #tpu.memory_space<vmem>>, vector<1x64xf32>
    %86 = vector.broadcast %85 : vector<1x64xf32> to vector<64x64xf32>
    %87 = arith.addf %84, %86 : vector<64x64xf32>
    %cst_88 = arith.constant 0.000000e+00 : f32
    %88 = vector.broadcast %cst_88 : f32 to vector<64x64xf32>
    %89 = arith.maximumf %87, %88 : vector<64x64xf32>
    %90 = vector.shape_cast %89 : vector<64x64xf32> to vector<2x32x64xf32>
    %cst_89 = arith.constant 0.000000e+00 : f32
    %91 = vector.broadcast %cst_89 : f32 to vector<2x36x64xf32>
    %c0_90 = arith.constant 0 : index
    %c0_91 = arith.constant 0 : index
    %c0_92 = arith.constant 0 : index
    %92 = vector.load %arg20[%c0_90, %c0_91, %c0_92] : memref<2x36x64xf32, #tpu.memory_space<vmem>>, vector<2x36x64xf32>
    tpu.vector_store %arg20[%c0_90, %c0_91, %c0_92], %91 {strides = array<i32>} : memref<2x36x64xf32, #tpu.memory_space<vmem>>, vector<2x36x64xf32>,
    %c0_93 = arith.constant 0 : index
    %c2_94 = arith.constant 2 : index
    %c0_95 = arith.constant 0 : index
    %93 = vector.load %arg20[%c0_93, %c2_94, %c0_95] : memref<2x36x64xf32, #tpu.memory_space<vmem>>, vector<2x32x64xf32>
    tpu.vector_store %arg20[%c0_93, %c2_94, %c0_95], %90 {strides = array<i32>} : memref<2x36x64xf32, #tpu.memory_space<vmem>>, vector<2x32x64xf32>,
    %cst_96 = arith.constant 0.000000e+00 : f32
    %94 = vector.broadcast %cst_96 : f32 to vector<64x128xf32>
    %c0_97 = arith.constant 0 : index
    %c0_98 = arith.constant 0 : index
    %c0_99 = arith.constant 0 : index
    %95 = vector.load %arg20[%c0_97, %c0_98, %c0_99] : memref<2x36x64xf32, #tpu.memory_space<vmem>>, vector<2x32x64xf32>
    %96 = vector.shape_cast %95 : vector<2x32x64xf32> to vector<64x64xf32>
    %97 = arith.truncf %96 : vector<64x64xf32> to vector<64x64xbf16>
    %c0_100 = arith.constant 0 : index
    %c0_101 = arith.constant 0 : index
    %c0_102 = arith.constant 0 : index
    %98 = vector.load %arg6[%c0_100, %c0_101, %c0_102] : memref<5x64x128xbf16, #tpu.memory_space<vmem>>, vector<1x64x128xbf16>
    %99 = vector.shape_cast %98 : vector<1x64x128xbf16> to vector<64x128xbf16>
    %cst_103 = arith.constant dense<0.000000e+00> : vector<64x128xf32>
    %100 = tpu.matmul %97, %99, %cst_103 {dimension_numbers = #tpu.dot_dimension_numbers<[1], [0], [0], [1], [0, 0, 1, 1], [], []>} : vector<64x64xbf16>, vector<64x128xbf16>, vector<64x128xf32> -> vector<64x128xf32>
    %101 = arith.addf %94, %100 : vector<64x128xf32>
    %c0_104 = arith.constant 0 : index
    %c1_105 = arith.constant 1 : index
    %c0_106 = arith.constant 0 : index
    %102 = vector.load %arg20[%c0_104, %c1_105, %c0_106] : memref<2x36x64xf32, #tpu.memory_space<vmem>>, vector<2x32x64xf32>
    %103 = vector.shape_cast %102 : vector<2x32x64xf32> to vector<64x64xf32>
    %104 = arith.truncf %103 : vector<64x64xf32> to vector<64x64xbf16>
    %c1_107 = arith.constant 1 : index
    %c0_108 = arith.constant 0 : index
    %c0_109 = arith.constant 0 : index
    %105 = vector.load %arg6[%c1_107, %c0_108, %c0_109] : memref<5x64x128xbf16, #tpu.memory_space<vmem>>, vector<1x64x128xbf16>
    %106 = vector.shape_cast %105 : vector<1x64x128xbf16> to vector<64x128xbf16>
    %cst_110 = arith.constant dense<0.000000e+00> : vector<64x128xf32>
    %107 = tpu.matmul %104, %106, %cst_110 {dimension_numbers = #tpu.dot_dimension_numbers<[1], [0], [0], [1], [0, 0, 1, 1], [], []>} : vector<64x64xbf16>, vector<64x128xbf16>, vector<64x128xf32> -> vector<64x128xf32>
    %108 = arith.addf %101, %107 : vector<64x128xf32>
    %c0_111 = arith.constant 0 : index
    %c2_112 = arith.constant 2 : index
    %c0_113 = arith.constant 0 : index
    %109 = vector.load %arg20[%c0_111, %c2_112, %c0_113] : memref<2x36x64xf32, #tpu.memory_space<vmem>>, vector<2x32x64xf32>
    %110 = vector.shape_cast %109 : vector<2x32x64xf32> to vector<64x64xf32>
    %111 = arith.truncf %110 : vector<64x64xf32> to vector<64x64xbf16>
    %c2_114 = arith.constant 2 : index
    %c0_115 = arith.constant 0 : index
    %c0_116 = arith.constant 0 : index
    %112 = vector.load %arg6[%c2_114, %c0_115, %c0_116] : memref<5x64x128xbf16, #tpu.memory_space<vmem>>, vector<1x64x128xbf16>
    %113 = vector.shape_cast %112 : vector<1x64x128xbf16> to vector<64x128xbf16>
    %cst_117 = arith.constant dense<0.000000e+00> : vector<64x128xf32>
    %114 = tpu.matmul %111, %113, %cst_117 {dimension_numbers = #tpu.dot_dimension_numbers<[1], [0], [0], [1], [0, 0, 1, 1], [], []>} : vector<64x64xbf16>, vector<64x128xbf16>, vector<64x128xf32> -> vector<64x128xf32>
    %115 = arith.addf %108, %114 : vector<64x128xf32>
    %c0_118 = arith.constant 0 : index
    %c3_119 = arith.constant 3 : index
    %c0_120 = arith.constant 0 : index
    %116 = vector.load %arg20[%c0_118, %c3_119, %c0_120] : memref<2x36x64xf32, #tpu.memory_space<vmem>>, vector<2x32x64xf32>
    %117 = vector.shape_cast %116 : vector<2x32x64xf32> to vector<64x64xf32>
    %118 = arith.truncf %117 : vector<64x64xf32> to vector<64x64xbf16>
    %c3_121 = arith.constant 3 : index
    %c0_122 = arith.constant 0 : index
    %c0_123 = arith.constant 0 : index
    %119 = vector.load %arg6[%c3_121, %c0_122, %c0_123] : memref<5x64x128xbf16, #tpu.memory_space<vmem>>, vector<1x64x128xbf16>
    %120 = vector.shape_cast %119 : vector<1x64x128xbf16> to vector<64x128xbf16>
    %cst_124 = arith.constant dense<0.000000e+00> : vector<64x128xf32>
    %121 = tpu.matmul %118, %120, %cst_124 {dimension_numbers = #tpu.dot_dimension_numbers<[1], [0], [0], [1], [0, 0, 1, 1], [], []>} : vector<64x64xbf16>, vector<64x128xbf16>, vector<64x128xf32> -> vector<64x128xf32>
    %122 = arith.addf %115, %121 : vector<64x128xf32>
    %c0_125 = arith.constant 0 : index
    %c4_126 = arith.constant 4 : index
    %c0_127 = arith.constant 0 : index
    %123 = vector.load %arg20[%c0_125, %c4_126, %c0_127] : memref<2x36x64xf32, #tpu.memory_space<vmem>>, vector<2x32x64xf32>
    %124 = vector.shape_cast %123 : vector<2x32x64xf32> to vector<64x64xf32>
    %125 = arith.truncf %124 : vector<64x64xf32> to vector<64x64xbf16>
    %c4_128 = arith.constant 4 : index
    %c0_129 = arith.constant 0 : index
    %c0_130 = arith.constant 0 : index
    %126 = vector.load %arg6[%c4_128, %c0_129, %c0_130] : memref<5x64x128xbf16, #tpu.memory_space<vmem>>, vector<1x64x128xbf16>
    %127 = vector.shape_cast %126 : vector<1x64x128xbf16> to vector<64x128xbf16>
    %cst_131 = arith.constant dense<0.000000e+00> : vector<64x128xf32>
    %128 = tpu.matmul %125, %127, %cst_131 {dimension_numbers = #tpu.dot_dimension_numbers<[1], [0], [0], [1], [0, 0, 1, 1], [], []>} : vector<64x64xbf16>, vector<64x128xbf16>, vector<64x128xf32> -> vector<64x128xf32>
    %129 = arith.addf %122, %128 : vector<64x128xf32>
    %c0_132 = arith.constant 0 : index
    %c0_133 = arith.constant 0 : index
    %130 = vector.load %arg7[%c0_132, %c0_133] : memref<1x128xf32, #tpu.memory_space<vmem>>, vector<1x128xf32>
    %131 = vector.broadcast %130 : vector<1x128xf32> to vector<64x128xf32>
    %132 = arith.addf %129, %131 : vector<64x128xf32>
    %cst_134 = arith.constant 0.000000e+00 : f32
    %133 = vector.broadcast %cst_134 : f32 to vector<64x128xf32>
    %134 = arith.maximumf %132, %133 : vector<64x128xf32>
    %135 = vector.shape_cast %134 : vector<64x128xf32> to vector<2x32x128xf32>
    %c0_135 = arith.constant 0 : index
    %c0_136 = arith.constant 0 : index
    %c0_137 = arith.constant 0 : index
    %136 = vector.load %arg16[%c0_135, %c0_136, %c0_137] : memref<2x32x128xf32, #tpu.memory_space<vmem>>, vector<2x32x128xf32>
    tpu.vector_store %arg16[%c0_135, %c0_136, %c0_137], %135 {strides = array<i32>} : memref<2x32x128xf32, #tpu.memory_space<vmem>>, vector<2x32x128xf32>,
    %c0_138 = arith.constant 0 : index
    %137 = memref.load %arg0[%c0_138] : memref<1xi32, #tpu.memory_space<smem>>
    %c0_i32 = arith.constant 0 : i32
    %c24_i32 = arith.constant 24 : i32
    %138 = arith.maxsi %c0_i32, %137 : i32
    %139 = arith.minsi %c24_i32, %138 : i32
    %140 = vector.extract_strided_slice %135 {offsets = [0, 0, 0], sizes = [2, 24, 128], strides = [1, 1, 1]} : vector<2x32x128xf32> to vector<2x24x128xf32>
    %141 = vector.shape_cast %140 : vector<2x24x128xf32> to vector<48x128xf32>
    %142 = arith.truncf %141 : vector<48x128xf32> to vector<48x128xbf16>
    %c0_139 = arith.constant 0 : index
    %c0_140 = arith.constant 0 : index
    %143 = vector.load %arg8[%c0_139, %c0_140] : memref<128x768xbf16, #tpu.memory_space<vmem>>, vector<128x768xbf16>
    %cst_141 = arith.constant dense<0.000000e+00> : vector<48x768xf32>
    %144 = tpu.matmul %142, %143, %cst_141 {dimension_numbers = #tpu.dot_dimension_numbers<[1], [0], [0], [1], [0, 0, 1, 1], [], []>} : vector<48x128xbf16>, vector<128x768xbf16>, vector<48x768xf32> -> vector<48x768xf32>
    %c0_142 = arith.constant 0 : index
    %c0_143 = arith.constant 0 : index
    %145 = vector.load %arg10[%c0_142, %c0_143] : memref<1x768xf32, #tpu.memory_space<vmem>>, vector<1x768xf32>
    %146 = vector.broadcast %145 : vector<1x768xf32> to vector<48x768xf32>
    %147 = arith.addf %144, %146 : vector<48x768xf32>
    %148 = vector.shape_cast %147 : vector<48x768xf32> to vector<2x24x768xf32>
    %c0_144 = arith.constant 0 : index
    %c0_145 = arith.constant 0 : index
    %c0_146 = arith.constant 0 : index
    %149 = vector.load %arg21[%c0_144, %c0_145, %c0_146] : memref<2x24x768xf32, #tpu.memory_space<vmem>>, vector<2x24x768xf32>
    tpu.vector_store %arg21[%c0_144, %c0_145, %c0_146], %148 {strides = array<i32>} : memref<2x24x768xf32, #tpu.memory_space<vmem>>, vector<2x24x768xf32>,
    %cst_147 = arith.constant 0.000000e+00 : f32
    %150 = vector.broadcast %cst_147 : f32 to vector<2x256xf32>
    %c0_i32_148 = arith.constant 0 : i32
    %151 = arith.subi %139, %c0_i32_148 : i32
    %152 = arith.addi %c0_i32_148, %151 : i32
    %c1_i32 = arith.constant 1 : i32
    %153:2 = scf.for %arg22 = %c0_i32_148 to %152 step %c1_i32 iter_args(%arg23 = %150, %arg24 = %150) -> (vector<2x256xf32>, vector<2x256xf32>)  : i32 {
      %c0_149 = arith.constant 0 : index
      %154 = arith.index_cast %arg22 : i32 to index
      %c0_150 = arith.constant 0 : index
      %155 = vector.load %arg21[%c0_149, %154, %c0_150] : memref<2x24x768xf32, #tpu.memory_space<vmem>>, vector<2x1x768xf32>
      %156 = vector.shape_cast %155 : vector<2x1x768xf32> to vector<2x768xf32>
      %157 = arith.truncf %arg23 : vector<2x256xf32> to vector<2x256xbf16>
      %c0_151 = arith.constant 0 : index
      %c0_152 = arith.constant 0 : index
      %158 = vector.load %arg9[%c0_151, %c0_152] : memref<256x768xbf16, #tpu.memory_space<vmem>>, vector<256x768xbf16>
      %cst_153 = arith.constant dense<0.000000e+00> : vector<2x768xf32>
      %159 = tpu.matmul %157, %158, %cst_153 {dimension_numbers = #tpu.dot_dimension_numbers<[1], [0], [0], [1], [0, 0, 1, 1], [], []>} : vector<2x256xbf16>, vector<256x768xbf16>, vector<2x768xf32> -> vector<2x768xf32>
      %c0_154 = arith.constant 0 : index
      %c0_155 = arith.constant 0 : index
      %160 = vector.load %arg11[%c0_154, %c0_155] : memref<1x768xf32, #tpu.memory_space<vmem>>, vector<1x768xf32>
      %161 = vector.broadcast %160 : vector<1x768xf32> to vector<2x768xf32>
      %162 = arith.addf %159, %161 : vector<2x768xf32>
      %163 = arith.truncf %arg24 : vector<2x256xf32> to vector<2x256xbf16>
      %c0_156 = arith.constant 0 : index
      %c0_157 = arith.constant 0 : index
      %164 = vector.load %arg13[%c0_156, %c0_157] : memref<256x768xbf16, #tpu.memory_space<vmem>>, vector<256x768xbf16>
      %cst_158 = arith.constant dense<0.000000e+00> : vector<2x768xf32>
      %165 = tpu.matmul %163, %164, %cst_158 {dimension_numbers = #tpu.dot_dimension_numbers<[1], [0], [0], [1], [0, 0, 1, 1], [], []>} : vector<2x256xbf16>, vector<256x768xbf16>, vector<2x768xf32> -> vector<2x768xf32>
      %c0_159 = arith.constant 0 : index
      %c0_160 = arith.constant 0 : index
      %166 = vector.load %arg15[%c0_159, %c0_160] : memref<1x768xf32, #tpu.memory_space<vmem>>, vector<1x768xf32>
      %167 = vector.broadcast %166 : vector<1x768xf32> to vector<2x768xf32>
      %168 = arith.addf %165, %167 : vector<2x768xf32>
      %169 = vector.extract_strided_slice %156 {offsets = [0, 0], sizes = [2, 256], strides = [1, 1]} : vector<2x768xf32> to vector<2x256xf32>
      %170 = vector.extract_strided_slice %162 {offsets = [0, 0], sizes = [2, 256], strides = [1, 1]} : vector<2x768xf32> to vector<2x256xf32>
      %171 = arith.addf %169, %170 : vector<2x256xf32>
      %172 = arith.negf %171 : vector<2x256xf32>
      %173 = math.exp %172 : vector<2x256xf32>
      %cst_161 = arith.constant 1.000000e+00 : f32
      %174 = vector.broadcast %cst_161 : f32 to vector<2x256xf32>
      %175 = arith.addf %174, %173 : vector<2x256xf32>
      %176 = arith.divf %174, %175 : vector<2x256xf32>
      %177 = vector.extract_strided_slice %156 {offsets = [0, 256], sizes = [2, 256], strides = [1, 1]} : vector<2x768xf32> to vector<2x256xf32>
      %178 = vector.extract_strided_slice %162 {offsets = [0, 256], sizes = [2, 256], strides = [1, 1]} : vector<2x768xf32> to vector<2x256xf32>
      %179 = arith.addf %177, %178 : vector<2x256xf32>
      %180 = arith.negf %179 : vector<2x256xf32>
      %181 = math.exp %180 : vector<2x256xf32>
      %cst_162 = arith.constant 1.000000e+00 : f32
      %182 = vector.broadcast %cst_162 : f32 to vector<2x256xf32>
      %183 = arith.addf %182, %181 : vector<2x256xf32>
      %184 = arith.divf %182, %183 : vector<2x256xf32>
      %185 = vector.extract_strided_slice %156 {offsets = [0, 512], sizes = [2, 256], strides = [1, 1]} : vector<2x768xf32> to vector<2x256xf32>
      %186 = vector.extract_strided_slice %162 {offsets = [0, 512], sizes = [2, 256], strides = [1, 1]} : vector<2x768xf32> to vector<2x256xf32>
      %187 = arith.mulf %176, %186 : vector<2x256xf32>
      %188 = arith.addf %185, %187 : vector<2x256xf32>
      %189 = math.tanh %188 : vector<2x256xf32>
      %cst_163 = arith.constant 1.000000e+00 : f32
      %190 = vector.broadcast %cst_163 : f32 to vector<2x256xf32>
      %191 = arith.subf %190, %184 : vector<2x256xf32>
      %192 = arith.mulf %191, %189 : vector<2x256xf32>
      %193 = arith.mulf %184, %arg23 : vector<2x256xf32>
      %194 = arith.addf %192, %193 : vector<2x256xf32>
      %195 = arith.truncf %194 : vector<2x256xf32> to vector<2x256xbf16>
      %c0_164 = arith.constant 0 : index
      %c0_165 = arith.constant 0 : index
      %196 = vector.load %arg12[%c0_164, %c0_165] : memref<256x768xbf16, #tpu.memory_space<vmem>>, vector<256x768xbf16>
      %cst_166 = arith.constant dense<0.000000e+00> : vector<2x768xf32>
      %197 = tpu.matmul %195, %196, %cst_166 {dimension_numbers = #tpu.dot_dimension_numbers<[1], [0], [0], [1], [0, 0, 1, 1], [], []>} : vector<2x256xbf16>, vector<256x768xbf16>, vector<2x768xf32> -> vector<2x768xf32>
      %c0_167 = arith.constant 0 : index
      %c0_168 = arith.constant 0 : index
      %198 = vector.load %arg14[%c0_167, %c0_168] : memref<1x768xf32, #tpu.memory_space<vmem>>, vector<1x768xf32>
      %199 = vector.broadcast %198 : vector<1x768xf32> to vector<2x768xf32>
      %200 = arith.addf %197, %199 : vector<2x768xf32>
      %201 = vector.extract_strided_slice %200 {offsets = [0, 0], sizes = [2, 256], strides = [1, 1]} : vector<2x768xf32> to vector<2x256xf32>
      %202 = vector.extract_strided_slice %168 {offsets = [0, 0], sizes = [2, 256], strides = [1, 1]} : vector<2x768xf32> to vector<2x256xf32>
      %203 = arith.addf %201, %202 : vector<2x256xf32>
      %204 = arith.negf %203 : vector<2x256xf32>
      %205 = math.exp %204 : vector<2x256xf32>
      %cst_169 = arith.constant 1.000000e+00 : f32
      %206 = vector.broadcast %cst_169 : f32 to vector<2x256xf32>
      %207 = arith.addf %206, %205 : vector<2x256xf32>
      %208 = arith.divf %206, %207 : vector<2x256xf32>
      %209 = vector.extract_strided_slice %200 {offsets = [0, 256], sizes = [2, 256], strides = [1, 1]} : vector<2x768xf32> to vector<2x256xf32>
      %210 = vector.extract_strided_slice %168 {offsets = [0, 256], sizes = [2, 256], strides = [1, 1]} : vector<2x768xf32> to vector<2x256xf32>
      %211 = arith.addf %209, %210 : vector<2x256xf32>
      %212 = arith.negf %211 : vector<2x256xf32>
      %213 = math.exp %212 : vector<2x256xf32>
      %cst_170 = arith.constant 1.000000e+00 : f32
      %214 = vector.broadcast %cst_170 : f32 to vector<2x256xf32>
      %215 = arith.addf %214, %213 : vector<2x256xf32>
      %216 = arith.divf %214, %215 : vector<2x256xf32>
      %217 = vector.extract_strided_slice %200 {offsets = [0, 512], sizes = [2, 256], strides = [1, 1]} : vector<2x768xf32> to vector<2x256xf32>
      %218 = vector.extract_strided_slice %168 {offsets = [0, 512], sizes = [2, 256], strides = [1, 1]} : vector<2x768xf32> to vector<2x256xf32>
      %219 = arith.mulf %208, %218 : vector<2x256xf32>
      %220 = arith.addf %217, %219 : vector<2x256xf32>
      %221 = math.tanh %220 : vector<2x256xf32>
      %cst_171 = arith.constant 1.000000e+00 : f32
      %222 = vector.broadcast %cst_171 : f32 to vector<2x256xf32>
      %223 = arith.subf %222, %216 : vector<2x256xf32>
      %224 = arith.mulf %223, %221 : vector<2x256xf32>
      %225 = arith.mulf %216, %arg24 : vector<2x256xf32>
      %226 = arith.addf %224, %225 : vector<2x256xf32>
      %227 = vector.shape_cast %226 : vector<2x256xf32> to vector<2x1x256xf32>
      %c0_172 = arith.constant 0 : index
      %228 = arith.index_cast %arg22 : i32 to index
      %c0_173 = arith.constant 0 : index
      %229 = vector.load %arg17[%c0_172, %228, %c0_173] : memref<2x24x256xf32, #tpu.memory_space<vmem>>, vector<2x1x256xf32>
      tpu.vector_store %arg17[%c0_172, %228, %c0_173], %227 {strides = array<i32>} : memref<2x24x256xf32, #tpu.memory_space<vmem>>, vector<2x1x256xf32>,
      scf.yield %194, %226 : vector<2x256xf32>, vector<2x256xf32>
    }
    return
  }
}

</mosaic_0001>

<llo_original>
// kernel: tpu_custom_call.1
$region0: #{tpu_custom_call.1}
  #allocation0 [shape = 'u32[]', space=smem, size = 0x4, offset = 0x4, fixed_abs, tag = 'smem constant byte address 0x4 - core index']
  #allocation1 [shape = 'u32[144,128]{1,0:T(1,128)}', space=vmem, size = 0x12000, scoped, tag = 'internal scratch']
  #allocation2 [shape = 'f32[2,36,4]{2,1,0:T(8,128)}', space=vmem, size = 0xa000, scoped, tag = 'scratch operand']
  #allocation3 [shape = 'f32[2,36,32]{2,1,0:T(8,128)}', space=vmem, size = 0xa000, scoped, tag = 'scratch operand']
  #allocation4 [shape = 'f32[2,36,64]{2,1,0:T(8,128)}', space=vmem, size = 0xa000, scoped, tag = 'scratch operand']
  #allocation5 [shape = 'f32[2,24,768]{2,1,0:T(8,128)}', space=vmem, size = 0x24000, scoped, tag = 'scratch operand']
  #allocation6 [shape = 's32[1]{0:T(128)S(6)}', space=smem, size = 0x200, scoped, tag = 'scoped memory for tpu_custom_call.1']
  %s0 = inlined_call_operand.<no memory space> [shape: s32[1], index: 0, kind: input, shape index: {}]
  %s1 = inlined_call_operand.vmem [shape: f32[2,32,4], index: 1, kind: input, shape index: {}]
  %s2 = inlined_call_operand.hbm [shape: bf16[5,4,32], index: 2, kind: input, shape index: {}]
  %s3 = inlined_call_operand.hbm [shape: f32[1,32], index: 3, kind: input, shape index: {}]
  %s4 = inlined_call_operand.vmem [shape: bf16[5,32,64], index: 4, kind: input, shape index: {}]
  %s5 = inlined_call_operand.hbm [shape: f32[1,64], index: 5, kind: input, shape index: {}]
  %s6 = inlined_call_operand.hbm [shape: bf16[5,64,128], index: 6, kind: input, shape index: {}]
  %s7 = inlined_call_operand.hbm [shape: f32[1,128], index: 7, kind: input, shape index: {}]
  %s8 = inlined_call_operand.hbm [shape: bf16[128,768], index: 8, kind: input, shape index: {}]
  %s9 = inlined_call_operand.hbm [shape: bf16[256,768], index: 9, kind: input, shape index: {}]
  %s10 = inlined_call_operand.vmem [shape: f32[1,768], index: 10, kind: input, shape index: {}]
  %s11 = inlined_call_operand.vmem [shape: f32[1,768], index: 11, kind: input, shape index: {}]
  %s12 = inlined_call_operand.hbm [shape: bf16[256,768], index: 12, kind: input, shape index: {}]
  %s13 = inlined_call_operand.hbm [shape: bf16[256,768], index: 13, kind: input, shape index: {}]
  %s14 = inlined_call_operand.vmem [shape: f32[1,768], index: 14, kind: input, shape index: {}]
  %s15 = inlined_call_operand.vmem [shape: f32[1,768], index: 15, kind: input, shape index: {}]
  %s16 = inlined_call_operand.hbm [shape: f32[2,32,128], index: 16, kind: output, shape index: {0}]
  %s17 = inlined_call_operand.hbm [shape: f32[2,24,256], index: 17, kind: output, shape index: {1}]
  %18 = xla_tuple %s16, %s17
  %s19 = sld [smem:[#allocation0]]
  $region125: #{tpu_custom_call.1} parent=0
    _
  %s21 = ssub.s32 1, %s19
  %s22 = scalar_select 0, %s21, %s19
  %23 = sst [smem:[#allocation6]] %s0
  $region1: #{tpu_custom_call.1} parent=0
    #allocation7 [shape = 'u8[5120]{0}', space=vmem, size = 0x1400, scoped, tag = 'input window, operand 2, single buffered']
    #allocation8 [shape = 's32[1]{0}', space=sflag, size = 0x4, scoped, tag = 'scoped memory for tpu_custom_call.1']
    #allocation9 [shape = 's32[1]{0}', space=sflag, size = 0x4, scoped, tag = 'scoped memory for tpu_custom_call.1']
    #allocation10 [shape = 'u8[512]{0}', space=vmem, size = 0x400, scoped, tag = 'input window, operand 3, single buffered']
    #allocation11 [shape = 's32[1]{0}', space=sflag, size = 0x4, scoped, tag = 'scoped memory for tpu_custom_call.1']
    #allocation12 [shape = 'u8[512]{0}', space=vmem, size = 0x400, scoped, tag = 'input window, operand 5, single buffered']
    #allocation13 [shape = 'u8[81920]{0}', space=vmem, size = 0x14000, scoped, tag = 'input window, operand 6, single buffered']
    #allocation14 [shape = 's32[1]{0}', space=sflag, size = 0x4, scoped, tag = 'scoped memory for tpu_custom_call.1']
    #allocation15 [shape = 'u8[512]{0}', space=vmem, size = 0x400, scoped, tag = 'input window, operand 7, single buffered']
    #allocation16 [shape = 'u8[196608]{0}', space=vmem, size = 0x30000, scoped, tag = 'input window, operand 8, single buffered']
    #allocation17 [shape = 's32[1]{0}', space=sflag, size = 0x4, scoped, tag = 'scoped memory for tpu_custom_call.1']
    #allocation18 [shape = 'u8[393216]{0}', space=vmem, size = 0x60000, scoped, tag = 'input window, operand 9, single buffered']
    #allocation19 [shape = 'u8[393216]{0}', space=vmem, size = 0x60000, scoped, tag = 'input window, operand 12, single buffered']
    #allocation20 [shape = 's32[1]{0}', space=sflag, size = 0x4, scoped, tag = 'scoped memory for tpu_custom_call.1']
    #allocation21 [shape = 'u8[393216]{0}', space=vmem, size = 0x60000, scoped, tag = 'input window, operand 13, single buffered']
    #allocation22 [shape = 'u8[32768]{0}', space=vmem, size = 0x8000, scoped, tag = 'output window, operand 0, single buffered']
    #allocation23 [shape = 'u8[49152]{0}', space=vmem, size = 0xc000, scoped, tag = 'output window, operand 1, single buffered']
    #allocation24 [shape = 's32[1]{0}', space=sflag, size = 0x4, scoped, tag = 'scoped memory for tpu_custom_call.1']
    %24 = vsyncpa [#allocation8], 0
    %25 = vsyncpa [#allocation11], 0
    %26 = vsyncpa [#allocation14], 0
    %27 = vsyncpa [#allocation17], 0
    %28 = vsyncpa [#allocation20], 0
    %29 = vsyncpa [#allocation9], 0
    %30 = vsyncpa [#allocation24], 0
    // Predicated region
    $region2: #{tpu_custom_call.1} parent=1 // pred_check
      _
    $region3: #{tpu_custom_call.1} parent=1 // pred_check_branch
      %32 = sbr.rel (0) target = $region5
    $region4: #{tpu_custom_call.1} parent=1 // pred_region
      _
    $region5: #{tpu_custom_call.1} parent=1 // pred_fallthru
      _
    // Predicated region
    $region6: #{tpu_custom_call.1} parent=1 // pred_check
      _
    $region7: #{tpu_custom_call.1} parent=1 // pred_check_branch
      %34 = sbr.rel (0) target = $region9
    $region8: #{tpu_custom_call.1} parent=1 // pred_region
      _
    $region9: #{tpu_custom_call.1} parent=1 // pred_fallthru
      _
    // Predicated region
    $region10: #{tpu_custom_call.1} parent=1 // pred_check
      _
    $region11: #{tpu_custom_call.1} parent=1 // pred_check_branch
      %36 = sbr.rel (0) target = $region13
    $region12: #{tpu_custom_call.1} parent=1 // pred_region
      %s38 = ssub.s32 160, 160
      %39 = vsyncadd [#allocation8], %s38
      %s40 = sshll.u32 [#allocation7], 4
      %s41 = int_to_ptr.vmem [resolvable:$true] %s40
      %46 = dma.hbm_to_vmem [thread:$0]  %s2, 160, %s41, [#allocation8], 32, 32, 2
    $region13: #{tpu_custom_call.1} parent=1 // pred_fallthru
      _
    // Predicated region
    $region14: #{tpu_custom_call.1} parent=1 // pred_check
      _
    $region15: #{tpu_custom_call.1} parent=1 // pred_check_branch
      %48 = sbr.rel (0) target = $region17
    $region16: #{tpu_custom_call.1} parent=1 // pred_region
      %s50 = ssub.s32 16, 16
      %51 = vsyncadd [#allocation11], %s50
      %s53 = sshll.u32 [#allocation10], 4
      %s54 = int_to_ptr.vmem [resolvable:$true] %s53
      %56 = dma.hbm_to_vmem [thread:$0]  %s3, 16, %s54, [#allocation11]
    $region17: #{tpu_custom_call.1} parent=1 // pred_fallthru
      _
    // Predicated region
    $region18: #{tpu_custom_call.1} parent=1 // pred_check
      _
    $region19: #{tpu_custom_call.1} parent=1 // pred_check_branch
      %58 = sbr.rel (0) target = $region21
    $region20: #{tpu_custom_call.1} parent=1 // pred_region
      _
    $region21: #{tpu_custom_call.1} parent=1 // pred_fallthru
      _
    // Predicated region
    $region22: #{tpu_custom_call.1} parent=1 // pred_check
      _
    $region23: #{tpu_custom_call.1} parent=1 // pred_check_branch
      %60 = sbr.rel (0) target = $region25
    $region24: #{tpu_custom_call.1} parent=1 // pred_region
      %s62 = ssub.s32 16, 16
      %63 = vsyncadd [#allocation11], %s62
      %s65 = sshll.u32 [#allocation12], 4
      %s66 = int_to_ptr.vmem [resolvable:$true] %s65
      %68 = dma.hbm_to_vmem [thread:$0]  %s5, 16, %s66, [#allocation11]
    $region25: #{tpu_custom_call.1} parent=1 // pred_fallthru
      _
    // Predicated region
    $region26: #{tpu_custom_call.1} parent=1 // pred_check
      _
    $region27: #{tpu_custom_call.1} parent=1 // pred_check_branch
      %70 = sbr.rel (0) target = $region29
    $region28: #{tpu_custom_call.1} parent=1 // pred_region
      %s72 = ssub.s32 2560, 2560
      %73 = vsyncadd [#allocation14], %s72
      %s74 = sshll.u32 [#allocation13], 4
      %s75 = int_to_ptr.vmem [resolvable:$true] %s74
      %80 = dma.hbm_to_vmem [thread:$0]  %s6, 2560, %s75, [#allocation14], 64, 64, 4
    $region29: #{tpu_custom_call.1} parent=1 // pred_fallthru
      _
    // Predicated region
    $region30: #{tpu_custom_call.1} parent=1 // pred_check
      _
    $region31: #{tpu_custom_call.1} parent=1 // pred_check_branch
      %82 = sbr.rel (0) target = $region33
    $region32: #{tpu_custom_call.1} parent=1 // pred_region
      %s84 = ssub.s32 16, 16
      %85 = vsyncadd [#allocation14], %s84
      %s87 = sshll.u32 [#allocation15], 4
      %s88 = int_to_ptr.vmem [resolvable:$true] %s87
      %90 = dma.hbm_to_vmem [thread:$0]  %s7, 16, %s88, [#allocation14]
    $region33: #{tpu_custom_call.1} parent=1 // pred_fallthru
      _
    // Predicated region
    $region34: #{tpu_custom_call.1} parent=1 // pred_check
      _
    $region35: #{tpu_custom_call.1} parent=1 // pred_check_branch
      %92 = sbr.rel (0) target = $region37
    $region36: #{tpu_custom_call.1} parent=1 // pred_region
      %s94 = ssub.s32 6144, 6144
      %95 = vsyncadd [#allocation17], %s94
      %s96 = sshll.u32 [#allocation16], 4
      %s97 = int_to_ptr.vmem [resolvable:$true] %s96
      %102 = dma.hbm_to_vmem [thread:$0]  %s8, 6144, %s97, [#allocation17], 384, 384, 24
    $region37: #{tpu_custom_call.1} parent=1 // pred_fallthru
      _
    // Predicated region
    $region38: #{tpu_custom_call.1} parent=1 // pred_check
      _
    $region39: #{tpu_custom_call.1} parent=1 // pred_check_branch
      %104 = sbr.rel (0) target = $region41
    $region40: #{tpu_custom_call.1} parent=1 // pred_region
      %s106 = ssub.s32 12288, 12288
      %107 = vsyncadd [#allocation17], %s106
      %s108 = sshll.u32 [#allocation18], 4
      %s109 = int_to_ptr.vmem [resolvable:$true] %s108
      %114 = dma.hbm_to_vmem [thread:$0]  %s9, 12288, %s109, [#allocation17], 384, 384, 24
    $region41: #{tpu_custom_call.1} parent=1 // pred_fallthru
      _
    // Predicated region
    $region42: #{tpu_custom_call.1} parent=1 // pred_check
      _
    $region43: #{tpu_custom_call.1} parent=1 // pred_check_branch
      %116 = sbr.rel (0) target = $region45
    $region44: #{tpu_custom_call.1} parent=1 // pred_region
      _
    $region45: #{tpu_custom_call.1} parent=1 // pred_fallthru
      _
    // Predicated region
    $region46: #{tpu_custom_call.1} parent=1 // pred_check
      _
    $region47: #{tpu_custom_call.1} parent=1 // pred_check_branch
      %118 = sbr.rel (0) target = $region49
    $region48: #{tpu_custom_call.1} parent=1 // pred_region
      _
    $region49: #{tpu_custom_call.1} parent=1 // pred_fallthru
      _
    // Predicated region
    $region50: #{tpu_custom_call.1} parent=1 // pred_check
      _
    $region51: #{tpu_custom_call.1} parent=1 // pred_check_branch
      %120 = sbr.rel (0) target = $region53
    $region52: #{tpu_custom_call.1} parent=1 // pred_region
      %s122 = ssub.s32 12288, 12288
      %123 = vsyncadd [#allocation20], %s122
      %s124 = sshll.u32 [#allocation19], 4
      %s125 = int_to_ptr.vmem [resolvable:$true] %s124
      %130 = dma.hbm_to_vmem [thread:$0]  %s12, 12288, %s125, [#allocation20], 384, 384, 24
    $region53: #{tpu_custom_call.1} parent=1 // pred_fallthru
      _
    // Predicated region
    $region54: #{tpu_custom_call.1} parent=1 // pred_check
      _
    $region55: #{tpu_custom_call.1} parent=1 // pred_check_branch
      %132 = sbr.rel (0) target = $region57
    $region56: #{tpu_custom_call.1} parent=1 // pred_region
      %s134 = ssub.s32 12288, 12288
      %135 = vsyncadd [#allocation20], %s134
      %s136 = sshll.u32 [#allocation21], 4
      %s137 = int_to_ptr.vmem [resolvable:$true] %s136
      %142 = dma.hbm_to_vmem [thread:$0]  %s13, 12288, %s137, [#allocation20], 384, 384, 24
    $region57: #{tpu_custom_call.1} parent=1 // pred_fallthru
      _
    // Predicated region
    $region58: #{tpu_custom_call.1} parent=1 // pred_check
      _
    $region59: #{tpu_custom_call.1} parent=1 // pred_check_branch
      %144 = sbr.rel (0) target = $region61
    $region60: #{tpu_custom_call.1} parent=1 // pred_region
      _
    $region61: #{tpu_custom_call.1} parent=1 // pred_fallthru
      _
    // Predicated region
    $region62: #{tpu_custom_call.1} parent=1 // pred_check
      _
    $region63: #{tpu_custom_call.1} parent=1 // pred_check_branch
      %146 = sbr.rel (0) target = $region65
    $region64: #{tpu_custom_call.1} parent=1 // pred_region
      _
    $region65: #{tpu_custom_call.1} parent=1 // pred_fallthru
      _
    // Predicated region
    $region66: #{tpu_custom_call.1} parent=1 // pred_check
      _
    $region67: #{tpu_custom_call.1} parent=1 // pred_check_branch
      %148 = sbr.rel (0) target = $region69
    $region68: #{tpu_custom_call.1} parent=1 // pred_region
      %149 = dma.done [#allocation8], 160
    $region69: #{tpu_custom_call.1} parent=1 // pred_fallthru
      _
    // Predicated region
    $region70: #{tpu_custom_call.1} parent=1 // pred_check
      _
    $region71: #{tpu_custom_call.1} parent=1 // pred_check_branch
      %151 = sbr.rel (0) target = $region73
    $region72: #{tpu_custom_call.1} parent=1 // pred_region
      %152 = dma.done [#allocation11], 16
    $region73: #{tpu_custom_call.1} parent=1 // pred_fallthru
      _
    // Predicated region
    $region74: #{tpu_custom_call.1} parent=1 // pred_check
      _
    $region75: #{tpu_custom_call.1} parent=1 // pred_check_branch
      %154 = sbr.rel (0) target = $region77
    $region76: #{tpu_custom_call.1} parent=1 // pred_region
      %155 = dma.done [#allocation11], 16
    $region77: #{tpu_custom_call.1} parent=1 // pred_fallthru
      _
    // Predicated region
    $region78: #{tpu_custom_call.1} parent=1 // pred_check
      _
    $region79: #{tpu_custom_call.1} parent=1 // pred_check_branch
      %157 = sbr.rel (0) target = $region81
    $region80: #{tpu_custom_call.1} parent=1 // pred_region
      %158 = dma.done [#allocation14], 2560
    $region81: #{tpu_custom_call.1} parent=1 // pred_fallthru
      _
    // Predicated region
    $region82: #{tpu_custom_call.1} parent=1 // pred_check
      _
    $region83: #{tpu_custom_call.1} parent=1 // pred_check_branch
      %160 = sbr.rel (0) target = $region85
    $region84: #{tpu_custom_call.1} parent=1 // pred_region
      %161 = dma.done [#allocation14], 16
    $region85: #{tpu_custom_call.1} parent=1 // pred_fallthru
      _
    // Predicated region
    $region86: #{tpu_custom_call.1} parent=1 // pred_check
      _
    $region87: #{tpu_custom_call.1} parent=1 // pred_check_branch
      %163 = sbr.rel (0) target = $region89
    $region88: #{tpu_custom_call.1} parent=1 // pred_region
      %164 = dma.done [#allocation17], 6144
    $region89: #{tpu_custom_call.1} parent=1 // pred_fallthru
      _
    // Predicated region
    $region90: #{tpu_custom_call.1} parent=1 // pred_check
      _
    $region91: #{tpu_custom_call.1} parent=1 // pred_check_branch
      %166 = sbr.rel (0) target = $region93
    $region92: #{tpu_custom_call.1} parent=1 // pred_region
      %167 = dma.done [#allocation17], 12288
    $region93: #{tpu_custom_call.1} parent=1 // pred_fallthru
      _
    // Predicated region
    $region94: #{tpu_custom_call.1} parent=1 // pred_check
      _
    $region95: #{tpu_custom_call.1} parent=1 // pred_check_branch
      %169 = sbr.rel (0) target = $region97
    $region96: #{tpu_custom_call.1} parent=1 // pred_region
      %170 = dma.done [#allocation20], 12288
    $region97: #{tpu_custom_call.1} parent=1 // pred_fallthru
      _
    // Predicated region
    $region98: #{tpu_custom_call.1} parent=1 // pred_check
      _
    $region99: #{tpu_custom_call.1} parent=1 // pred_check_branch
      %172 = sbr.rel (0) target = $region101
    $region100: #{tpu_custom_call.1} parent=1 // pred_region
      %173 = dma.done [#allocation20], 12288
    $region101: #{tpu_custom_call.1} parent=1 // pred_fallthru
      _
    %v175 = vld [vmem:[%s1] sm:$0xff]
    %v176 = vld [vmem:[%s1 + $0x8] sm:$0xff]
    %v177 = vld [vmem:[%s1 + $0x10] sm:$0xff]
    %v178 = vld [vmem:[%s1 + $0x18] sm:$0xff]
    %v179 = vld [vmem:[%s1 + $0x20] sm:$0xff]
    %v180 = vld [vmem:[%s1 + $0x28] sm:$0xff]
    %v181 = vld [vmem:[%s1 + $0x30] sm:$0xff]
    %v182 = vld [vmem:[%s1 + $0x38] sm:$0xff]
    %vm183 = vcmask 31744
    %184 = vst.msk [vmem:[#allocation2] sm:$0xff] %vm183, 0.0
    %185 = vst.msk [vmem:[#allocation2 + $0x8] sm:$0xff] %vm183, 0.0
    %186 = vst.msk [vmem:[#allocation2 + $0x10] sm:$0xff] %vm183, 0.0
    %187 = vst.msk [vmem:[#allocation2 + $0x18] sm:$0xff] %vm183, 0.0
    %vm188 = vcmask 27648
    %189 = vst.msk [vmem:[#allocation2 + $0x20] sm:$0xf] %vm188, 0.0
    %190 = vst.msk [vmem:[#allocation2 + $0x28] sm:$0xff] %vm183, 0.0
    %191 = vst.msk [vmem:[#allocation2 + $0x30] sm:$0xff] %vm183, 0.0
    %192 = vst.msk [vmem:[#allocation2 + $0x38] sm:$0xff] %vm183, 0.0
    %193 = vst.msk [vmem:[#allocation2 + $0x40] sm:$0xff] %vm183, 0.0
    %194 = vst.msk [vmem:[#allocation2 + $0x48] sm:$0xf] %vm188, 0.0
    %195 = vst.msk [vmem:[#allocation2 + $0x2] sm:$0xff] %vm183, %v175
    %196 = vst.msk [vmem:[#allocation2 + $0xa] sm:$0xff] %vm183, %v176
    %197 = vst.msk [vmem:[#allocation2 + $0x12] sm:$0xff] %vm183, %v177
    %198 = vst.msk [vmem:[#allocation2 + $0x1a] sm:$0xff] %vm183, %v178
    %199 = vst.msk [vmem:[#allocation2 + $0x2a] sm:$0xff] %vm183, %v179
    %200 = vst.msk [vmem:[#allocation2 + $0x32] sm:$0xff] %vm183, %v180
    %201 = vst.msk [vmem:[#allocation2 + $0x3a] sm:$0xff] %vm183, %v181
    %202 = vst.msk [vmem:[#allocation2 + $0x42] sm:$0xff] %vm183, %v182
    %v203 = vld [vmem:[#allocation2] sm:$0xff]
    %v204 = vld [vmem:[#allocation2 + $0x8] sm:$0xff]
    %v205 = vld [vmem:[#allocation2 + $0x10] sm:$0xff]
    %v206 = vld [vmem:[#allocation2 + $0x18] sm:$0xff]
    %v207 = vld [vmem:[#allocation2 + $0x28] sm:$0xff]
    %v208 = vld [vmem:[#allocation2 + $0x30] sm:$0xff]
    %v209 = vld [vmem:[#allocation2 + $0x38] sm:$0xff]
    %v210 = vld [vmem:[#allocation2 + $0x40] sm:$0xff]
    %v211 = vpack.c.bf16 %v204, %v203
    %v212 = vpack.c.bf16 %v206, %v205
    %v213 = vpack.c.bf16 %v208, %v207
    %v214 = vpack.c.bf16 %v210, %v209
    %v215 = vld [vmem:[#allocation7] sm:$0x3]
    %v216 = vld [vmem:[#allocation2 + $0x1] sm:$0xff]
    %v217 = vld [vmem:[#allocation2 + $0x9] sm:$0xff]
    %v218 = vld [vmem:[#allocation2 + $0x11] sm:$0xff]
    %v219 = vld [vmem:[#allocation2 + $0x19] sm:$0xff]
    %v220 = vld [vmem:[#allocation2 + $0x29] sm:$0xff]
    %v221 = vld [vmem:[#allocation2 + $0x31] sm:$0xff]
    %v222 = vld [vmem:[#allocation2 + $0x39] sm:$0xff]
    %v223 = vld [vmem:[#allocation2 + $0x41] sm:$0xff]
    %v224 = vpack.c.bf16 %v217, %v216
    %v225 = vpack.c.bf16 %v219, %v218
    %v226 = vpack.c.bf16 %v221, %v220
    %v227 = vpack.c.bf16 %v223, %v222
    %s228 = scalar_lea.vmem [#allocation7], 2
    %v229 = vld [vmem:[%s228] sm:$0x3]
    %v231 = vsel %vm183, %v224, 0
    %v234 = vsel %vm183, %v225, 0
    %v237 = vsel %vm183, %v226, 0
    %v240 = vsel %vm183, %v227, 0
    %vm242 = vcmask 1041408
    %v244 = vsel %vm242, %v229, 0
    %246 = vmatprep.subr.bf16.mxu0 0
    %247 = vmatpush1.bf16.msra.mxu0 %v244
    %248 = vmatprep.subr.bf16.mxu0 0
    %249 = vmatpush1.bf16.msra.mxu0 0
    %250 = vmatprep.subr.bf16.mxu0 0
    %251 = vmatpush1.bf16.msra.mxu0 0
    %252 = vmatprep.subr.bf16.mxu0 0
    %253 = vmatpush1.bf16.msra.mxu0 0
    %254 = vmatprep.subr.bf16.mxu0 0
    %255 = vmatpush1.bf16.msra.mxu0 0
    %256 = vmatprep.subr.bf16.mxu0 0
    %257 = vmatpush1.bf16.msra.mxu0 0
    %258 = vmatprep.subr.bf16.mxu0 0
    %259 = vmatpush1.bf16.msra.mxu0 0
    %260 = vmatprep.subr.bf16.mxu0 0
    %261 = vmatpush1.bf16.msra.mxu0 0
    %262 = vmatprep.subr.bf16.mxu0 0
    %263 = vmatpush1.bf16.msra.mxu0 0
    %264 = vmatprep.subr.bf16.mxu0 0
    %265 = vmatpush1.bf16.msra.mxu0 0
    %266 = vmatprep.subr.bf16.mxu0 0
    %267 = vmatpush1.bf16.msra.mxu0 0
    %268 = vmatprep.subr.bf16.mxu0 0
    %269 = vmatpush1.bf16.msra.mxu0 0
    %270 = vmatprep.subr.bf16.mxu0 0
    %271 = vmatpush1.bf16.msra.mxu0 0
    %272 = vmatprep.subr.bf16.mxu0 0
    %273 = vmatpush1.bf16.msra.mxu0 0
    %274 = vmatprep.subr.bf16.mxu0 0
    %275 = vmatpush1.bf16.msra.mxu0 0
    %276 = vmatprep.subr.bf16.mxu0 0
    %277 = vmatpush1.bf16.msra.mxu0 0
    %278 = vmatprep.mubr.bf16.mxu0 0
    %279 = vmatmul.mubr.bf16.gmra.mrb[0].mxu0 %v231
    %v280 = vpop.f32.mrb[0].mxu0
    %v281 = vadd.f32 0.0, %v280
    %v282 = vpop.f32.mrb[0].mxu0
    %v283 = vpop.f32.mrb[0].mxu0
    %v284 = vadd.f32 0.0, %v283
    %v285 = vpop.f32.mrb[0].mxu0
    %286 = vmatprep.mubr.bf16.mxu0 0
    %287 = vmatmul.mubr.bf16.gmra.mrb[0].mxu0 %v234
    %v288 = vpop.f32.mrb[0].mxu0
    %v289 = vadd.f32 0.0, %v288
    %v290 = vpop.f32.mrb[0].mxu0
    %v291 = vpop.f32.mrb[0].mxu0
    %v292 = vadd.f32 0.0, %v291
    %v293 = vpop.f32.mrb[0].mxu0
    %294 = vmatprep.mubr.bf16.mxu0 0
    %295 = vmatmul.mubr.bf16.gmra.mrb[0].mxu0 %v237
    %v296 = vpop.f32.mrb[0].mxu0
    %v297 = vadd.f32 0.0, %v296
    %v298 = vpop.f32.mrb[0].mxu0
    %v299 = vpop.f32.mrb[0].mxu0
    %v300 = vadd.f32 0.0, %v299
    %v301 = vpop.f32.mrb[0].mxu0
    %302 = vmatprep.mubr.bf16.mxu0 0
    %303 = vmatmul.mubr.bf16.gmra.mrb[0].mxu0 %v240
    %v304 = vpop.f32.mrb[0].mxu0
    %v305 = vadd.f32 0.0, %v304
    %v306 = vpop.f32.mrb[0].mxu0
    %v307 = vpop.f32.mrb[0].mxu0
    %v308 = vadd.f32 0.0, %v307
    %v309 = vpop.f32.mrb[0].mxu0
    %310 = vdwg.mxu0
    %v312 = vsel %vm183, %v211, 0
    %v315 = vsel %vm183, %v212, 0
    %v318 = vsel %vm183, %v213, 0
    %v321 = vsel %vm183, %v214, 0
    %v324 = vsel %vm242, %v215, 0
    %326 = vmatprep.subr.bf16.mxu0 0
    %327 = vmatpush1.bf16.msra.mxu0 %v324
    %328 = vmatprep.subr.bf16.mxu0 0
    %329 = vmatpush1.bf16.msra.mxu0 0
    %330 = vmatprep.subr.bf16.mxu0 0
    %331 = vmatpush1.bf16.msra.mxu0 0
    %332 = vmatprep.subr.bf16.mxu0 0
    %333 = vmatpush1.bf16.msra.mxu0 0
    %334 = vmatprep.subr.bf16.mxu0 0
    %335 = vmatpush1.bf16.msra.mxu0 0
    %336 = vmatprep.subr.bf16.mxu0 0
    %337 = vmatpush1.bf16.msra.mxu0 0
    %338 = vmatprep.subr.bf16.mxu0 0
    %339 = vmatpush1.bf16.msra.mxu0 0
    %340 = vmatprep.subr.bf16.mxu0 0
    %341 = vmatpush1.bf16.msra.mxu0 0
    %342 = vmatprep.subr.bf16.mxu0 0
    %343 = vmatpush1.bf16.msra.mxu0 0
    %344 = vmatprep.subr.bf16.mxu0 0
    %345 = vmatpush1.bf16.msra.mxu0 0
    %346 = vmatprep.subr.bf16.mxu0 0
    %347 = vmatpush1.bf16.msra.mxu0 0
    %348 = vmatprep.subr.bf16.mxu0 0
    %349 = vmatpush1.bf16.msra.mxu0 0
    %350 = vmatprep.subr.bf16.mxu0 0
    %351 = vmatpush1.bf16.msra.mxu0 0
    %352 = vmatprep.subr.bf16.mxu0 0
    %353 = vmatpush1.bf16.msra.mxu0 0
    %354 = vmatprep.subr.bf16.mxu0 0
    %355 = vmatpush1.bf16.msra.mxu0 0
    %356 = vmatprep.subr.bf16.mxu0 0
    %357 = vmatpush1.bf16.msra.mxu0 0
    %358 = vmatprep.mubr.bf16.mxu0 0
    %359 = vmatmul.mubr.bf16.gmra.mrb[0].mxu0 %v312
    %v360 = vpop.f32.mrb[0].mxu0
    %v361 = vadd.f32 %v281, %v360
    %v362 = vpop.f32.mrb[0].mxu0
    %v363 = vpop.f32.mrb[0].mxu0
    %v364 = vadd.f32 %v284, %v363
    %v365 = vpop.f32.mrb[0].mxu0
    %366 = vmatprep.mubr.bf16.mxu0 0
    %367 = vmatmul.mubr.bf16.gmra.mrb[0].mxu0 %v315
    %v368 = vpop.f32.mrb[0].mxu0
    %v369 = vadd.f32 %v289, %v368
    %v370 = vpop.f32.mrb[0].mxu0
    %v371 = vpop.f32.mrb[0].mxu0
    %v372 = vadd.f32 %v292, %v371
    %v373 = vpop.f32.mrb[0].mxu0
    %374 = vmatprep.mubr.bf16.mxu0 0
    %375 = vmatmul.mubr.bf16.gmra.mrb[0].mxu0 %v318
    %v376 = vpop.f32.mrb[0].mxu0
    %v377 = vadd.f32 %v297, %v376
    %v378 = vpop.f32.mrb[0].mxu0
    %v379 = vpop.f32.mrb[0].mxu0
    %v380 = vadd.f32 %v300, %v379
    %v381 = vpop.f32.mrb[0].mxu0
    %382 = vmatprep.mubr.bf16.mxu0 0
    %383 = vmatmul.mubr.bf16.gmra.mrb[0].mxu0 %v321
    %v384 = vpop.f32.mrb[0].mxu0
    %v385 = vadd.f32 %v305, %v384
    %v386 = vpop.f32.mrb[0].mxu0
    %v387 = vpop.f32.mrb[0].mxu0
    %v388 = vadd.f32 %v308, %v387
    %v389 = vpop.f32.mrb[0].mxu0
    %390 = vdwg.mxu0
    %v391 = vld [vmem:[#allocation2 + $0x2] sm:$0xff]
    %v392 = vld [vmem:[#allocation2 + $0xa] sm:$0xff]
    %v393 = vld [vmem:[#allocation2 + $0x12] sm:$0xff]
    %v394 = vld [vmem:[#allocation2 + $0x1a] sm:$0xff]
    %v395 = vld [vmem:[#allocation2 + $0x2a] sm:$0xff]
    %v396 = vld [vmem:[#allocation2 + $0x32] sm:$0xff]
    %v397 = vld [vmem:[#allocation2 + $0x3a] sm:$0xff]
    %v398 = vld [vmem:[#allocation2 + $0x42] sm:$0xff]
    %v399 = vpack.c.bf16 %v392, %v391
    %v400 = vpack.c.bf16 %v394, %v393
    %v401 = vpack.c.bf16 %v396, %v395
    %v402 = vpack.c.bf16 %v398, %v397
    %s403 = scalar_lea.vmem [#allocation7], 4
    %v404 = vld [vmem:[%s403] sm:$0x3]
    %v406 = vsel %vm183, %v399, 0
    %v409 = vsel %vm183, %v400, 0
    %v412 = vsel %vm183, %v401, 0
    %v415 = vsel %vm183, %v402, 0
    %v418 = vsel %vm242, %v404, 0
    %420 = vmatprep.subr.bf16.mxu0 0
    %421 = vmatpush1.bf16.msra.mxu0 %v418
    %422 = vmatprep.subr.bf16.mxu0 0
    %423 = vmatpush1.bf16.msra.mxu0 0
    %424 = vmatprep.subr.bf16.mxu0 0
    %425 = vmatpush1.bf16.msra.mxu0 0
    %426 = vmatprep.subr.bf16.mxu0 0
    %427 = vmatpush1.bf16.msra.mxu0 0
    %428 = vmatprep.subr.bf16.mxu0 0
    %429 = vmatpush1.bf16.msra.mxu0 0
    %430 = vmatprep.subr.bf16.mxu0 0
    %431 = vmatpush1.bf16.msra.mxu0 0
    %432 = vmatprep.subr.bf16.mxu0 0
    %433 = vmatpush1.bf16.msra.mxu0 0
    %434 = vmatprep.subr.bf16.mxu0 0
    %435 = vmatpush1.bf16.msra.mxu0 0
    %436 = vmatprep.subr.bf16.mxu0 0
    %437 = vmatpush1.bf16.msra.mxu0 0
    %438 = vmatprep.subr.bf16.mxu0 0
    %439 = vmatpush1.bf16.msra.mxu0 0
    %440 = vmatprep.subr.bf16.mxu0 0
    %441 = vmatpush1.bf16.msra.mxu0 0
    %442 = vmatprep.subr.bf16.mxu0 0
    %443 = vmatpush1.bf16.msra.mxu0 0
    %444 = vmatprep.subr.bf16.mxu0 0
    %445 = vmatpush1.bf16.msra.mxu0 0
    %446 = vmatprep.subr.bf16.mxu0 0
    %447 = vmatpush1.bf16.msra.mxu0 0
    %448 = vmatprep.subr.bf16.mxu0 0
    %449 = vmatpush1.bf16.msra.mxu0 0
    %450 = vmatprep.subr.bf16.mxu0 0
    %451 = vmatpush1.bf16.msra.mxu0 0
    %452 = vmatprep.mubr.bf16.mxu0 0
    %453 = vmatmul.mubr.bf16.gmra.mrb[0].mxu0 %v406
    %v454 = vpop.f32.mrb[0].mxu0
    %v455 = vadd.f32 0.0, %v454
    %v456 = vpop.f32.mrb[0].mxu0
    %v457 = vpop.f32.mrb[0].mxu0
    %v458 = vadd.f32 0.0, %v457
    %v459 = vpop.f32.mrb[0].mxu0
    %460 = vmatprep.mubr.bf16.mxu0 0
    %461 = vmatmul.mubr.bf16.gmra.mrb[0].mxu0 %v409
    %v462 = vpop.f32.mrb[0].mxu0
    %v463 = vadd.f32 0.0, %v462
    %v464 = vpop.f32.mrb[0].mxu0
    %v465 = vpop.f32.mrb[0].mxu0
    %v466 = vadd.f32 0.0, %v465
    %v467 = vpop.f32.mrb[0].mxu0
    %468 = vmatprep.mubr.bf16.mxu0 0
    %469 = vmatmul.mubr.bf16.gmra.mrb[0].mxu0 %v412
    %v470 = vpop.f32.mrb[0].mxu0
    %v471 = vadd.f32 0.0, %v470
    %v472 = vpop.f32.mrb[0].mxu0
    %v473 = vpop.f32.mrb[0].mxu0
    %v474 = vadd.f32 0.0, %v473
    %v475 = vpop.f32.mrb[0].mxu0
    %476 = vmatprep.mubr.bf16.mxu0 0
    %477 = vmatmul.mubr.bf16.gmra.mrb[0].mxu0 %v415
    %v478 = vpop.f32.mrb[0].mxu0
    %v479 = vadd.f32 0.0, %v478
    %v480 = vpop.f32.mrb[0].mxu0
    %v481 = vpop.f32.mrb[0].mxu0
    %v482 = vadd.f32 0.0, %v481
    %v483 = vpop.f32.mrb[0].mxu0
    %484 = vdwg.mxu0
    %v485 = vadd.f32 %v361, %v455
    %v486 = vadd.f32 %v364, %v458
    %v487 = vadd.f32 %v369, %v463
    %v488 = vadd.f32 %v372, %v466
    %v489 = vadd.f32 %v377, %v471
    %v490 = vadd.f32 %v380, %v474
    %v491 = vadd.f32 %v385, %v479
    %v492 = vadd.f32 %v388, %v482
    %v493 = vld [vmem:[#allocation2 + $0x3] sm:$0xff]
    %v494 = vld [vmem:[#allocation2 + $0xb] sm:$0xff]
    %v495 = vld [vmem:[#allocation2 + $0x13] sm:$0xff]
    %v496 = vld [vmem:[#allocation2 + $0x1b] sm:$0xff]
    %v497 = vld [vmem:[#allocation2 + $0x2b] sm:$0xff]
    %v498 = vld [vmem:[#allocation2 + $0x33] sm:$0xff]
    %v499 = vld [vmem:[#allocation2 + $0x3b] sm:$0xff]
    %v500 = vld [vmem:[#allocation2 + $0x43] sm:$0xff]
    %v501 = vpack.c.bf16 %v494, %v493
    %v502 = vpack.c.bf16 %v496, %v495
    %v503 = vpack.c.bf16 %v498, %v497
    %v504 = vpack.c.bf16 %v500, %v499
    %s505 = scalar_lea.vmem [#allocation7], 6
    %v506 = vld [vmem:[%s505] sm:$0x3]
    %v508 = vsel %vm183, %v501, 0
    %v511 = vsel %vm183, %v502, 0
    %v514 = vsel %vm183, %v503, 0
    %v517 = vsel %vm183, %v504, 0
    %v520 = vsel %vm242, %v506, 0
    %522 = vmatprep.subr.bf16.mxu0 0
    %523 = vmatpush1.bf16.msra.mxu0 %v520
    %524 = vmatprep.subr.bf16.mxu0 0
    %525 = vmatpush1.bf16.msra.mxu0 0
    %526 = vmatprep.subr.bf16.mxu0 0
    %527 = vmatpush1.bf16.msra.mxu0 0
    %528 = vmatprep.subr.bf16.mxu0 0
    %529 = vmatpush1.bf16.msra.mxu0 0
    %530 = vmatprep.subr.bf16.mxu0 0
    %531 = vmatpush1.bf16.msra.mxu0 0
    %532 = vmatprep.subr.bf16.mxu0 0
    %533 = vmatpush1.bf16.msra.mxu0 0
    %534 = vmatprep.subr.bf16.mxu0 0
    %535 = vmatpush1.bf16.msra.mxu0 0
    %536 = vmatprep.subr.bf16.mxu0 0
    %537 = vmatpush1.bf16.msra.mxu0 0
    %538 = vmatprep.subr.bf16.mxu0 0
    %539 = vmatpush1.bf16.msra.mxu0 0
    %540 = vmatprep.subr.bf16.mxu0 0
    %541 = vmatpush1.bf16.msra.mxu0 0
    %542 = vmatprep.subr.bf16.mxu0 0
    %543 = vmatpush1.bf16.msra.mxu0 0
    %544 = vmatprep.subr.bf16.mxu0 0
    %545 = vmatpush1.bf16.msra.mxu0 0
    %546 = vmatprep.subr.bf16.mxu0 0
    %547 = vmatpush1.bf16.msra.mxu0 0
    %548 = vmatprep.subr.bf16.mxu0 0
    %549 = vmatpush1.bf16.msra.mxu0 0
    %550 = vmatprep.subr.bf16.mxu0 0
    %551 = vmatpush1.bf16.msra.mxu0 0
    %552 = vmatprep.subr.bf16.mxu0 0
    %553 = vmatpush1.bf16.msra.mxu0 0
    %554 = vmatprep.mubr.bf16.mxu0 0
    %555 = vmatmul.mubr.bf16.gmra.mrb[0].mxu0 %v508
    %v556 = vpop.f32.mrb[0].mxu0
    %v557 = vadd.f32 0.0, %v556
    %v558 = vpop.f32.mrb[0].mxu0
    %v559 = vpop.f32.mrb[0].mxu0
    %v560 = vadd.f32 0.0, %v559
    %v561 = vpop.f32.mrb[0].mxu0
    %562 = vmatprep.mubr.bf16.mxu0 0
    %563 = vmatmul.mubr.bf16.gmra.mrb[0].mxu0 %v511
    %v564 = vpop.f32.mrb[0].mxu0
    %v565 = vadd.f32 0.0, %v564
    %v566 = vpop.f32.mrb[0].mxu0
    %v567 = vpop.f32.mrb[0].mxu0
    %v568 = vadd.f32 0.0, %v567
    %v569 = vpop.f32.mrb[0].mxu0
    %570 = vmatprep.mubr.bf16.mxu0 0
    %571 = vmatmul.mubr.bf16.gmra.mrb[0].mxu0 %v514
    %v572 = vpop.f32.mrb[0].mxu0
    %v573 = vadd.f32 0.0, %v572
    %v574 = vpop.f32.mrb[0].mxu0
    %v575 = vpop.f32.mrb[0].mxu0
    %v576 = vadd.f32 0.0, %v575
    %v577 = vpop.f32.mrb[0].mxu0
    %578 = vmatprep.mubr.bf16.mxu0 0
    %579 = vmatmul.mubr.bf16.gmra.mrb[0].mxu0 %v517
    %v580 = vpop.f32.mrb[0].mxu0
    %v581 = vadd.f32 0.0, %v580
    %v582 = vpop.f32.mrb[0].mxu0
    %v583 = vpop.f32.mrb[0].mxu0
    %v584 = vadd.f32 0.0, %v583
    %v585 = vpop.f32.mrb[0].mxu0
    %586 = vdwg.mxu0
    %v587 = vadd.f32 %v485, %v557
    %v588 = vadd.f32 %v486, %v560
    %v589 = vadd.f32 %v487, %v565
    %v590 = vadd.f32 %v488, %v568
    %v591 = vadd.f32 %v489, %v573
    %v592 = vadd.f32 %v490, %v576
    %v593 = vadd.f32 %v491, %v581
    %v594 = vadd.f32 %v492, %v584
    %v595 = vld [vmem:[#allocation2 + $0x4] sm:$0xff]
    %v596 = vld [vmem:[#allocation2 + $0xc] sm:$0xff]
    %v597 = vld [vmem:[#allocation2 + $0x14] sm:$0xff]
    %v598 = vld [vmem:[#allocation2 + $0x1c] sm:$0xff]
    %v599 = vld [vmem:[#allocation2 + $0x2c] sm:$0xff]
    %v600 = vld [vmem:[#allocation2 + $0x34] sm:$0xff]
    %v601 = vld [vmem:[#allocation2 + $0x3c] sm:$0xff]
    %v602 = vld [vmem:[#allocation2 + $0x44] sm:$0xff]
    %v603 = vpack.c.bf16 %v596, %v595
    %v604 = vpack.c.bf16 %v598, %v597
    %v605 = vpack.c.bf16 %v600, %v599
    %v606 = vpack.c.bf16 %v602, %v601
    %s607 = scalar_lea.vmem [#allocation7], 8
    %v608 = vld [vmem:[%s607] sm:$0x3]
    %v610 = vsel %vm183, %v603, 0
    %v613 = vsel %vm183, %v604, 0
    %v616 = vsel %vm183, %v605, 0
    %v619 = vsel %vm183, %v606, 0
    %v622 = vsel %vm242, %v608, 0
    %624 = vmatprep.subr.bf16.mxu0 0
    %625 = vmatpush1.bf16.msra.mxu0 %v622
    %626 = vmatprep.subr.bf16.mxu0 0
    %627 = vmatpush1.bf16.msra.mxu0 0
    %628 = vmatprep.subr.bf16.mxu0 0
    %629 = vmatpush1.bf16.msra.mxu0 0
    %630 = vmatprep.subr.bf16.mxu0 0
    %631 = vmatpush1.bf16.msra.mxu0 0
    %632 = vmatprep.subr.bf16.mxu0 0
    %633 = vmatpush1.bf16.msra.mxu0 0
    %634 = vmatprep.subr.bf16.mxu0 0
    %635 = vmatpush1.bf16.msra.mxu0 0
    %636 = vmatprep.subr.bf16.mxu0 0
    %637 = vmatpush1.bf16.msra.mxu0 0
    %638 = vmatprep.subr.bf16.mxu0 0
    %639 = vmatpush1.bf16.msra.mxu0 0
    %640 = vmatprep.subr.bf16.mxu0 0
    %641 = vmatpush1.bf16.msra.mxu0 0
    %642 = vmatprep.subr.bf16.mxu0 0
    %643 = vmatpush1.bf16.msra.mxu0 0
    %644 = vmatprep.subr.bf16.mxu0 0
    %645 = vmatpush1.bf16.msra.mxu0 0
    %646 = vmatprep.subr.bf16.mxu0 0
    %647 = vmatpush1.bf16.msra.mxu0 0
    %648 = vmatprep.subr.bf16.mxu0 0
    %649 = vmatpush1.bf16.msra.mxu0 0
    %650 = vmatprep.subr.bf16.mxu0 0
    %651 = vmatpush1.bf16.msra.mxu0 0
    %652 = vmatprep.subr.bf16.mxu0 0
    %653 = vmatpush1.bf16.msra.mxu0 0
    %654 = vmatprep.subr.bf16.mxu0 0
    %655 = vmatpush1.bf16.msra.mxu0 0
    %656 = vmatprep.mubr.bf16.mxu0 0
    %657 = vmatmul.mubr.bf16.gmra.mrb[0].mxu0 %v610
    %v658 = vpop.f32.mrb[0].mxu0
    %v659 = vadd.f32 0.0, %v658
    %v660 = vpop.f32.mrb[0].mxu0
    %v661 = vpop.f32.mrb[0].mxu0
    %v662 = vadd.f32 0.0, %v661
    %v663 = vpop.f32.mrb[0].mxu0
    %664 = vmatprep.mubr.bf16.mxu0 0
    %665 = vmatmul.mubr.bf16.gmra.mrb[0].mxu0 %v613
    %v666 = vpop.f32.mrb[0].mxu0
    %v667 = vadd.f32 0.0, %v666
    %v668 = vpop.f32.mrb[0].mxu0
    %v669 = vpop.f32.mrb[0].mxu0
    %v670 = vadd.f32 0.0, %v669
    %v671 = vpop.f32.mrb[0].mxu0
    %672 = vmatprep.mubr.bf16.mxu0 0
    %673 = vmatmul.mubr.bf16.gmra.mrb[0].mxu0 %v616
    %v674 = vpop.f32.mrb[0].mxu0
    %v675 = vadd.f32 0.0, %v674
    %v676 = vpop.f32.mrb[0].mxu0
    %v677 = vpop.f32.mrb[0].mxu0
    %v678 = vadd.f32 0.0, %v677
    %v679 = vpop.f32.mrb[0].mxu0
    %680 = vmatprep.mubr.bf16.mxu0 0
    %681 = vmatmul.mubr.bf16.gmra.mrb[0].mxu0 %v619
    %v682 = vpop.f32.mrb[0].mxu0
    %v683 = vadd.f32 0.0, %v682
    %v684 = vpop.f32.mrb[0].mxu0
    %v685 = vpop.f32.mrb[0].mxu0
    %v686 = vadd.f32 0.0, %v685
    %v687 = vpop.f32.mrb[0].mxu0
    %688 = vdwg.mxu0
    %v689 = vadd.f32 %v587, %v659
    %v690 = vadd.f32 %v588, %v662
    %v691 = vadd.f32 %v589, %v667
    %v692 = vadd.f32 %v590, %v670
    %v693 = vadd.f32 %v591, %v675
    %v694 = vadd.f32 %v592, %v678
    %v695 = vadd.f32 %v593, %v683
    %v696 = vadd.f32 %v594, %v686
    %v697 = vld [vmem:[#allocation10] sm:$0x1]
    %v699 = vlaneseq
    %v700 = vshrl.u32 %v699, 7
    %v701 = vsub.s32 0, %v700
    %v702 = vrot.slane %v697, %v701
    %v704 = vadd.f32 %v689, %v702
    %v705 = vadd.f32 %v690, %v702
    %v706 = vadd.f32 %v691, %v702
    %v707 = vadd.f32 %v692, %v702
    %v708 = vadd.f32 %v693, %v702
    %v709 = vadd.f32 %v694, %v702
    %v710 = vadd.f32 %v695, %v702
    %v711 = vadd.f32 %v696, %v702
    %v712 = vmax.f32 %v704, 0.0
    %v713 = vmax.f32 %v705, 0.0
    %v714 = vmax.f32 %v706, 0.0
    %v715 = vmax.f32 %v707, 0.0
    %v716 = vmax.f32 %v708, 0.0
    %v717 = vmax.f32 %v709, 0.0
    %v718 = vmax.f32 %v710, 0.0
    %v719 = vmax.f32 %v711, 0.0
    %vm720 = vcmask 261120
    %721 = vst.msk [vmem:[#allocation3] sm:$0xff] %vm720, 0.0
    %722 = vst.msk [vmem:[#allocation3 + $0x8] sm:$0xff] %vm720, 0.0
    %723 = vst.msk [vmem:[#allocation3 + $0x10] sm:$0xff] %vm720, 0.0
    %724 = vst.msk [vmem:[#allocation3 + $0x18] sm:$0xff] %vm720, 0.0
    %vm725 = vcmask 257024
    %726 = vst.msk [vmem:[#allocation3 + $0x20] sm:$0xf] %vm725, 0.0
    %727 = vst.msk [vmem:[#allocation3 + $0x28] sm:$0xff] %vm720, 0.0
    %728 = vst.msk [vmem:[#allocation3 + $0x30] sm:$0xff] %vm720, 0.0
    %729 = vst.msk [vmem:[#allocation3 + $0x38] sm:$0xff] %vm720, 0.0
    %730 = vst.msk [vmem:[#allocation3 + $0x40] sm:$0xff] %vm720, 0.0
    %731 = vst.msk [vmem:[#allocation3 + $0x48] sm:$0xf] %vm725, 0.0
    %732 = vst.msk [vmem:[#allocation3 + $0x2] sm:$0xff] %vm720, %v712
    %733 = vst.msk [vmem:[#allocation3 + $0xa] sm:$0xff] %vm720, %v713
    %734 = vst.msk [vmem:[#allocation3 + $0x12] sm:$0xff] %vm720, %v714
    %735 = vst.msk [vmem:[#allocation3 + $0x1a] sm:$0xff] %vm720, %v715
    %736 = vst.msk [vmem:[#allocation3 + $0x2a] sm:$0xff] %vm720, %v716
    %737 = vst.msk [vmem:[#allocation3 + $0x32] sm:$0xff] %vm720, %v717
    %738 = vst.msk [vmem:[#allocation3 + $0x3a] sm:$0xff] %vm720, %v718
    %739 = vst.msk [vmem:[#allocation3 + $0x42] sm:$0xff] %vm720, %v719
    %v740 = vld [vmem:[#allocation3] sm:$0xff]
    %v741 = vld [vmem:[#allocation3 + $0x8] sm:$0xff]
    %v742 = vld [vmem:[#allocation3 + $0x10] sm:$0xff]
    %v743 = vld [vmem:[#allocation3 + $0x18] sm:$0xff]
    %v744 = vld [vmem:[#allocation3 + $0x28] sm:$0xff]
    %v745 = vld [vmem:[#allocation3 + $0x30] sm:$0xff]
    %v746 = vld [vmem:[#allocation3 + $0x38] sm:$0xff]
    %v747 = vld [vmem:[#allocation3 + $0x40] sm:$0xff]
    %v748 = vpack.c.bf16 %v741, %v740
    %v749 = vpack.c.bf16 %v743, %v742
    %v750 = vpack.c.bf16 %v745, %v744
    %v751 = vpack.c.bf16 %v747, %v746
    %v752 = vld [vmem:[%s4] sm:$0xf]
    %v753 = vld [vmem:[%s4 + $0x4] sm:$0xf]
    %v754 = vld [vmem:[%s4 + $0x8] sm:$0xf]
    %v755 = vld [vmem:[%s4 + $0xc] sm:$0xf]
    %v756 = vld [vmem:[#allocation3 + $0x1] sm:$0xff]
    %v757 = vld [vmem:[#allocation3 + $0x9] sm:$0xff]
    %v758 = vld [vmem:[#allocation3 + $0x11] sm:$0xff]
    %v759 = vld [vmem:[#allocation3 + $0x19] sm:$0xff]
    %v760 = vld [vmem:[#allocation3 + $0x29] sm:$0xff]
    %v761 = vld [vmem:[#allocation3 + $0x31] sm:$0xff]
    %v762 = vld [vmem:[#allocation3 + $0x39] sm:$0xff]
    %v763 = vld [vmem:[#allocation3 + $0x41] sm:$0xff]
    %v764 = vpack.c.bf16 %v757, %v756
    %v765 = vpack.c.bf16 %v759, %v758
    %v766 = vpack.c.bf16 %v761, %v760
    %v767 = vpack.c.bf16 %v763, %v762
    %s768 = scalar_lea.vmem %s4, 16
    %v769 = vld [vmem:[%s768] sm:$0xf]
    %v770 = vld [vmem:[%s768 + $0x4] sm:$0xf]
    %v771 = vld [vmem:[%s768 + $0x8] sm:$0xf]
    %v772 = vld [vmem:[%s768 + $0xc] sm:$0xf]
    %v777 = vunpack.c.l.b16 %v769
    %v778 = vunpack.c.l.b16 %v770
    %v779 = vunpack.c.l.b16 %v771
    %v780 = vunpack.c.l.b16 %v772
    %v781 = vpack.c.b16 %v778, %v777
    %v782 = vpack.c.b16 %v780, %v779
    %v786 = vsel %vm720, %v764, 0
    %v789 = vsel %vm720, %v765, 0
    %v792 = vsel %vm720, %v766, 0
    %v795 = vsel %vm720, %v767, 0
    %797 = vmatprep.subr.bf16.mxu0 0
    %798 = vmatpush1.bf16.msra.mxu0 %v781
    %799 = vmatprep.subr.bf16.mxu0 0
    %800 = vmatpush1.bf16.msra.mxu0 %v782
    %801 = vmatprep.subr.bf16.mxu0 0
    %802 = vmatpush1.bf16.msra.mxu0 0
    %803 = vmatprep.subr.bf16.mxu0 0
    %804 = vmatpush1.bf16.msra.mxu0 0
    %805 = vmatprep.subr.bf16.mxu0 0
    %806 = vmatpush1.bf16.msra.mxu0 0
    %807 = vmatprep.subr.bf16.mxu0 0
    %808 = vmatpush1.bf16.msra.mxu0 0
    %809 = vmatprep.subr.bf16.mxu0 0
    %810 = vmatpush1.bf16.msra.mxu0 0
    %811 = vmatprep.subr.bf16.mxu0 0
    %812 = vmatpush1.bf16.msra.mxu0 0
    %813 = vmatprep.subr.bf16.mxu0 0
    %814 = vmatpush1.bf16.msra.mxu0 0
    %815 = vmatprep.subr.bf16.mxu0 0
    %816 = vmatpush1.bf16.msra.mxu0 0
    %817 = vmatprep.subr.bf16.mxu0 0
    %818 = vmatpush1.bf16.msra.mxu0 0
    %819 = vmatprep.subr.bf16.mxu0 0
    %820 = vmatpush1.bf16.msra.mxu0 0
    %821 = vmatprep.subr.bf16.mxu0 0
    %822 = vmatpush1.bf16.msra.mxu0 0
    %823 = vmatprep.subr.bf16.mxu0 0
    %824 = vmatpush1.bf16.msra.mxu0 0
    %825 = vmatprep.subr.bf16.mxu0 0
    %826 = vmatpush1.bf16.msra.mxu0 0
    %827 = vmatprep.subr.bf16.mxu0 0
    %828 = vmatpush1.bf16.msra.mxu0 0
    %829 = vmatprep.mubr.bf16.mxu0 0
    %830 = vmatmul.mubr.bf16.gmra.mrb[0].mxu0 %v786
    %v831 = vpop.f32.mrb[0].mxu0
    %v832 = vadd.f32 0.0, %v831
    %v833 = vpop.f32.mrb[0].mxu0
    %v834 = vpop.f32.mrb[0].mxu0
    %v835 = vadd.f32 0.0, %v834
    %v836 = vpop.f32.mrb[0].mxu0
    %837 = vmatprep.mubr.bf16.mxu0 0
    %838 = vmatmul.mubr.bf16.gmra.mrb[0].mxu0 %v789
    %v839 = vpop.f32.mrb[0].mxu0
    %v840 = vadd.f32 0.0, %v839
    %v841 = vpop.f32.mrb[0].mxu0
    %v842 = vpop.f32.mrb[0].mxu0
    %v843 = vadd.f32 0.0, %v842
    %v844 = vpop.f32.mrb[0].mxu0
    %845 = vmatprep.mubr.bf16.mxu0 0
    %846 = vmatmul.mubr.bf16.gmra.mrb[0].mxu0 %v792
    %v847 = vpop.f32.mrb[0].mxu0
    %v848 = vadd.f32 0.0, %v847
    %v849 = vpop.f32.mrb[0].mxu0
    %v850 = vpop.f32.mrb[0].mxu0
    %v851 = vadd.f32 0.0, %v850
    %v852 = vpop.f32.mrb[0].mxu0
    %853 = vmatprep.mubr.bf16.mxu0 0
    %854 = vmatmul.mubr.bf16.gmra.mrb[0].mxu0 %v795
    %v855 = vpop.f32.mrb[0].mxu0
    %v856 = vadd.f32 0.0, %v855
    %v857 = vpop.f32.mrb[0].mxu0
    %v858 = vpop.f32.mrb[0].mxu0
    %v859 = vadd.f32 0.0, %v858
    %v860 = vpop.f32.mrb[0].mxu0
    %861 = vdwg.mxu0
    %v866 = vunpack.c.l.b16 %v752
    %v867 = vunpack.c.l.b16 %v753
    %v868 = vunpack.c.l.b16 %v754
    %v869 = vunpack.c.l.b16 %v755
    %v870 = vpack.c.b16 %v867, %v866
    %v871 = vpack.c.b16 %v869, %v868
    %v875 = vsel %vm720, %v748, 0
    %v878 = vsel %vm720, %v749, 0
    %v881 = vsel %vm720, %v750, 0
    %v884 = vsel %vm720, %v751, 0
    %886 = vmatprep.subr.bf16.mxu0 0
    %887 = vmatpush1.bf16.msra.mxu0 %v870
    %888 = vmatprep.subr.bf16.mxu0 0
    %889 = vmatpush1.bf16.msra.mxu0 %v871
    %890 = vmatprep.subr.bf16.mxu0 0
    %891 = vmatpush1.bf16.msra.mxu0 0
    %892 = vmatprep.subr.bf16.mxu0 0
    %893 = vmatpush1.bf16.msra.mxu0 0
    %894 = vmatprep.subr.bf16.mxu0 0
    %895 = vmatpush1.bf16.msra.mxu0 0
    %896 = vmatprep.subr.bf16.mxu0 0
    %897 = vmatpush1.bf16.msra.mxu0 0
    %898 = vmatprep.subr.bf16.mxu0 0
    %899 = vmatpush1.bf16.msra.mxu0 0
    %900 = vmatprep.subr.bf16.mxu0 0
    %901 = vmatpush1.bf16.msra.mxu0 0
    %902 = vmatprep.subr.bf16.mxu0 0
    %903 = vmatpush1.bf16.msra.mxu0 0
    %904 = vmatprep.subr.bf16.mxu0 0
    %905 = vmatpush1.bf16.msra.mxu0 0
    %906 = vmatprep.subr.bf16.mxu0 0
    %907 = vmatpush1.bf16.msra.mxu0 0
    %908 = vmatprep.subr.bf16.mxu0 0
    %909 = vmatpush1.bf16.msra.mxu0 0
    %910 = vmatprep.subr.bf16.mxu0 0
    %911 = vmatpush1.bf16.msra.mxu0 0
    %912 = vmatprep.subr.bf16.mxu0 0
    %913 = vmatpush1.bf16.msra.mxu0 0
    %914 = vmatprep.subr.bf16.mxu0 0
    %915 = vmatpush1.bf16.msra.mxu0 0
    %916 = vmatprep.subr.bf16.mxu0 0
    %917 = vmatpush1.bf16.msra.mxu0 0
    %918 = vmatprep.mubr.bf16.mxu0 0
    %919 = vmatmul.mubr.bf16.gmra.mrb[0].mxu0 %v875
    %v920 = vpop.f32.mrb[0].mxu0
    %v921 = vadd.f32 %v832, %v920
    %v922 = vpop.f32.mrb[0].mxu0
    %v923 = vpop.f32.mrb[0].mxu0
    %v924 = vadd.f32 %v835, %v923
    %v925 = vpop.f32.mrb[0].mxu0
    %926 = vmatprep.mubr.bf16.mxu0 0
    %927 = vmatmul.mubr.bf16.gmra.mrb[0].mxu0 %v878
    %v928 = vpop.f32.mrb[0].mxu0
    %v929 = vadd.f32 %v840, %v928
    %v930 = vpop.f32.mrb[0].mxu0
    %v931 = vpop.f32.mrb[0].mxu0
    %v932 = vadd.f32 %v843, %v931
    %v933 = vpop.f32.mrb[0].mxu0
    %934 = vmatprep.mubr.bf16.mxu0 0
    %935 = vmatmul.mubr.bf16.gmra.mrb[0].mxu0 %v881
    %v936 = vpop.f32.mrb[0].mxu0
    %v937 = vadd.f32 %v848, %v936
    %v938 = vpop.f32.mrb[0].mxu0
    %v939 = vpop.f32.mrb[0].mxu0
    %v940 = vadd.f32 %v851, %v939
    %v941 = vpop.f32.mrb[0].mxu0
    %942 = vmatprep.mubr.bf16.mxu0 0
    %943 = vmatmul.mubr.bf16.gmra.mrb[0].mxu0 %v884
    %v944 = vpop.f32.mrb[0].mxu0
    %v945 = vadd.f32 %v856, %v944
    %v946 = vpop.f32.mrb[0].mxu0
    %v947 = vpop.f32.mrb[0].mxu0
    %v948 = vadd.f32 %v859, %v947
    %v949 = vpop.f32.mrb[0].mxu0
    %950 = vdwg.mxu0
    %v951 = vld [vmem:[#allocation3 + $0x2] sm:$0xff]
    %v952 = vld [vmem:[#allocation3 + $0xa] sm:$0xff]
    %v953 = vld [vmem:[#allocation3 + $0x12] sm:$0xff]
    %v954 = vld [vmem:[#allocation3 + $0x1a] sm:$0xff]
    %v955 = vld [vmem:[#allocation3 + $0x2a] sm:$0xff]
    %v956 = vld [vmem:[#allocation3 + $0x32] sm:$0xff]
    %v957 = vld [vmem:[#allocation3 + $0x3a] sm:$0xff]
    %v958 = vld [vmem:[#allocation3 + $0x42] sm:$0xff]
    %v959 = vpack.c.bf16 %v952, %v951
    %v960 = vpack.c.bf16 %v954, %v953
    %v961 = vpack.c.bf16 %v956, %v955
    %v962 = vpack.c.bf16 %v958, %v957
    %s963 = scalar_lea.vmem %s4, 32
    %v964 = vld [vmem:[%s963] sm:$0xf]
    %v965 = vld [vmem:[%s963 + $0x4] sm:$0xf]
    %v966 = vld [vmem:[%s963 + $0x8] sm:$0xf]
    %v967 = vld [vmem:[%s963 + $0xc] sm:$0xf]
    %v972 = vunpack.c.l.b16 %v964
    %v973 = vunpack.c.l.b16 %v965
    %v974 = vunpack.c.l.b16 %v966
    %v975 = vunpack.c.l.b16 %v967
    %v976 = vpack.c.b16 %v973, %v972
    %v977 = vpack.c.b16 %v975, %v974
    %v981 = vsel %vm720, %v959, 0
    %v984 = vsel %vm720, %v960, 0
    %v987 = vsel %vm720, %v961, 0
    %v990 = vsel %vm720, %v962, 0
    %992 = vmatprep.subr.bf16.mxu0 0
    %993 = vmatpush1.bf16.msra.mxu0 %v976
    %994 = vmatprep.subr.bf16.mxu0 0
    %995 = vmatpush1.bf16.msra.mxu0 %v977
    %996 = vmatprep.subr.bf16.mxu0 0
    %997 = vmatpush1.bf16.msra.mxu0 0
    %998 = vmatprep.subr.bf16.mxu0 0
    %999 = vmatpush1.bf16.msra.mxu0 0
    %1000 = vmatprep.subr.bf16.mxu0 0
    %1001 = vmatpush1.bf16.msra.mxu0 0
    %1002 = vmatprep.subr.bf16.mxu0 0
    %1003 = vmatpush1.bf16.msra.mxu0 0
    %1004 = vmatprep.subr.bf16.mxu0 0
    %1005 = vmatpush1.bf16.msra.mxu0 0
    %1006 = vmatprep.subr.bf16.mxu0 0
    %1007 = vmatpush1.bf16.msra.mxu0 0
    %1008 = vmatprep.subr.bf16.mxu0 0
    %1009 = vmatpush1.bf16.msra.mxu0 0
    %1010 = vmatprep.subr.bf16.mxu0 0
    %1011 = vmatpush1.bf16.msra.mxu0 0
    %1012 = vmatprep.subr.bf16.mxu0 0
    %1013 = vmatpush1.bf16.msra.mxu0 0
    %1014 = vmatprep.subr.bf16.mxu0 0
    %1015 = vmatpush1.bf16.msra.mxu0 0
    %1016 = vmatprep.subr.bf16.mxu0 0
    %1017 = vmatpush1.bf16.msra.mxu0 0
    %1018 = vmatprep.subr.bf16.mxu0 0
    %1019 = vmatpush1.bf16.msra.mxu0 0
    %1020 = vmatprep.subr.bf16.mxu0 0
    %1021 = vmatpush1.bf16.msra.mxu0 0
    %1022 = vmatprep.subr.bf16.mxu0 0
    %1023 = vmatpush1.bf16.msra.mxu0 0
    %1024 = vmatprep.mubr.bf16.mxu0 0
    %1025 = vmatmul.mubr.bf16.gmra.mrb[0].mxu0 %v981
    %v1026 = vpop.f32.mrb[0].mxu0
    %v1027 = vadd.f32 0.0, %v1026
    %v1028 = vpop.f32.mrb[0].mxu0
    %v1029 = vpop.f32.mrb[0].mxu0
    %v1030 = vadd.f32 0.0, %v1029
    %v1031 = vpop.f32.mrb[0].mxu0
    %1032 = vmatprep.mubr.bf16.mxu0 0
    %1033 = vmatmul.mubr.bf16.gmra.mrb[0].mxu0 %v984
    %v1034 = vpop.f32.mrb[0].mxu0
    %v1035 = vadd.f32 0.0, %v1034
    %v1036 = vpop.f32.mrb[0].mxu0
    %v1037 = vpop.f32.mrb[0].mxu0
    %v1038 = vadd.f32 0.0, %v1037
    %v1039 = vpop.f32.mrb[0].mxu0
    %1040 = vmatprep.mubr.bf16.mxu0 0
    %1041 = vmatmul.mubr.bf16.gmra.mrb[0].mxu0 %v987
    %v1042 = vpop.f32.mrb[0].mxu0
    %v1043 = vadd.f32 0.0, %v1042
    %v1044 = vpop.f32.mrb[0].mxu0
    %v1045 = vpop.f32.mrb[0].mxu0
    %v1046 = vadd.f32 0.0, %v1045
    %v1047 = vpop.f32.mrb[0].mxu0
    %1048 = vmatprep.mubr.bf16.mxu0 0
    %1049 = vmatmul.mubr.bf16.gmra.mrb[0].mxu0 %v990
    %v1050 = vpop.f32.mrb[0].mxu0
    %v1051 = vadd.f32 0.0, %v1050
    %v1052 = vpop.f32.mrb[0].mxu0
    %v1053 = vpop.f32.mrb[0].mxu0
    %v1054 = vadd.f32 0.0, %v1053
    %v1055 = vpop.f32.mrb[0].mxu0
    %1056 = vdwg.mxu0
    %v1057 = vadd.f32 %v921, %v1027
    %v1058 = vadd.f32 %v924, %v1030
    %v1059 = vadd.f32 %v929, %v1035
    %v1060 = vadd.f32 %v932, %v1038
    %v1061 = vadd.f32 %v937, %v1043
    %v1062 = vadd.f32 %v940, %v1046
    %v1063 = vadd.f32 %v945, %v1051
    %v1064 = vadd.f32 %v948, %v1054
    %v1065 = vld [vmem:[#allocation3 + $0x3] sm:$0xff]
    %v1066 = vld [vmem:[#allocation3 + $0xb] sm:$0xff]
    %v1067 = vld [vmem:[#allocation3 + $0x13] sm:$0xff]
    %v1068 = vld [vmem:[#allocation3 + $0x1b] sm:$0xff]
    %v1069 = vld [vmem:[#allocation3 + $0x2b] sm:$0xff]
    %v1070 = vld [vmem:[#allocation3 + $0x33] sm:$0xff]
    %v1071 = vld [vmem:[#allocation3 + $0x3b] sm:$0xff]
    %v1072 = vld [vmem:[#allocation3 + $0x43] sm:$0xff]
    %v1073 = vpack.c.bf16 %v1066, %v1065
    %v1074 = vpack.c.bf16 %v1068, %v1067
    %v1075 = vpack.c.bf16 %v1070, %v1069
    %v1076 = vpack.c.bf16 %v1072, %v1071
    %s1077 = scalar_lea.vmem %s4, 48
    %v1078 = vld [vmem:[%s1077] sm:$0xf]
    %v1079 = vld [vmem:[%s1077 + $0x4] sm:$0xf]
    %v1080 = vld [vmem:[%s1077 + $0x8] sm:$0xf]
    %v1081 = vld [vmem:[%s1077 + $0xc] sm:$0xf]
    %v1086 = vunpack.c.l.b16 %v1078
    %v1087 = vunpack.c.l.b16 %v1079
    %v1088 = vunpack.c.l.b16 %v1080
    %v1089 = vunpack.c.l.b16 %v1081
    %v1090 = vpack.c.b16 %v1087, %v1086
    %v1091 = vpack.c.b16 %v1089, %v1088
    %v1095 = vsel %vm720, %v1073, 0
    %v1098 = vsel %vm720, %v1074, 0
    %v1101 = vsel %vm720, %v1075, 0
    %v1104 = vsel %vm720, %v1076, 0
    %1106 = vmatprep.subr.bf16.mxu0 0
    %1107 = vmatpush1.bf16.msra.mxu0 %v1090
    %1108 = vmatprep.subr.bf16.mxu0 0
    %1109 = vmatpush1.bf16.msra.mxu0 %v1091
    %1110 = vmatprep.subr.bf16.mxu0 0
    %1111 = vmatpush1.bf16.msra.mxu0 0
    %1112 = vmatprep.subr.bf16.mxu0 0
    %1113 = vmatpush1.bf16.msra.mxu0 0
    %1114 = vmatprep.subr.bf16.mxu0 0
    %1115 = vmatpush1.bf16.msra.mxu0 0
    %1116 = vmatprep.subr.bf16.mxu0 0
    %1117 = vmatpush1.bf16.msra.mxu0 0
    %1118 = vmatprep.subr.bf16.mxu0 0
    %1119 = vmatpush1.bf16.msra.mxu0 0
    %1120 = vmatprep.subr.bf16.mxu0 0
    %1121 = vmatpush1.bf16.msra.mxu0 0
    %1122 = vmatprep.subr.bf16.mxu0 0
    %1123 = vmatpush1.bf16.msra.mxu0 0
    %1124 = vmatprep.subr.bf16.mxu0 0
    %1125 = vmatpush1.bf16.msra.mxu0 0
    %1126 = vmatprep.subr.bf16.mxu0 0
    %1127 = vmatpush1.bf16.msra.mxu0 0
    %1128 = vmatprep.subr.bf16.mxu0 0
    %1129 = vmatpush1.bf16.msra.mxu0 0
    %1130 = vmatprep.subr.bf16.mxu0 0
    %1131 = vmatpush1.bf16.msra.mxu0 0
    %1132 = vmatprep.subr.bf16.mxu0 0
    %1133 = vmatpush1.bf16.msra.mxu0 0
    %1134 = vmatprep.subr.bf16.mxu0 0
    %1135 = vmatpush1.bf16.msra.mxu0 0
    %1136 = vmatprep.subr.bf16.mxu0 0
    %1137 = vmatpush1.bf16.msra.mxu0 0
    %1138 = vmatprep.mubr.bf16.mxu0 0
    %1139 = vmatmul.mubr.bf16.gmra.mrb[0].mxu0 %v1095
    %v1140 = vpop.f32.mrb[0].mxu0
    %v1141 = vadd.f32 0.0, %v1140
    %v1142 = vpop.f32.mrb[0].mxu0
    %v1143 = vpop.f32.mrb[0].mxu0
    %v1144 = vadd.f32 0.0, %v1143
    %v1145 = vpop.f32.mrb[0].mxu0
    %1146 = vmatprep.mubr.bf16.mxu0 0
    %1147 = vmatmul.mubr.bf16.gmra.mrb[0].mxu0 %v1098
    %v1148 = vpop.f32.mrb[0].mxu0
    %v1149 = vadd.f32 0.0, %v1148
    %v1150 = vpop.f32.mrb[0].mxu0
    %v1151 = vpop.f32.mrb[0].mxu0
    %v1152 = vadd.f32 0.0, %v1151
    %v1153 = vpop.f32.mrb[0].mxu0
    %1154 = vmatprep.mubr.bf16.mxu0 0
    %1155 = vmatmul.mubr.bf16.gmra.mrb[0].mxu0 %v1101
    %v1156 = vpop.f32.mrb[0].mxu0
    %v1157 = vadd.f32 0.0, %v1156
    %v1158 = vpop.f32.mrb[0].mxu0
    %v1159 = vpop.f32.mrb[0].mxu0
    %v1160 = vadd.f32 0.0, %v1159
    %v1161 = vpop.f32.mrb[0].mxu0
    %1162 = vmatprep.mubr.bf16.mxu0 0
    %1163 = vmatmul.mubr.bf16.gmra.mrb[0].mxu0 %v1104
    %v1164 = vpop.f32.mrb[0].mxu0
    %v1165 = vadd.f32 0.0, %v1164
    %v1166 = vpop.f32.mrb[0].mxu0
    %v1167 = vpop.f32.mrb[0].mxu0
    %v1168 = vadd.f32 0.0, %v1167
    %v1169 = vpop.f32.mrb[0].mxu0
    %1170 = vdwg.mxu0
    %v1171 = vadd.f32 %v1057, %v1141
    %v1172 = vadd.f32 %v1058, %v1144
    %v1173 = vadd.f32 %v1059, %v1149
    %v1174 = vadd.f32 %v1060, %v1152
    %v1175 = vadd.f32 %v1061, %v1157
    %v1176 = vadd.f32 %v1062, %v1160
    %v1177 = vadd.f32 %v1063, %v1165
    %v1178 = vadd.f32 %v1064, %v1168
    %v1179 = vld [vmem:[#allocation3 + $0x4] sm:$0xff]
    %v1180 = vld [vmem:[#allocation3 + $0xc] sm:$0xff]
    %v1181 = vld [vmem:[#allocation3 + $0x14] sm:$0xff]
    %v1182 = vld [vmem:[#allocation3 + $0x1c] sm:$0xff]
    %v1183 = vld [vmem:[#allocation3 + $0x2c] sm:$0xff]
    %v1184 = vld [vmem:[#allocation3 + $0x34] sm:$0xff]
    %v1185 = vld [vmem:[#allocation3 + $0x3c] sm:$0xff]
    %v1186 = vld [vmem:[#allocation3 + $0x44] sm:$0xff]
    %v1187 = vpack.c.bf16 %v1180, %v1179
    %v1188 = vpack.c.bf16 %v1182, %v1181
    %v1189 = vpack.c.bf16 %v1184, %v1183
    %v1190 = vpack.c.bf16 %v1186, %v1185
    %s1191 = scalar_lea.vmem %s4, 64
    %v1192 = vld [vmem:[%s1191] sm:$0xf]
    %v1193 = vld [vmem:[%s1191 + $0x4] sm:$0xf]
    %v1194 = vld [vmem:[%s1191 + $0x8] sm:$0xf]
    %v1195 = vld [vmem:[%s1191 + $0xc] sm:$0xf]
    %v1200 = vunpack.c.l.b16 %v1192
    %v1201 = vunpack.c.l.b16 %v1193
    %v1202 = vunpack.c.l.b16 %v1194
    %v1203 = vunpack.c.l.b16 %v1195
    %v1204 = vpack.c.b16 %v1201, %v1200
    %v1205 = vpack.c.b16 %v1203, %v1202
    %v1209 = vsel %vm720, %v1187, 0
    %v1212 = vsel %vm720, %v1188, 0
    %v1215 = vsel %vm720, %v1189, 0
    %v1218 = vsel %vm720, %v1190, 0
    %1220 = vmatprep.subr.bf16.mxu0 0
    %1221 = vmatpush1.bf16.msra.mxu0 %v1204
    %1222 = vmatprep.subr.bf16.mxu0 0
    %1223 = vmatpush1.bf16.msra.mxu0 %v1205
    %1224 = vmatprep.subr.bf16.mxu0 0
    %1225 = vmatpush1.bf16.msra.mxu0 0
    %1226 = vmatprep.subr.bf16.mxu0 0
    %1227 = vmatpush1.bf16.msra.mxu0 0
    %1228 = vmatprep.subr.bf16.mxu0 0
    %1229 = vmatpush1.bf16.msra.mxu0 0
    %1230 = vmatprep.subr.bf16.mxu0 0
    %1231 = vmatpush1.bf16.msra.mxu0 0
    %1232 = vmatprep.subr.bf16.mxu0 0
    %1233 = vmatpush1.bf16.msra.mxu0 0
    %1234 = vmatprep.subr.bf16.mxu0 0
    %1235 = vmatpush1.bf16.msra.mxu0 0
    %1236 = vmatprep.subr.bf16.mxu0 0
    %1237 = vmatpush1.bf16.msra.mxu0 0
    %1238 = vmatprep.subr.bf16.mxu0 0
    %1239 = vmatpush1.bf16.msra.mxu0 0
    %1240 = vmatprep.subr.bf16.mxu0 0
    %1241 = vmatpush1.bf16.msra.mxu0 0
    %1242 = vmatprep.subr.bf16.mxu0 0
    %1243 = vmatpush1.bf16.msra.mxu0 0
    %1244 = vmatprep.subr.bf16.mxu0 0
    %1245 = vmatpush1.bf16.msra.mxu0 0
    %1246 = vmatprep.subr.bf16.mxu0 0
    %1247 = vmatpush1.bf16.msra.mxu0 0
    %1248 = vmatprep.subr.bf16.mxu0 0
    %1249 = vmatpush1.bf16.msra.mxu0 0
    %1250 = vmatprep.subr.bf16.mxu0 0
    %1251 = vmatpush1.bf16.msra.mxu0 0
    %1252 = vmatprep.mubr.bf16.mxu0 0
    %1253 = vmatmul.mubr.bf16.gmra.mrb[0].mxu0 %v1209
    %v1254 = vpop.f32.mrb[0].mxu0
    %v1255 = vadd.f32 0.0, %v1254
    %v1256 = vpop.f32.mrb[0].mxu0
    %v1257 = vpop.f32.mrb[0].mxu0
    %v1258 = vadd.f32 0.0, %v1257
    %v1259 = vpop.f32.mrb[0].mxu0
    %1260 = vmatprep.mubr.bf16.mxu0 0
    %1261 = vmatmul.mubr.bf16.gmra.mrb[0].mxu0 %v1212
    %v1262 = vpop.f32.mrb[0].mxu0
    %v1263 = vadd.f32 0.0, %v1262
    %v1264 = vpop.f32.mrb[0].mxu0
    %v1265 = vpop.f32.mrb[0].mxu0
    %v1266 = vadd.f32 0.0, %v1265
    %v1267 = vpop.f32.mrb[0].mxu0
    %1268 = vmatprep.mubr.bf16.mxu0 0
    %1269 = vmatmul.mubr.bf16.gmra.mrb[0].mxu0 %v1215
    %v1270 = vpop.f32.mrb[0].mxu0
    %v1271 = vadd.f32 0.0, %v1270
    %v1272 = vpop.f32.mrb[0].mxu0
    %v1273 = vpop.f32.mrb[0].mxu0
    %v1274 = vadd.f32 0.0, %v1273
    %v1275 = vpop.f32.mrb[0].mxu0
    %1276 = vmatprep.mubr.bf16.mxu0 0
    %1277 = vmatmul.mubr.bf16.gmra.mrb[0].mxu0 %v1218
    %v1278 = vpop.f32.mrb[0].mxu0
    %v1279 = vadd.f32 0.0, %v1278
    %v1280 = vpop.f32.mrb[0].mxu0
    %v1281 = vpop.f32.mrb[0].mxu0
    %v1282 = vadd.f32 0.0, %v1281
    %v1283 = vpop.f32.mrb[0].mxu0
    %1284 = vdwg.mxu0
    %v1285 = vadd.f32 %v1171, %v1255
    %v1286 = vadd.f32 %v1172, %v1258
    %v1287 = vadd.f32 %v1173, %v1263
    %v1288 = vadd.f32 %v1174, %v1266
    %v1289 = vadd.f32 %v1175, %v1271
    %v1290 = vadd.f32 %v1176, %v1274
    %v1291 = vadd.f32 %v1177, %v1279
    %v1292 = vadd.f32 %v1178, %v1282
    %v1293 = vld [vmem:[#allocation12] sm:$0x1]
    %v1295 = vlaneseq
    %v1296 = vshrl.u32 %v1295, 7
    %v1297 = vsub.s32 0, %v1296
    %v1298 = vrot.slane %v1293, %v1297
    %v1300 = vadd.f32 %v1285, %v1298
    %v1301 = vadd.f32 %v1286, %v1298
    %v1302 = vadd.f32 %v1287, %v1298
    %v1303 = vadd.f32 %v1288, %v1298
    %v1304 = vadd.f32 %v1289, %v1298
    %v1305 = vadd.f32 %v1290, %v1298
    %v1306 = vadd.f32 %v1291, %v1298
    %v1307 = vadd.f32 %v1292, %v1298
    %v1308 = vmax.f32 %v1300, 0.0
    %v1309 = vmax.f32 %v1301, 0.0
    %v1310 = vmax.f32 %v1302, 0.0
    %v1311 = vmax.f32 %v1303, 0.0
    %v1312 = vmax.f32 %v1304, 0.0
    %v1313 = vmax.f32 %v1305, 0.0
    %v1314 = vmax.f32 %v1306, 0.0
    %v1315 = vmax.f32 %v1307, 0.0
    %vm1316 = vcmask 523264
    %1317 = vst.msk [vmem:[#allocation4] sm:$0xff] %vm1316, 0.0
    %1318 = vst.msk [vmem:[#allocation4 + $0x8] sm:$0xff] %vm1316, 0.0
    %1319 = vst.msk [vmem:[#allocation4 + $0x10] sm:$0xff] %vm1316, 0.0
    %1320 = vst.msk [vmem:[#allocation4 + $0x18] sm:$0xff] %vm1316, 0.0
    %vm1321 = vcmask 519168
    %1322 = vst.msk [vmem:[#allocation4 + $0x20] sm:$0xf] %vm1321, 0.0
    %1323 = vst.msk [vmem:[#allocation4 + $0x28] sm:$0xff] %vm1316, 0.0
    %1324 = vst.msk [vmem:[#allocation4 + $0x30] sm:$0xff] %vm1316, 0.0
    %1325 = vst.msk [vmem:[#allocation4 + $0x38] sm:$0xff] %vm1316, 0.0
    %1326 = vst.msk [vmem:[#allocation4 + $0x40] sm:$0xff] %vm1316, 0.0
    %1327 = vst.msk [vmem:[#allocation4 + $0x48] sm:$0xf] %vm1321, 0.0
    %1328 = vst.msk [vmem:[#allocation4 + $0x2] sm:$0xff] %vm1316, %v1308
    %1329 = vst.msk [vmem:[#allocation4 + $0xa] sm:$0xff] %vm1316, %v1309
    %1330 = vst.msk [vmem:[#allocation4 + $0x12] sm:$0xff] %vm1316, %v1310
    %1331 = vst.msk [vmem:[#allocation4 + $0x1a] sm:$0xff] %vm1316, %v1311
    %1332 = vst.msk [vmem:[#allocation4 + $0x2a] sm:$0xff] %vm1316, %v1312
    %1333 = vst.msk [vmem:[#allocation4 + $0x32] sm:$0xff] %vm1316, %v1313
    %1334 = vst.msk [vmem:[#allocation4 + $0x3a] sm:$0xff] %vm1316, %v1314
    %1335 = vst.msk [vmem:[#allocation4 + $0x42] sm:$0xff] %vm1316, %v1315
    %v1336 = vld [vmem:[#allocation4] sm:$0xff]
    %v1337 = vld [vmem:[#allocation4 + $0x8] sm:$0xff]
    %v1338 = vld [vmem:[#allocation4 + $0x10] sm:$0xff]
    %v1339 = vld [vmem:[#allocation4 + $0x18] sm:$0xff]
    %v1340 = vld [vmem:[#allocation4 + $0x28] sm:$0xff]
    %v1341 = vld [vmem:[#allocation4 + $0x30] sm:$0xff]
    %v1342 = vld [vmem:[#allocation4 + $0x38] sm:$0xff]
    %v1343 = vld [vmem:[#allocation4 + $0x40] sm:$0xff]
    %v1344 = vpack.c.bf16 %v1337, %v1336
    %v1345 = vpack.c.bf16 %v1339, %v1338
    %v1346 = vpack.c.bf16 %v1341, %v1340
    %v1347 = vpack.c.bf16 %v1343, %v1342
    %v1348 = vld [vmem:[#allocation13] sm:$0xf]
    %v1349 = vld [vmem:[#allocation13 + $0x4] sm:$0xf]
    %v1350 = vld [vmem:[#allocation13 + $0x8] sm:$0xf]
    %v1351 = vld [vmem:[#allocation13 + $0xc] sm:$0xf]
    %v1352 = vld [vmem:[#allocation13 + $0x10] sm:$0xf]
    %v1353 = vld [vmem:[#allocation13 + $0x14] sm:$0xf]
    %v1354 = vld [vmem:[#allocation13 + $0x18] sm:$0xf]
    %v1355 = vld [vmem:[#allocation13 + $0x1c] sm:$0xf]
    %v1356 = vld [vmem:[#allocation4 + $0x1] sm:$0xff]
    %v1357 = vld [vmem:[#allocation4 + $0x9] sm:$0xff]
    %v1358 = vld [vmem:[#allocation4 + $0x11] sm:$0xff]
    %v1359 = vld [vmem:[#allocation4 + $0x19] sm:$0xff]
    %v1360 = vld [vmem:[#allocation4 + $0x29] sm:$0xff]
    %v1361 = vld [vmem:[#allocation4 + $0x31] sm:$0xff]
    %v1362 = vld [vmem:[#allocation4 + $0x39] sm:$0xff]
    %v1363 = vld [vmem:[#allocation4 + $0x41] sm:$0xff]
    %v1364 = vpack.c.bf16 %v1357, %v1356
    %v1365 = vpack.c.bf16 %v1359, %v1358
    %v1366 = vpack.c.bf16 %v1361, %v1360
    %v1367 = vpack.c.bf16 %v1363, %v1362
    %s1368 = scalar_lea.vmem [#allocation13], 32
    %v1369 = vld [vmem:[%s1368] sm:$0xf]
    %v1370 = vld [vmem:[%s1368 + $0x4] sm:$0xf]
    %v1371 = vld [vmem:[%s1368 + $0x8] sm:$0xf]
    %v1372 = vld [vmem:[%s1368 + $0xc] sm:$0xf]
    %v1373 = vld [vmem:[%s1368 + $0x10] sm:$0xf]
    %v1374 = vld [vmem:[%s1368 + $0x14] sm:$0xf]
    %v1375 = vld [vmem:[%s1368 + $0x18] sm:$0xf]
    %v1376 = vld [vmem:[%s1368 + $0x1c] sm:$0xf]
    %v1385 = vunpack.c.l.b16 %v1369
    %v1386 = vunpack.c.l.b16 %v1370
    %v1387 = vunpack.c.l.b16 %v1371
    %v1388 = vunpack.c.l.b16 %v1372
    %v1389 = vunpack.c.l.b16 %v1373
    %v1390 = vunpack.c.l.b16 %v1374
    %v1391 = vunpack.c.l.b16 %v1375
    %v1392 = vunpack.c.l.b16 %v1376
    %v1393 = vpack.c.b16 %v1386, %v1385
    %v1394 = vpack.c.b16 %v1388, %v1387
    %v1395 = vpack.c.b16 %v1390, %v1389
    %v1396 = vpack.c.b16 %v1392, %v1391
    %v1402 = vsel %vm1316, %v1364, 0
    %v1405 = vsel %vm1316, %v1365, 0
    %v1408 = vsel %vm1316, %v1366, 0
    %v1411 = vsel %vm1316, %v1367, 0
    %1413 = vmatprep.subr.bf16.mxu0 0
    %1414 = vmatpush1.bf16.msra.mxu0 %v1393
    %1415 = vmatprep.subr.bf16.mxu0 0
    %1416 = vmatpush1.bf16.msra.mxu0 %v1394
    %1417 = vmatprep.subr.bf16.mxu0 0
    %1418 = vmatpush1.bf16.msra.mxu0 %v1395
    %1419 = vmatprep.subr.bf16.mxu0 0
    %1420 = vmatpush1.bf16.msra.mxu0 %v1396
    %1421 = vmatprep.subr.bf16.mxu0 0
    %1422 = vmatpush1.bf16.msra.mxu0 0
    %1423 = vmatprep.subr.bf16.mxu0 0
    %1424 = vmatpush1.bf16.msra.mxu0 0
    %1425 = vmatprep.subr.bf16.mxu0 0
    %1426 = vmatpush1.bf16.msra.mxu0 0
    %1427 = vmatprep.subr.bf16.mxu0 0
    %1428 = vmatpush1.bf16.msra.mxu0 0
    %1429 = vmatprep.subr.bf16.mxu0 0
    %1430 = vmatpush1.bf16.msra.mxu0 0
    %1431 = vmatprep.subr.bf16.mxu0 0
    %1432 = vmatpush1.bf16.msra.mxu0 0
    %1433 = vmatprep.subr.bf16.mxu0 0
    %1434 = vmatpush1.bf16.msra.mxu0 0
    %1435 = vmatprep.subr.bf16.mxu0 0
    %1436 = vmatpush1.bf16.msra.mxu0 0
    %1437 = vmatprep.subr.bf16.mxu0 0
    %1438 = vmatpush1.bf16.msra.mxu0 0
    %1439 = vmatprep.subr.bf16.mxu0 0
    %1440 = vmatpush1.bf16.msra.mxu0 0
    %1441 = vmatprep.subr.bf16.mxu0 0
    %1442 = vmatpush1.bf16.msra.mxu0 0
    %1443 = vmatprep.subr.bf16.mxu0 0
    %1444 = vmatpush1.bf16.msra.mxu0 0
    %1445 = vmatprep.mubr.bf16.mxu0 0
    %1446 = vmatmul.mubr.bf16.gmra.mrb[0].mxu0 %v1402
    %v1447 = vpop.f32.mrb[0].mxu0
    %v1448 = vadd.f32 0.0, %v1447
    %v1449 = vpop.f32.mrb[0].mxu0
    %v1450 = vpop.f32.mrb[0].mxu0
    %v1451 = vadd.f32 0.0, %v1450
    %v1452 = vpop.f32.mrb[0].mxu0
    %1453 = vmatprep.mubr.bf16.mxu0 0
    %1454 = vmatmul.mubr.bf16.gmra.mrb[0].mxu0 %v1405
    %v1455 = vpop.f32.mrb[0].mxu0
    %v1456 = vadd.f32 0.0, %v1455
    %v1457 = vpop.f32.mrb[0].mxu0
    %v1458 = vpop.f32.mrb[0].mxu0
    %v1459 = vadd.f32 0.0, %v1458
    %v1460 = vpop.f32.mrb[0].mxu0
    %1461 = vmatprep.mubr.bf16.mxu0 0
    %1462 = vmatmul.mubr.bf16.gmra.mrb[0].mxu0 %v1408
    %v1463 = vpop.f32.mrb[0].mxu0
    %v1464 = vadd.f32 0.0, %v1463
    %v1465 = vpop.f32.mrb[0].mxu0
    %v1466 = vpop.f32.mrb[0].mxu0
    %v1467 = vadd.f32 0.0, %v1466
    %v1468 = vpop.f32.mrb[0].mxu0
    %1469 = vmatprep.mubr.bf16.mxu0 0
    %1470 = vmatmul.mubr.bf16.gmra.mrb[0].mxu0 %v1411
    %v1471 = vpop.f32.mrb[0].mxu0
    %v1472 = vadd.f32 0.0, %v1471
    %v1473 = vpop.f32.mrb[0].mxu0
    %v1474 = vpop.f32.mrb[0].mxu0
    %v1475 = vadd.f32 0.0, %v1474
    %v1476 = vpop.f32.mrb[0].mxu0
    %1477 = vdwg.mxu0
    %v1486 = vunpack.c.l.b16 %v1348
    %v1487 = vunpack.c.l.b16 %v1349
    %v1488 = vunpack.c.l.b16 %v1350
    %v1489 = vunpack.c.l.b16 %v1351
    %v1490 = vunpack.c.l.b16 %v1352
    %v1491 = vunpack.c.l.b16 %v1353
    %v1492 = vunpack.c.l.b16 %v1354
    %v1493 = vunpack.c.l.b16 %v1355
    %v1494 = vpack.c.b16 %v1487, %v1486
    %v1495 = vpack.c.b16 %v1489, %v1488
    %v1496 = vpack.c.b16 %v1491, %v1490
    %v1497 = vpack.c.b16 %v1493, %v1492
    %v1503 = vsel %vm1316, %v1344, 0
    %v1506 = vsel %vm1316, %v1345, 0
    %v1509 = vsel %vm1316, %v1346, 0
    %v1512 = vsel %vm1316, %v1347, 0
    %1514 = vmatprep.subr.bf16.mxu0 0
    %1515 = vmatpush1.bf16.msra.mxu0 %v1494
    %1516 = vmatprep.subr.bf16.mxu0 0
    %1517 = vmatpush1.bf16.msra.mxu0 %v1495
    %1518 = vmatprep.subr.bf16.mxu0 0
    %1519 = vmatpush1.bf16.msra.mxu0 %v1496
    %1520 = vmatprep.subr.bf16.mxu0 0
    %1521 = vmatpush1.bf16.msra.mxu0 %v1497
    %1522 = vmatprep.subr.bf16.mxu0 0
    %1523 = vmatpush1.bf16.msra.mxu0 0
    %1524 = vmatprep.subr.bf16.mxu0 0
    %1525 = vmatpush1.bf16.msra.mxu0 0
    %1526 = vmatprep.subr.bf16.mxu0 0
    %1527 = vmatpush1.bf16.msra.mxu0 0
    %1528 = vmatprep.subr.bf16.mxu0 0
    %1529 = vmatpush1.bf16.msra.mxu0 0
    %1530 = vmatprep.subr.bf16.mxu0 0
    %1531 = vmatpush1.bf16.msra.mxu0 0
    %1532 = vmatprep.subr.bf16.mxu0 0
    %1533 = vmatpush1.bf16.msra.mxu0 0
    %1534 = vmatprep.subr.bf16.mxu0 0
    %1535 = vmatpush1.bf16.msra.mxu0 0
    %1536 = vmatprep.subr.bf16.mxu0 0
    %1537 = vmatpush1.bf16.msra.mxu0 0
    %1538 = vmatprep.subr.bf16.mxu0 0
    %1539 = vmatpush1.bf16.msra.mxu0 0
    %1540 = vmatprep.subr.bf16.mxu0 0
    %1541 = vmatpush1.bf16.msra.mxu0 0
    %1542 = vmatprep.subr.bf16.mxu0 0
    %1543 = vmatpush1.bf16.msra.mxu0 0
    %1544 = vmatprep.subr.bf16.mxu0 0
    %1545 = vmatpush1.bf16.msra.mxu0 0
    %1546 = vmatprep.mubr.bf16.mxu0 0
    %1547 = vmatmul.mubr.bf16.gmra.mrb[0].mxu0 %v1503
    %v1548 = vpop.f32.mrb[0].mxu0
    %v1549 = vadd.f32 %v1448, %v1548
    %v1550 = vpop.f32.mrb[0].mxu0
    %v1551 = vpop.f32.mrb[0].mxu0
    %v1552 = vadd.f32 %v1451, %v1551
    %v1553 = vpop.f32.mrb[0].mxu0
    %1554 = vmatprep.mubr.bf16.mxu0 0
    %1555 = vmatmul.mubr.bf16.gmra.mrb[0].mxu0 %v1506
    %v1556 = vpop.f32.mrb[0].mxu0
    %v1557 = vadd.f32 %v1456, %v1556
    %v1558 = vpop.f32.mrb[0].mxu0
    %v1559 = vpop.f32.mrb[0].mxu0
    %v1560 = vadd.f32 %v1459, %v1559
    %v1561 = vpop.f32.mrb[0].mxu0
    %1562 = vmatprep.mubr.bf16.mxu0 0
    %1563 = vmatmul.mubr.bf16.gmra.mrb[0].mxu0 %v1509
    %v1564 = vpop.f32.mrb[0].mxu0
    %v1565 = vadd.f32 %v1464, %v1564
    %v1566 = vpop.f32.mrb[0].mxu0
    %v1567 = vpop.f32.mrb[0].mxu0
    %v1568 = vadd.f32 %v1467, %v1567
    %v1569 = vpop.f32.mrb[0].mxu0
    %1570 = vmatprep.mubr.bf16.mxu0 0
    %1571 = vmatmul.mubr.bf16.gmra.mrb[0].mxu0 %v1512
    %v1572 = vpop.f32.mrb[0].mxu0
    %v1573 = vadd.f32 %v1472, %v1572
    %v1574 = vpop.f32.mrb[0].mxu0
    %v1575 = vpop.f32.mrb[0].mxu0
    %v1576 = vadd.f32 %v1475, %v1575
    %v1577 = vpop.f32.mrb[0].mxu0
    %1578 = vdwg.mxu0
    %v1579 = vld [vmem:[#allocation4 + $0x2] sm:$0xff]
    %v1580 = vld [vmem:[#allocation4 + $0xa] sm:$0xff]
    %v1581 = vld [vmem:[#allocation4 + $0x12] sm:$0xff]
    %v1582 = vld [vmem:[#allocation4 + $0x1a] sm:$0xff]
    %v1583 = vld [vmem:[#allocation4 + $0x2a] sm:$0xff]
    %v1584 = vld [vmem:[#allocation4 + $0x32] sm:$0xff]
    %v1585 = vld [vmem:[#allocation4 + $0x3a] sm:$0xff]
    %v1586 = vld [vmem:[#allocation4 + $0x42] sm:$0xff]
    %v1587 = vpack.c.bf16 %v1580, %v1579
    %v1588 = vpack.c.bf16 %v1582, %v1581
    %v1589 = vpack.c.bf16 %v1584, %v1583
    %v1590 = vpack.c.bf16 %v1586, %v1585
    %s1591 = scalar_lea.vmem [#allocation13], 64
    %v1592 = vld [vmem:[%s1591] sm:$0xf]
    %v1593 = vld [vmem:[%s1591 + $0x4] sm:$0xf]
    %v1594 = vld [vmem:[%s1591 + $0x8] sm:$0xf]
    %v1595 = vld [vmem:[%s1591 + $0xc] sm:$0xf]
    %v1596 = vld [vmem:[%s1591 + $0x10] sm:$0xf]
    %v1597 = vld [vmem:[%s1591 + $0x14] sm:$0xf]
    %v1598 = vld [vmem:[%s1591 + $0x18] sm:$0xf]
    %v1599 = vld [vmem:[%s1591 + $0x1c] sm:$0xf]
    %v1608 = vunpack.c.l.b16 %v1592
    %v1609 = vunpack.c.l.b16 %v1593
    %v1610 = vunpack.c.l.b16 %v1594
    %v1611 = vunpack.c.l.b16 %v1595
    %v1612 = vunpack.c.l.b16 %v1596
    %v1613 = vunpack.c.l.b16 %v1597
    %v1614 = vunpack.c.l.b16 %v1598
    %v1615 = vunpack.c.l.b16 %v1599
    %v1616 = vpack.c.b16 %v1609, %v1608
    %v1617 = vpack.c.b16 %v1611, %v1610
    %v1618 = vpack.c.b16 %v1613, %v1612
    %v1619 = vpack.c.b16 %v1615, %v1614
    %v1625 = vsel %vm1316, %v1587, 0
    %v1628 = vsel %vm1316, %v1588, 0
    %v1631 = vsel %vm1316, %v1589, 0
    %v1634 = vsel %vm1316, %v1590, 0
    %1636 = vmatprep.subr.bf16.mxu0 0
    %1637 = vmatpush1.bf16.msra.mxu0 %v1616
    %1638 = vmatprep.subr.bf16.mxu0 0
    %1639 = vmatpush1.bf16.msra.mxu0 %v1617
    %1640 = vmatprep.subr.bf16.mxu0 0
    %1641 = vmatpush1.bf16.msra.mxu0 %v1618
    %1642 = vmatprep.subr.bf16.mxu0 0
    %1643 = vmatpush1.bf16.msra.mxu0 %v1619
    %1644 = vmatprep.subr.bf16.mxu0 0
    %1645 = vmatpush1.bf16.msra.mxu0 0
    %1646 = vmatprep.subr.bf16.mxu0 0
    %1647 = vmatpush1.bf16.msra.mxu0 0
    %1648 = vmatprep.subr.bf16.mxu0 0
    %1649 = vmatpush1.bf16.msra.mxu0 0
    %1650 = vmatprep.subr.bf16.mxu0 0
    %1651 = vmatpush1.bf16.msra.mxu0 0
    %1652 = vmatprep.subr.bf16.mxu0 0
    %1653 = vmatpush1.bf16.msra.mxu0 0
    %1654 = vmatprep.subr.bf16.mxu0 0
    %1655 = vmatpush1.bf16.msra.mxu0 0
    %1656 = vmatprep.subr.bf16.mxu0 0
    %1657 = vmatpush1.bf16.msra.mxu0 0
    %1658 = vmatprep.subr.bf16.mxu0 0
    %1659 = vmatpush1.bf16.msra.mxu0 0
    %1660 = vmatprep.subr.bf16.mxu0 0
    %1661 = vmatpush1.bf16.msra.mxu0 0
    %1662 = vmatprep.subr.bf16.mxu0 0
    %1663 = vmatpush1.bf16.msra.mxu0 0
    %1664 = vmatprep.subr.bf16.mxu0 0
    %1665 = vmatpush1.bf16.msra.mxu0 0
    %1666 = vmatprep.subr.bf16.mxu0 0
    %1667 = vmatpush1.bf16.msra.mxu0 0
    %1668 = vmatprep.mubr.bf16.mxu0 0
    %1669 = vmatmul.mubr.bf16.gmra.mrb[0].mxu0 %v1625
    %v1670 = vpop.f32.mrb[0].mxu0
    %v1671 = vadd.f32 0.0, %v1670
    %v1672 = vpop.f32.mrb[0].mxu0
    %v1673 = vpop.f32.mrb[0].mxu0
    %v1674 = vadd.f32 0.0, %v1673
    %v1675 = vpop.f32.mrb[0].mxu0
    %1676 = vmatprep.mubr.bf16.mxu0 0
    %1677 = vmatmul.mubr.bf16.gmra.mrb[0].mxu0 %v1628
    %v1678 = vpop.f32.mrb[0].mxu0
    %v1679 = vadd.f32 0.0, %v1678
    %v1680 = vpop.f32.mrb[0].mxu0
    %v1681 = vpop.f32.mrb[0].mxu0
    %v1682 = vadd.f32 0.0, %v1681
    %v1683 = vpop.f32.mrb[0].mxu0
    %1684 = vmatprep.mubr.bf16.mxu0 0
    %1685 = vmatmul.mubr.bf16.gmra.mrb[0].mxu0 %v1631
    %v1686 = vpop.f32.mrb[0].mxu0
    %v1687 = vadd.f32 0.0, %v1686
    %v1688 = vpop.f32.mrb[0].mxu0
    %v1689 = vpop.f32.mrb[0].mxu0
    %v1690 = vadd.f32 0.0, %v1689
    %v1691 = vpop.f32.mrb[0].mxu0
    %1692 = vmatprep.mubr.bf16.mxu0 0
    %1693 = vmatmul.mubr.bf16.gmra.mrb[0].mxu0 %v1634
    %v1694 = vpop.f32.mrb[0].mxu0
    %v1695 = vadd.f32 0.0, %v1694
    %v1696 = vpop.f32.mrb[0].mxu0
    %v1697 = vpop.f32.mrb[0].mxu0
    %v1698 = vadd.f32 0.0, %v1697
    %v1699 = vpop.f32.mrb[0].mxu0
    %1700 = vdwg.mxu0
    %v1701 = vadd.f32 %v1549, %v1671
    %v1702 = vadd.f32 %v1552, %v1674
    %v1703 = vadd.f32 %v1557, %v1679
    %v1704 = vadd.f32 %v1560, %v1682
    %v1705 = vadd.f32 %v1565, %v1687
    %v1706 = vadd.f32 %v1568, %v1690
    %v1707 = vadd.f32 %v1573, %v1695
    %v1708 = vadd.f32 %v1576, %v1698
    %v1709 = vld [vmem:[#allocation4 + $0x3] sm:$0xff]
    %v1710 = vld [vmem:[#allocation4 + $0xb] sm:$0xff]
    %v1711 = vld [vmem:[#allocation4 + $0x13] sm:$0xff]
    %v1712 = vld [vmem:[#allocation4 + $0x1b] sm:$0xff]
    %v1713 = vld [vmem:[#allocation4 + $0x2b] sm:$0xff]
    %v1714 = vld [vmem:[#allocation4 + $0x33] sm:$0xff]
    %v1715 = vld [vmem:[#allocation4 + $0x3b] sm:$0xff]
    %v1716 = vld [vmem:[#allocation4 + $0x43] sm:$0xff]
    %v1717 = vpack.c.bf16 %v1710, %v1709
    %v1718 = vpack.c.bf16 %v1712, %v1711
    %v1719 = vpack.c.bf16 %v1714, %v1713
    %v1720 = vpack.c.bf16 %v1716, %v1715
    %s1721 = scalar_lea.vmem [#allocation13], 96
    %v1722 = vld [vmem:[%s1721] sm:$0xf]
    %v1723 = vld [vmem:[%s1721 + $0x4] sm:$0xf]
    %v1724 = vld [vmem:[%s1721 + $0x8] sm:$0xf]
    %v1725 = vld [vmem:[%s1721 + $0xc] sm:$0xf]
    %v1726 = vld [vmem:[%s1721 + $0x10] sm:$0xf]
    %v1727 = vld [vmem:[%s1721 + $0x14] sm:$0xf]
    %v1728 = vld [vmem:[%s1721 + $0x18] sm:$0xf]
    %v1729 = vld [vmem:[%s1721 + $0x1c] sm:$0xf]
    %v1738 = vunpack.c.l.b16 %v1722
    %v1739 = vunpack.c.l.b16 %v1723
    %v1740 = vunpack.c.l.b16 %v1724
    %v1741 = vunpack.c.l.b16 %v1725
    %v1742 = vunpack.c.l.b16 %v1726
    %v1743 = vunpack.c.l.b16 %v1727
    %v1744 = vunpack.c.l.b16 %v1728
    %v1745 = vunpack.c.l.b16 %v1729
    %v1746 = vpack.c.b16 %v1739, %v1738
    %v1747 = vpack.c.b16 %v1741, %v1740
    %v1748 = vpack.c.b16 %v1743, %v1742
    %v1749 = vpack.c.b16 %v1745, %v1744
    %v1755 = vsel %vm1316, %v1717, 0
    %v1758 = vsel %vm1316, %v1718, 0
    %v1761 = vsel %vm1316, %v1719, 0
    %v1764 = vsel %vm1316, %v1720, 0
    %1766 = vmatprep.subr.bf16.mxu0 0
    %1767 = vmatpush1.bf16.msra.mxu0 %v1746
    %1768 = vmatprep.subr.bf16.mxu0 0
    %1769 = vmatpush1.bf16.msra.mxu0 %v1747
    %1770 = vmatprep.subr.bf16.mxu0 0
    %1771 = vmatpush1.bf16.msra.mxu0 %v1748
    %1772 = vmatprep.subr.bf16.mxu0 0
    %1773 = vmatpush1.bf16.msra.mxu0 %v1749
    %1774 = vmatprep.subr.bf16.mxu0 0
    %1775 = vmatpush1.bf16.msra.mxu0 0
    %1776 = vmatprep.subr.bf16.mxu0 0
    %1777 = vmatpush1.bf16.msra.mxu0 0
    %1778 = vmatprep.subr.bf16.mxu0 0
    %1779 = vmatpush1.bf16.msra.mxu0 0
    %1780 = vmatprep.subr.bf16.mxu0 0
    %1781 = vmatpush1.bf16.msra.mxu0 0
    %1782 = vmatprep.subr.bf16.mxu0 0
    %1783 = vmatpush1.bf16.msra.mxu0 0
    %1784 = vmatprep.subr.bf16.mxu0 0
    %1785 = vmatpush1.bf16.msra.mxu0 0
    %1786 = vmatprep.subr.bf16.mxu0 0
    %1787 = vmatpush1.bf16.msra.mxu0 0
    %1788 = vmatprep.subr.bf16.mxu0 0
    %1789 = vmatpush1.bf16.msra.mxu0 0
    %1790 = vmatprep.subr.bf16.mxu0 0
    %1791 = vmatpush1.bf16.msra.mxu0 0
    %1792 = vmatprep.subr.bf16.mxu0 0
    %1793 = vmatpush1.bf16.msra.mxu0 0
    %1794 = vmatprep.subr.bf16.mxu0 0
    %1795 = vmatpush1.bf16.msra.mxu0 0
    %1796 = vmatprep.subr.bf16.mxu0 0
    %1797 = vmatpush1.bf16.msra.mxu0 0
    %1798 = vmatprep.mubr.bf16.mxu0 0
    %1799 = vmatmul.mubr.bf16.gmra.mrb[0].mxu0 %v1755
    %v1800 = vpop.f32.mrb[0].mxu0
    %v1801 = vadd.f32 0.0, %v1800
    %v1802 = vpop.f32.mrb[0].mxu0
    %v1803 = vpop.f32.mrb[0].mxu0
    %v1804 = vadd.f32 0.0, %v1803
    %v1805 = vpop.f32.mrb[0].mxu0
    %1806 = vmatprep.mubr.bf16.mxu0 0
    %1807 = vmatmul.mubr.bf16.gmra.mrb[0].mxu0 %v1758
    %v1808 = vpop.f32.mrb[0].mxu0
    %v1809 = vadd.f32 0.0, %v1808
    %v1810 = vpop.f32.mrb[0].mxu0
    %v1811 = vpop.f32.mrb[0].mxu0
    %v1812 = vadd.f32 0.0, %v1811
    %v1813 = vpop.f32.mrb[0].mxu0
    %1814 = vmatprep.mubr.bf16.mxu0 0
    %1815 = vmatmul.mubr.bf16.gmra.mrb[0].mxu0 %v1761
    %v1816 = vpop.f32.mrb[0].mxu0
    %v1817 = vadd.f32 0.0, %v1816
    %v1818 = vpop.f32.mrb[0].mxu0
    %v1819 = vpop.f32.mrb[0].mxu0
    %v1820 = vadd.f32 0.0, %v1819
    %v1821 = vpop.f32.mrb[0].mxu0
    %1822 = vmatprep.mubr.bf16.mxu0 0
    %1823 = vmatmul.mubr.bf16.gmra.mrb[0].mxu0 %v1764
    %v1824 = vpop.f32.mrb[0].mxu0
    %v1825 = vadd.f32 0.0, %v1824
    %v1826 = vpop.f32.mrb[0].mxu0
    %v1827 = vpop.f32.mrb[0].mxu0
    %v1828 = vadd.f32 0.0, %v1827
    %v1829 = vpop.f32.mrb[0].mxu0
    %1830 = vdwg.mxu0
    %v1831 = vadd.f32 %v1701, %v1801
    %v1832 = vadd.f32 %v1702, %v1804
    %v1833 = vadd.f32 %v1703, %v1809
    %v1834 = vadd.f32 %v1704, %v1812
    %v1835 = vadd.f32 %v1705, %v1817
    %v1836 = vadd.f32 %v1706, %v1820
    %v1837 = vadd.f32 %v1707, %v1825
    %v1838 = vadd.f32 %v1708, %v1828
    %v1839 = vld [vmem:[#allocation4 + $0x4] sm:$0xff]
    %v1840 = vld [vmem:[#allocation4 + $0xc] sm:$0xff]
    %v1841 = vld [vmem:[#allocation4 + $0x14] sm:$0xff]
    %v1842 = vld [vmem:[#allocation4 + $0x1c] sm:$0xff]
    %v1843 = vld [vmem:[#allocation4 + $0x2c] sm:$0xff]
    %v1844 = vld [vmem:[#allocation4 + $0x34] sm:$0xff]
    %v1845 = vld [vmem:[#allocation4 + $0x3c] sm:$0xff]
    %v1846 = vld [vmem:[#allocation4 + $0x44] sm:$0xff]
    %v1847 = vpack.c.bf16 %v1840, %v1839
    %v1848 = vpack.c.bf16 %v1842, %v1841
    %v1849 = vpack.c.bf16 %v1844, %v1843
    %v1850 = vpack.c.bf16 %v1846, %v1845
    %s1851 = scalar_lea.vmem [#allocation13], 128
    %v1852 = vld [vmem:[%s1851] sm:$0xf]
    %v1853 = vld [vmem:[%s1851 + $0x4] sm:$0xf]
    %v1854 = vld [vmem:[%s1851 + $0x8] sm:$0xf]
    %v1855 = vld [vmem:[%s1851 + $0xc] sm:$0xf]
    %v1856 = vld [vmem:[%s1851 + $0x10] sm:$0xf]
    %v1857 = vld [vmem:[%s1851 + $0x14] sm:$0xf]
    %v1858 = vld [vmem:[%s1851 + $0x18] sm:$0xf]
    %v1859 = vld [vmem:[%s1851 + $0x1c] sm:$0xf]
    %v1868 = vunpack.c.l.b16 %v1852
    %v1869 = vunpack.c.l.b16 %v1853
    %v1870 = vunpack.c.l.b16 %v1854
    %v1871 = vunpack.c.l.b16 %v1855
    %v1872 = vunpack.c.l.b16 %v1856
    %v1873 = vunpack.c.l.b16 %v1857
    %v1874 = vunpack.c.l.b16 %v1858
    %v1875 = vunpack.c.l.b16 %v1859
    %v1876 = vpack.c.b16 %v1869, %v1868
    %v1877 = vpack.c.b16 %v1871, %v1870
    %v1878 = vpack.c.b16 %v1873, %v1872
    %v1879 = vpack.c.b16 %v1875, %v1874
    %v1885 = vsel %vm1316, %v1847, 0
    %v1888 = vsel %vm1316, %v1848, 0
    %v1891 = vsel %vm1316, %v1849, 0
    %v1894 = vsel %vm1316, %v1850, 0
    %1896 = vmatprep.subr.bf16.mxu0 0
    %1897 = vmatpush1.bf16.msra.mxu0 %v1876
    %1898 = vmatprep.subr.bf16.mxu0 0
    %1899 = vmatpush1.bf16.msra.mxu0 %v1877
    %1900 = vmatprep.subr.bf16.mxu0 0
    %1901 = vmatpush1.bf16.msra.mxu0 %v1878
    %1902 = vmatprep.subr.bf16.mxu0 0
    %1903 = vmatpush1.bf16.msra.mxu0 %v1879
    %1904 = vmatprep.subr.bf16.mxu0 0
    %1905 = vmatpush1.bf16.msra.mxu0 0
    %1906 = vmatprep.subr.bf16.mxu0 0
    %1907 = vmatpush1.bf16.msra.mxu0 0
    %1908 = vmatprep.subr.bf16.mxu0 0
    %1909 = vmatpush1.bf16.msra.mxu0 0
    %1910 = vmatprep.subr.bf16.mxu0 0
    %1911 = vmatpush1.bf16.msra.mxu0 0
    %1912 = vmatprep.subr.bf16.mxu0 0
    %1913 = vmatpush1.bf16.msra.mxu0 0
    %1914 = vmatprep.subr.bf16.mxu0 0
    %1915 = vmatpush1.bf16.msra.mxu0 0
    %1916 = vmatprep.subr.bf16.mxu0 0
    %1917 = vmatpush1.bf16.msra.mxu0 0
    %1918 = vmatprep.subr.bf16.mxu0 0
    %1919 = vmatpush1.bf16.msra.mxu0 0
    %1920 = vmatprep.subr.bf16.mxu0 0
    %1921 = vmatpush1.bf16.msra.mxu0 0
    %1922 = vmatprep.subr.bf16.mxu0 0
    %1923 = vmatpush1.bf16.msra.mxu0 0
    %1924 = vmatprep.subr.bf16.mxu0 0
    %1925 = vmatpush1.bf16.msra.mxu0 0
    %1926 = vmatprep.subr.bf16.mxu0 0
    %1927 = vmatpush1.bf16.msra.mxu0 0
    %1928 = vmatprep.mubr.bf16.mxu0 0
    %1929 = vmatmul.mubr.bf16.gmra.mrb[0].mxu0 %v1885
    %v1930 = vpop.f32.mrb[0].mxu0
    %v1931 = vadd.f32 0.0, %v1930
    %v1932 = vpop.f32.mrb[0].mxu0
    %v1933 = vpop.f32.mrb[0].mxu0
    %v1934 = vadd.f32 0.0, %v1933
    %v1935 = vpop.f32.mrb[0].mxu0
    %1936 = vmatprep.mubr.bf16.mxu0 0
    %1937 = vmatmul.mubr.bf16.gmra.mrb[0].mxu0 %v1888
    %v1938 = vpop.f32.mrb[0].mxu0
    %v1939 = vadd.f32 0.0, %v1938
    %v1940 = vpop.f32.mrb[0].mxu0
    %v1941 = vpop.f32.mrb[0].mxu0
    %v1942 = vadd.f32 0.0, %v1941
    %v1943 = vpop.f32.mrb[0].mxu0
    %1944 = vmatprep.mubr.bf16.mxu0 0
    %1945 = vmatmul.mubr.bf16.gmra.mrb[0].mxu0 %v1891
    %v1946 = vpop.f32.mrb[0].mxu0
    %v1947 = vadd.f32 0.0, %v1946
    %v1948 = vpop.f32.mrb[0].mxu0
    %v1949 = vpop.f32.mrb[0].mxu0
    %v1950 = vadd.f32 0.0, %v1949
    %v1951 = vpop.f32.mrb[0].mxu0
    %1952 = vmatprep.mubr.bf16.mxu0 0
    %1953 = vmatmul.mubr.bf16.gmra.mrb[0].mxu0 %v1894
    %v1954 = vpop.f32.mrb[0].mxu0
    %v1955 = vadd.f32 0.0, %v1954
    %v1956 = vpop.f32.mrb[0].mxu0
    %v1957 = vpop.f32.mrb[0].mxu0
    %v1958 = vadd.f32 0.0, %v1957
    %v1959 = vpop.f32.mrb[0].mxu0
    %1960 = vdwg.mxu0
    %v1961 = vadd.f32 %v1831, %v1931
    %v1962 = vadd.f32 %v1832, %v1934
    %v1963 = vadd.f32 %v1833, %v1939
    %v1964 = vadd.f32 %v1834, %v1942
    %v1965 = vadd.f32 %v1835, %v1947
    %v1966 = vadd.f32 %v1836, %v1950
    %v1967 = vadd.f32 %v1837, %v1955
    %v1968 = vadd.f32 %v1838, %v1958
    %v1969 = vld [vmem:[#allocation15] sm:$0x1]
    %v1971 = vlaneseq
    %v1972 = vshrl.u32 %v1971, 7
    %v1973 = vsub.s32 0, %v1972
    %v1974 = vrot.slane %v1969, %v1973
    %v1976 = vadd.f32 %v1961, %v1974
    %v1977 = vadd.f32 %v1962, %v1974
    %v1978 = vadd.f32 %v1963, %v1974
    %v1979 = vadd.f32 %v1964, %v1974
    %v1980 = vadd.f32 %v1965, %v1974
    %v1981 = vadd.f32 %v1966, %v1974
    %v1982 = vadd.f32 %v1967, %v1974
    %v1983 = vadd.f32 %v1968, %v1974
    %v1984 = vmax.f32 %v1976, 0.0
    %v1985 = vmax.f32 %v1977, 0.0
    %v1986 = vmax.f32 %v1978, 0.0
    %v1987 = vmax.f32 %v1979, 0.0
    %v1988 = vmax.f32 %v1980, 0.0
    %v1989 = vmax.f32 %v1981, 0.0
    %v1990 = vmax.f32 %v1982, 0.0
    %v1991 = vmax.f32 %v1983, 0.0
    %1992 = vst [vmem:[#allocation22] sm:$0xff] %v1984
    %1993 = vst [vmem:[#allocation22 + $0x8] sm:$0xff] %v1985
    %1994 = vst [vmem:[#allocation22 + $0x10] sm:$0xff] %v1986
    %1995 = vst [vmem:[#allocation22 + $0x18] sm:$0xff] %v1987
    %1996 = vst [vmem:[#allocation22 + $0x20] sm:$0xff] %v1988
    %1997 = vst [vmem:[#allocation22 + $0x28] sm:$0xff] %v1989
    %1998 = vst [vmem:[#allocation22 + $0x30] sm:$0xff] %v1990
    %1999 = vst [vmem:[#allocation22 + $0x38] sm:$0xff] %v1991
    %s2000 = sld [smem:[#allocation6]]
    %p2001 = scmp.gt.s32.totalorder %s2000, 0
    %s2002 = scalar_select %p2001, %s2000, 0
    %p2003 = scmp.lt.s32.totalorder %s2002, 24
    %s2004 = scalar_select %p2003, %s2002, 24
    %v2005 = vpack.c.bf16 %v1985, %v1984
    %v2006 = vpack.c.bf16 %v1988, %v1986
    %v2007 = vpack.c.bf16 %v1990, %v1989
    %v2008 = vld [vmem:[#allocation16] sm:$0xff]
    %v2009 = vld [vmem:[#allocation16 + $0x8] sm:$0xff]
    %v2010 = vld [vmem:[#allocation16 + $0x10] sm:$0xff]
    %v2011 = vld [vmem:[#allocation16 + $0x18] sm:$0xff]
    %v2012 = vld [vmem:[#allocation16 + $0x20] sm:$0xff]
    %v2013 = vld [vmem:[#allocation16 + $0x28] sm:$0xff]
    %v2014 = vld [vmem:[#allocation16 + $0x30] sm:$0xff]
    %v2015 = vld [vmem:[#allocation16 + $0x38] sm:$0xff]
    %v2016 = vld [vmem:[#allocation16 + $0x40] sm:$0xff]
    %v2017 = vld [vmem:[#allocation16 + $0x48] sm:$0xff]
    %v2018 = vld [vmem:[#allocation16 + $0x50] sm:$0xff]
    %v2019 = vld [vmem:[#allocation16 + $0x58] sm:$0xff]
    %v2020 = vld [vmem:[#allocation16 + $0x60] sm:$0xff]
    %v2021 = vld [vmem:[#allocation16 + $0x68] sm:$0xff]
    %v2022 = vld [vmem:[#allocation16 + $0x70] sm:$0xff]
    %v2023 = vld [vmem:[#allocation16 + $0x78] sm:$0xff]
    %v2024 = vld [vmem:[#allocation16 + $0x80] sm:$0xff]
    %v2025 = vld [vmem:[#allocation16 + $0x88] sm:$0xff]
    %v2026 = vld [vmem:[#allocation16 + $0x90] sm:$0xff]
    %v2027 = vld [vmem:[#allocation16 + $0x98] sm:$0xff]
    %v2028 = vld [vmem:[#allocation16 + $0xa0] sm:$0xff]
    %v2029 = vld [vmem:[#allocation16 + $0xa8] sm:$0xff]
    %v2030 = vld [vmem:[#allocation16 + $0xb0] sm:$0xff]
    %v2031 = vld [vmem:[#allocation16 + $0xb8] sm:$0xff]
    %v2032 = vld [vmem:[#allocation16 + $0xc0] sm:$0xff]
    %v2033 = vld [vmem:[#allocation16 + $0xc8] sm:$0xff]
    %v2034 = vld [vmem:[#allocation16 + $0xd0] sm:$0xff]
    %v2035 = vld [vmem:[#allocation16 + $0xd8] sm:$0xff]
    %v2036 = vld [vmem:[#allocation16 + $0xe0] sm:$0xff]
    %v2037 = vld [vmem:[#allocation16 + $0xe8] sm:$0xff]
    %v2038 = vld [vmem:[#allocation16 + $0xf0] sm:$0xff]
    %v2039 = vld [vmem:[#allocation16 + $0xf8] sm:$0xff]
    %v2040 = vld [vmem:[#allocation16 + $0x100] sm:$0xff]
    %v2041 = vld [vmem:[#allocation16 + $0x108] sm:$0xff]
    %v2042 = vld [vmem:[#allocation16 + $0x110] sm:$0xff]
    %v2043 = vld [vmem:[#allocation16 + $0x118] sm:$0xff]
    %v2044 = vld [vmem:[#allocation16 + $0x120] sm:$0xff]
    %v2045 = vld [vmem:[#allocation16 + $0x128] sm:$0xff]
    %v2046 = vld [vmem:[#allocation16 + $0x130] sm:$0xff]
    %v2047 = vld [vmem:[#allocation16 + $0x138] sm:$0xff]
    %v2048 = vld [vmem:[#allocation16 + $0x140] sm:$0xff]
    %v2049 = vld [vmem:[#allocation16 + $0x148] sm:$0xff]
    %v2050 = vld [vmem:[#allocation16 + $0x150] sm:$0xff]
    %v2051 = vld [vmem:[#allocation16 + $0x158] sm:$0xff]
    %v2052 = vld [vmem:[#allocation16 + $0x160] sm:$0xff]
    %v2053 = vld [vmem:[#allocation16 + $0x168] sm:$0xff]
    %v2054 = vld [vmem:[#allocation16 + $0x170] sm:$0xff]
    %v2055 = vld [vmem:[#allocation16 + $0x178] sm:$0xff]
    %v2056 = vld [vmem:[%s10] sm:$0x3f]
    %v2058 = vlaneseq
    %v2059 = vshrl.u32 %v2058, 7
    %v2060 = vsub.s32 0, %v2059
    %v2061 = vrot.slane %v2056, %v2060
    %v2062 = vlaneseq
    %v2063 = vshrl.u32 %v2062, 7
    %v2064 = vsub.s32 1, %v2063
    %v2065 = vrot.slane %v2056, %v2064
    %v2066 = vlaneseq
    %v2067 = vshrl.u32 %v2066, 7
    %v2068 = vsub.s32 2, %v2067
    %v2069 = vrot.slane %v2056, %v2068
    %v2070 = vlaneseq
    %v2071 = vshrl.u32 %v2070, 7
    %v2072 = vsub.s32 3, %v2071
    %v2073 = vrot.slane %v2056, %v2072
    %v2074 = vlaneseq
    %v2075 = vshrl.u32 %v2074, 7
    %v2076 = vsub.s32 4, %v2075
    %v2077 = vrot.slane %v2056, %v2076
    %v2078 = vlaneseq
    %v2079 = vshrl.u32 %v2078, 7
    %v2080 = vsub.s32 5, %v2079
    %v2081 = vrot.slane %v2056, %v2080
    %v2136 = vunpack.c.l.b16 %v2008
    %v2137 = vunpack.c.h.b16 %v2008
    %v2138 = vunpack.c.l.b16 %v2009
    %v2139 = vunpack.c.h.b16 %v2009
    %v2140 = vunpack.c.l.b16 %v2010
    %v2141 = vunpack.c.h.b16 %v2010
    %v2142 = vunpack.c.l.b16 %v2011
    %v2143 = vunpack.c.h.b16 %v2011
    %v2144 = vunpack.c.l.b16 %v2012
    %v2145 = vunpack.c.h.b16 %v2012
    %v2146 = vunpack.c.l.b16 %v2013
    %v2147 = vunpack.c.h.b16 %v2013
    %v2148 = vunpack.c.l.b16 %v2014
    %v2149 = vunpack.c.h.b16 %v2014
    %v2150 = vunpack.c.l.b16 %v2015
    %v2151 = vunpack.c.h.b16 %v2015
    %v2152 = vunpack.c.l.b16 %v2016
    %v2153 = vunpack.c.h.b16 %v2016
    %v2154 = vunpack.c.l.b16 %v2017
    %v2155 = vunpack.c.h.b16 %v2017
    %v2156 = vunpack.c.l.b16 %v2018
    %v2157 = vunpack.c.h.b16 %v2018
    %v2158 = vunpack.c.l.b16 %v2019
    %v2159 = vunpack.c.h.b16 %v2019
    %v2160 = vunpack.c.l.b16 %v2020
    %v2161 = vunpack.c.h.b16 %v2020
    %v2162 = vunpack.c.l.b16 %v2021
    %v2163 = vunpack.c.h.b16 %v2021
    %v2164 = vunpack.c.l.b16 %v2022
    %v2165 = vunpack.c.h.b16 %v2022
    %v2166 = vunpack.c.l.b16 %v2023
    %v2167 = vunpack.c.h.b16 %v2023
    %v2168 = vunpack.c.l.b16 %v2024
    %v2169 = vunpack.c.h.b16 %v2024
    %v2170 = vunpack.c.l.b16 %v2025
    %v2171 = vunpack.c.h.b16 %v2025
    %v2172 = vunpack.c.l.b16 %v2026
    %v2173 = vunpack.c.h.b16 %v2026
    %v2174 = vunpack.c.l.b16 %v2027
    %v2175 = vunpack.c.h.b16 %v2027
    %v2176 = vunpack.c.l.b16 %v2028
    %v2177 = vunpack.c.h.b16 %v2028
    %v2178 = vunpack.c.l.b16 %v2029
    %v2179 = vunpack.c.h.b16 %v2029
    %v2180 = vunpack.c.l.b16 %v2030
    %v2181 = vunpack.c.h.b16 %v2030
    %v2182 = vunpack.c.l.b16 %v2031
    %v2183 = vunpack.c.h.b16 %v2031
    %v2184 = vunpack.c.l.b16 %v2032
    %v2185 = vunpack.c.h.b16 %v2032
    %v2186 = vunpack.c.l.b16 %v2033
    %v2187 = vunpack.c.h.b16 %v2033
    %v2188 = vunpack.c.l.b16 %v2034
    %v2189 = vunpack.c.h.b16 %v2034
    %v2190 = vunpack.c.l.b16 %v2035
    %v2191 = vunpack.c.h.b16 %v2035
    %v2192 = vunpack.c.l.b16 %v2036
    %v2193 = vunpack.c.h.b16 %v2036
    %v2194 = vunpack.c.l.b16 %v2037
    %v2195 = vunpack.c.h.b16 %v2037
    %v2196 = vunpack.c.l.b16 %v2038
    %v2197 = vunpack.c.h.b16 %v2038
    %v2198 = vunpack.c.l.b16 %v2039
    %v2199 = vunpack.c.h.b16 %v2039
    %v2200 = vunpack.c.l.b16 %v2040
    %v2201 = vunpack.c.h.b16 %v2040
    %v2202 = vunpack.c.l.b16 %v2041
    %v2203 = vunpack.c.h.b16 %v2041
    %v2204 = vunpack.c.l.b16 %v2042
    %v2205 = vunpack.c.h.b16 %v2042
    %v2206 = vunpack.c.l.b16 %v2043
    %v2207 = vunpack.c.h.b16 %v2043
    %v2208 = vunpack.c.l.b16 %v2044
    %v2209 = vunpack.c.h.b16 %v2044
    %v2210 = vunpack.c.l.b16 %v2045
    %v2211 = vunpack.c.h.b16 %v2045
    %v2212 = vunpack.c.l.b16 %v2046
    %v2213 = vunpack.c.h.b16 %v2046
    %v2214 = vunpack.c.l.b16 %v2047
    %v2215 = vunpack.c.h.b16 %v2047
    %v2216 = vunpack.c.l.b16 %v2048
    %v2217 = vunpack.c.h.b16 %v2048
    %v2218 = vunpack.c.l.b16 %v2049
    %v2219 = vunpack.c.h.b16 %v2049
    %v2220 = vunpack.c.l.b16 %v2050
    %v2221 = vunpack.c.h.b16 %v2050
    %v2222 = vunpack.c.l.b16 %v2051
    %v2223 = vunpack.c.h.b16 %v2051
    %v2224 = vunpack.c.l.b16 %v2052
    %v2225 = vunpack.c.h.b16 %v2052
    %v2226 = vunpack.c.l.b16 %v2053
    %v2227 = vunpack.c.h.b16 %v2053
    %v2228 = vunpack.c.l.b16 %v2054
    %v2229 = vunpack.c.h.b16 %v2054
    %v2230 = vunpack.c.l.b16 %v2055
    %v2231 = vunpack.c.h.b16 %v2055
    %v2232 = vpack.c.b16 %v2142, %v2136
    %v2233 = vpack.c.b16 %v2143, %v2137
    %v2234 = vpack.c.b16 %v2144, %v2138
    %v2235 = vpack.c.b16 %v2145, %v2139
    %v2236 = vpack.c.b16 %v2146, %v2140
    %v2237 = vpack.c.b16 %v2147, %v2141
    %v2238 = vpack.c.b16 %v2154, %v2148
    %v2239 = vpack.c.b16 %v2155, %v2149
    %v2240 = vpack.c.b16 %v2156, %v2150
    %v2241 = vpack.c.b16 %v2157, %v2151
    %v2242 = vpack.c.b16 %v2158, %v2152
    %v2243 = vpack.c.b16 %v2159, %v2153
    %v2244 = vpack.c.b16 %v2166, %v2160
    %v2245 = vpack.c.b16 %v2167, %v2161
    %v2246 = vpack.c.b16 %v2168, %v2162
    %v2247 = vpack.c.b16 %v2169, %v2163
    %v2248 = vpack.c.b16 %v2170, %v2164
    %v2249 = vpack.c.b16 %v2171, %v2165
    %v2250 = vpack.c.b16 %v2178, %v2172
    %v2251 = vpack.c.b16 %v2179, %v2173
    %v2252 = vpack.c.b16 %v2180, %v2174
    %v2253 = vpack.c.b16 %v2181, %v2175
    %v2254 = vpack.c.b16 %v2182, %v2176
    %v2255 = vpack.c.b16 %v2183, %v2177
    %v2256 = vpack.c.b16 %v2190, %v2184
    %v2257 = vpack.c.b16 %v2191, %v2185
    %v2258 = vpack.c.b16 %v2192, %v2186
    %v2259 = vpack.c.b16 %v2193, %v2187
    %v2260 = vpack.c.b16 %v2194, %v2188
    %v2261 = vpack.c.b16 %v2195, %v2189
    %v2262 = vpack.c.b16 %v2202, %v2196
    %v2263 = vpack.c.b16 %v2203, %v2197
    %v2264 = vpack.c.b16 %v2204, %v2198
    %v2265 = vpack.c.b16 %v2205, %v2199
    %v2266 = vpack.c.b16 %v2206, %v2200
    %v2267 = vpack.c.b16 %v2207, %v2201
    %v2268 = vpack.c.b16 %v2214, %v2208
    %v2269 = vpack.c.b16 %v2215, %v2209
    %v2270 = vpack.c.b16 %v2216, %v2210
    %v2271 = vpack.c.b16 %v2217, %v2211
    %v2272 = vpack.c.b16 %v2218, %v2212
    %v2273 = vpack.c.b16 %v2219, %v2213
    %v2274 = vpack.c.b16 %v2226, %v2220
    %v2275 = vpack.c.b16 %v2227, %v2221
    %v2276 = vpack.c.b16 %v2228, %v2222
    %v2277 = vpack.c.b16 %v2229, %v2223
    %v2278 = vpack.c.b16 %v2230, %v2224
    %v2279 = vpack.c.b16 %v2231, %v2225
    %2328 = vmatprep.subr.bf16.mxu0 %v2233
    %2329 = vmatpush1.bf16.msra.mxu0 %v2232
    %2330 = vmatprep.subr.bf16.mxu0 %v2239
    %2331 = vmatpush1.bf16.msra.mxu0 %v2238
    %2332 = vmatprep.subr.bf16.mxu0 %v2245
    %2333 = vmatpush1.bf16.msra.mxu0 %v2244
    %2334 = vmatprep.subr.bf16.mxu0 %v2251
    %2335 = vmatpush1.bf16.msra.mxu0 %v2250
    %2336 = vmatprep.subr.bf16.mxu0 %v2257
    %2337 = vmatpush1.bf16.msra.mxu0 %v2256
    %2338 = vmatprep.subr.bf16.mxu0 %v2263
    %2339 = vmatpush1.bf16.msra.mxu0 %v2262
    %2340 = vmatprep.subr.bf16.mxu0 %v2269
    %2341 = vmatpush1.bf16.msra.mxu0 %v2268
    %2342 = vmatprep.subr.bf16.mxu0 %v2275
    %2343 = vmatpush1.bf16.msra.mxu0 %v2274
    %2344 = vmatprep.subr.bf16.mxu0 0
    %2345 = vmatpush1.bf16.msra.mxu0 0
    %2346 = vmatprep.subr.bf16.mxu0 0
    %2347 = vmatpush1.bf16.msra.mxu0 0
    %2348 = vmatprep.subr.bf16.mxu0 0
    %2349 = vmatpush1.bf16.msra.mxu0 0
    %2350 = vmatprep.subr.bf16.mxu0 0
    %2351 = vmatpush1.bf16.msra.mxu0 0
    %2352 = vmatprep.subr.bf16.mxu0 0
    %2353 = vmatpush1.bf16.msra.mxu0 0
    %2354 = vmatprep.subr.bf16.mxu0 0
    %2355 = vmatpush1.bf16.msra.mxu0 0
    %2356 = vmatprep.subr.bf16.mxu0 0
    %2357 = vmatpush1.bf16.msra.mxu0 0
    %2358 = vmatprep.subr.bf16.mxu0 0
    %2359 = vmatpush1.bf16.msra.mxu0 0
    %2360 = vmatprep.mubr.bf16.mxu0 0
    %2361 = vmatmul.mubr.bf16.gmra.mrb[0].mxu0 %v2005
    %v2362 = vpop.f32.mrb[0].mxu0
    %v2363 = vadd.f32 %v2061, %v2362
    %v2364 = vpop.f32.mrb[0].mxu0
    %v2365 = vadd.f32 %v2065, %v2364
    %v2366 = vpop.f32.mrb[0].mxu0
    %v2367 = vadd.f32 %v2061, %v2366
    %v2368 = vpop.f32.mrb[0].mxu0
    %v2369 = vadd.f32 %v2065, %v2368
    %2370 = vmatprep.mubr.bf16.mxu0 0
    %2371 = vmatmul.mubr.bf16.gmra.mrb[0].mxu0 %v2006
    %v2372 = vpop.f32.mrb[0].mxu0
    %v2373 = vadd.f32 %v2061, %v2372
    %v2374 = vpop.f32.mrb[0].mxu0
    %v2375 = vadd.f32 %v2065, %v2374
    %v2376 = vpop.f32.mrb[0].mxu0
    %v2377 = vadd.f32 %v2061, %v2376
    %v2378 = vpop.f32.mrb[0].mxu0
    %v2379 = vadd.f32 %v2065, %v2378
    %2380 = vmatprep.mubr.bf16.mxu0 0
    %2381 = vmatmul.mubr.bf16.gmra.mrb[0].mxu0 %v2007
    %v2382 = vpop.f32.mrb[0].mxu0
    %v2383 = vadd.f32 %v2061, %v2382
    %v2384 = vpop.f32.mrb[0].mxu0
    %v2385 = vadd.f32 %v2065, %v2384
    %v2386 = vpop.f32.mrb[0].mxu0
    %v2387 = vadd.f32 %v2061, %v2386
    %v2388 = vpop.f32.mrb[0].mxu0
    %v2389 = vadd.f32 %v2065, %v2388
    %2390 = vdwg.mxu0
    %2391 = vmatprep.subr.bf16.mxu0 %v2235
    %2392 = vmatpush1.bf16.msra.mxu0 %v2234
    %2393 = vmatprep.subr.bf16.mxu0 %v2241
    %2394 = vmatpush1.bf16.msra.mxu0 %v2240
    %2395 = vmatprep.subr.bf16.mxu0 %v2247
    %2396 = vmatpush1.bf16.msra.mxu0 %v2246
    %2397 = vmatprep.subr.bf16.mxu0 %v2253
    %2398 = vmatpush1.bf16.msra.mxu0 %v2252
    %2399 = vmatprep.subr.bf16.mxu0 %v2259
    %2400 = vmatpush1.bf16.msra.mxu0 %v2258
    %2401 = vmatprep.subr.bf16.mxu0 %v2265
    %2402 = vmatpush1.bf16.msra.mxu0 %v2264
    %2403 = vmatprep.subr.bf16.mxu0 %v2271
    %2404 = vmatpush1.bf16.msra.mxu0 %v2270
    %2405 = vmatprep.subr.bf16.mxu0 %v2277
    %2406 = vmatpush1.bf16.msra.mxu0 %v2276
    %2407 = vmatprep.subr.bf16.mxu0 0
    %2408 = vmatpush1.bf16.msra.mxu0 0
    %2409 = vmatprep.subr.bf16.mxu0 0
    %2410 = vmatpush1.bf16.msra.mxu0 0
    %2411 = vmatprep.subr.bf16.mxu0 0
    %2412 = vmatpush1.bf16.msra.mxu0 0
    %2413 = vmatprep.subr.bf16.mxu0 0
    %2414 = vmatpush1.bf16.msra.mxu0 0
    %2415 = vmatprep.subr.bf16.mxu0 0
    %2416 = vmatpush1.bf16.msra.mxu0 0
    %2417 = vmatprep.subr.bf16.mxu0 0
    %2418 = vmatpush1.bf16.msra.mxu0 0
    %2419 = vmatprep.subr.bf16.mxu0 0
    %2420 = vmatpush1.bf16.msra.mxu0 0
    %2421 = vmatprep.subr.bf16.mxu0 0
    %2422 = vmatpush1.bf16.msra.mxu0 0
    %2423 = vmatprep.mubr.bf16.mxu0 0
    %2424 = vmatmul.mubr.bf16.gmra.mrb[0].mxu0 %v2005
    %v2425 = vpop.f32.mrb[0].mxu0
    %v2426 = vadd.f32 %v2069, %v2425
    %v2427 = vpop.f32.mrb[0].mxu0
    %v2428 = vadd.f32 %v2073, %v2427
    %v2429 = vpop.f32.mrb[0].mxu0
    %v2430 = vadd.f32 %v2069, %v2429
    %v2431 = vpop.f32.mrb[0].mxu0
    %v2432 = vadd.f32 %v2073, %v2431
    %2433 = vmatprep.mubr.bf16.mxu0 0
    %2434 = vmatmul.mubr.bf16.gmra.mrb[0].mxu0 %v2006
    %v2435 = vpop.f32.mrb[0].mxu0
    %v2436 = vadd.f32 %v2069, %v2435
    %v2437 = vpop.f32.mrb[0].mxu0
    %v2438 = vadd.f32 %v2073, %v2437
    %v2439 = vpop.f32.mrb[0].mxu0
    %v2440 = vadd.f32 %v2069, %v2439
    %v2441 = vpop.f32.mrb[0].mxu0
    %v2442 = vadd.f32 %v2073, %v2441
    %2443 = vmatprep.mubr.bf16.mxu0 0
    %2444 = vmatmul.mubr.bf16.gmra.mrb[0].mxu0 %v2007
    %v2445 = vpop.f32.mrb[0].mxu0
    %v2446 = vadd.f32 %v2069, %v2445
    %v2447 = vpop.f32.mrb[0].mxu0
    %v2448 = vadd.f32 %v2073, %v2447
    %v2449 = vpop.f32.mrb[0].mxu0
    %v2450 = vadd.f32 %v2069, %v2449
    %v2451 = vpop.f32.mrb[0].mxu0
    %v2452 = vadd.f32 %v2073, %v2451
    %2453 = vdwg.mxu0
    %2454 = vmatprep.subr.bf16.mxu0 %v2237
    %2455 = vmatpush1.bf16.msra.mxu0 %v2236
    %2456 = vmatprep.subr.bf16.mxu0 %v2243
    %2457 = vmatpush1.bf16.msra.mxu0 %v2242
    %2458 = vmatprep.subr.bf16.mxu0 %v2249
    %2459 = vmatpush1.bf16.msra.mxu0 %v2248
    %2460 = vmatprep.subr.bf16.mxu0 %v2255
    %2461 = vmatpush1.bf16.msra.mxu0 %v2254
    %2462 = vmatprep.subr.bf16.mxu0 %v2261
    %2463 = vmatpush1.bf16.msra.mxu0 %v2260
    %2464 = vmatprep.subr.bf16.mxu0 %v2267
    %2465 = vmatpush1.bf16.msra.mxu0 %v2266
    %2466 = vmatprep.subr.bf16.mxu0 %v2273
    %2467 = vmatpush1.bf16.msra.mxu0 %v2272
    %2468 = vmatprep.subr.bf16.mxu0 %v2279
    %2469 = vmatpush1.bf16.msra.mxu0 %v2278
    %2470 = vmatprep.subr.bf16.mxu0 0
    %2471 = vmatpush1.bf16.msra.mxu0 0
    %2472 = vmatprep.subr.bf16.mxu0 0
    %2473 = vmatpush1.bf16.msra.mxu0 0
    %2474 = vmatprep.subr.bf16.mxu0 0
    %2475 = vmatpush1.bf16.msra.mxu0 0
    %2476 = vmatprep.subr.bf16.mxu0 0
    %2477 = vmatpush1.bf16.msra.mxu0 0
    %2478 = vmatprep.subr.bf16.mxu0 0
    %2479 = vmatpush1.bf16.msra.mxu0 0
    %2480 = vmatprep.subr.bf16.mxu0 0
    %2481 = vmatpush1.bf16.msra.mxu0 0
    %2482 = vmatprep.subr.bf16.mxu0 0
    %2483 = vmatpush1.bf16.msra.mxu0 0
    %2484 = vmatprep.subr.bf16.mxu0 0
    %2485 = vmatpush1.bf16.msra.mxu0 0
    %2486 = vmatprep.mubr.bf16.mxu0 0
    %2487 = vmatmul.mubr.bf16.gmra.mrb[0].mxu0 %v2005
    %v2488 = vpop.f32.mrb[0].mxu0
    %v2489 = vadd.f32 %v2077, %v2488
    %v2490 = vpop.f32.mrb[0].mxu0
    %v2491 = vadd.f32 %v2081, %v2490
    %v2492 = vpop.f32.mrb[0].mxu0
    %v2493 = vadd.f32 %v2077, %v2492
    %v2494 = vpop.f32.mrb[0].mxu0
    %v2495 = vadd.f32 %v2081, %v2494
    %2496 = vmatprep.mubr.bf16.mxu0 0
    %2497 = vmatmul.mubr.bf16.gmra.mrb[0].mxu0 %v2006
    %v2498 = vpop.f32.mrb[0].mxu0
    %v2499 = vadd.f32 %v2077, %v2498
    %v2500 = vpop.f32.mrb[0].mxu0
    %v2501 = vadd.f32 %v2081, %v2500
    %v2502 = vpop.f32.mrb[0].mxu0
    %v2503 = vadd.f32 %v2077, %v2502
    %v2504 = vpop.f32.mrb[0].mxu0
    %v2505 = vadd.f32 %v2081, %v2504
    %2506 = vmatprep.mubr.bf16.mxu0 0
    %2507 = vmatmul.mubr.bf16.gmra.mrb[0].mxu0 %v2007
    %v2508 = vpop.f32.mrb[0].mxu0
    %v2509 = vadd.f32 %v2077, %v2508
    %v2510 = vpop.f32.mrb[0].mxu0
    %v2511 = vadd.f32 %v2081, %v2510
    %v2512 = vpop.f32.mrb[0].mxu0
    %v2513 = vadd.f32 %v2077, %v2512
    %v2514 = vpop.f32.mrb[0].mxu0
    %v2515 = vadd.f32 %v2081, %v2514
    %2516 = vdwg.mxu0
    %2517 = vst [vmem:[#allocation5] sm:$0xff] %v2363
    %2518 = vst [vmem:[#allocation5 + $0x8] sm:$0xff] %v2365
    %2519 = vst [vmem:[#allocation5 + $0x10] sm:$0xff] %v2426
    %2520 = vst [vmem:[#allocation5 + $0x18] sm:$0xff] %v2428
    %2521 = vst [vmem:[#allocation5 + $0x20] sm:$0xff] %v2489
    %2522 = vst [vmem:[#allocation5 + $0x28] sm:$0xff] %v2491
    %2523 = vst [vmem:[#allocation5 + $0x30] sm:$0xff] %v2367
    %2524 = vst [vmem:[#allocation5 + $0x38] sm:$0xff] %v2369
    %2525 = vst [vmem:[#allocation5 + $0x40] sm:$0xff] %v2430
    %2526 = vst [vmem:[#allocation5 + $0x48] sm:$0xff] %v2432
    %2527 = vst [vmem:[#allocation5 + $0x50] sm:$0xff] %v2493
    %2528 = vst [vmem:[#allocation5 + $0x58] sm:$0xff] %v2495
    %2529 = vst [vmem:[#allocation5 + $0x60] sm:$0xff] %v2373
    %2530 = vst [vmem:[#allocation5 + $0x68] sm:$0xff] %v2375
    %2531 = vst [vmem:[#allocation5 + $0x70] sm:$0xff] %v2436
    %2532 = vst [vmem:[#allocation5 + $0x78] sm:$0xff] %v2438
    %2533 = vst [vmem:[#allocation5 + $0x80] sm:$0xff] %v2499
    %2534 = vst [vmem:[#allocation5 + $0x88] sm:$0xff] %v2501
    %2535 = vst [vmem:[#allocation5 + $0x90] sm:$0xff] %v2377
    %2536 = vst [vmem:[#allocation5 + $0x98] sm:$0xff] %v2379
    %2537 = vst [vmem:[#allocation5 + $0xa0] sm:$0xff] %v2440
    %2538 = vst [vmem:[#allocation5 + $0xa8] sm:$0xff] %v2442
    %2539 = vst [vmem:[#allocation5 + $0xb0] sm:$0xff] %v2503
    %2540 = vst [vmem:[#allocation5 + $0xb8] sm:$0xff] %v2505
    %2541 = vst [vmem:[#allocation5 + $0xc0] sm:$0xff] %v2383
    %2542 = vst [vmem:[#allocation5 + $0xc8] sm:$0xff] %v2385
    %2543 = vst [vmem:[#allocation5 + $0xd0] sm:$0xff] %v2446
    %2544 = vst [vmem:[#allocation5 + $0xd8] sm:$0xff] %v2448
    %2545 = vst [vmem:[#allocation5 + $0xe0] sm:$0xff] %v2509
    %2546 = vst [vmem:[#allocation5 + $0xe8] sm:$0xff] %v2511
    %2547 = vst [vmem:[#allocation5 + $0xf0] sm:$0xff] %v2387
    %2548 = vst [vmem:[#allocation5 + $0xf8] sm:$0xff] %v2389
    %2549 = vst [vmem:[#allocation5 + $0x100] sm:$0xff] %v2450
    %2550 = vst [vmem:[#allocation5 + $0x108] sm:$0xff] %v2452
    %2551 = vst [vmem:[#allocation5 + $0x110] sm:$0xff] %v2513
    %2552 = vst [vmem:[#allocation5 + $0x118] sm:$0xff] %v2515
    // While loop
    $region102: #{tpu_custom_call.1} parent=1 // loop_pre_header
      _
    $region103: #{tpu_custom_call.1} parent=1 // loop_header
      %s2554 = sphi 0, %s2556
      %p2555 = scmp.ge.s32.totalorder %s2554, %s2004
      %v2559 = vphi 0.0, %v4217
      %v2560 = vphi 0.0, %v4218
      %v2561 = vphi 0.0, %v5032
      %v2562 = vphi 0.0, %v5033
    $region104: #{tpu_custom_call.1} parent=1 // loop_header_branch
      %2558 = sbr.rel (%p2555) target = $region108
    $region105: #{tpu_custom_call.1} parent=1 // loop_body
      %s2563 = sshra.s32 %s2554, 3
      %s2564 = sand.u32 %s2554, 7
      %s2565 = sshra.s32 %s2554, 3
      %s2566 = sand.u32 %s2554, 7
      %s2567 = smul.u32 %s2563, 6
      %s2568 = smul.u32 %s2567, 8
      %s2569 = sadd.s32 %s2568, %s2566
      %s2570 = scalar_lea.vmem [#allocation5], %s2569
      %v2571 = vld [vmem:[%s2570] ss:$8 sm:$0xf]
      %v2572 = vld [vmem:[%s2570] ss:$8 sm:$0x30]
      %v2573 = vor.u32 %v2571, %v2572
      %s2574 = sadd.s32 144, %s2569
      %s2575 = scalar_lea.vmem [#allocation5], %s2574
      %v2576 = vld [vmem:[%s2575] ss:$8 sm:$0xf]
      %v2577 = vld [vmem:[%s2575] ss:$8 sm:$0x30]
      %v2578 = vor.u32 %v2576, %v2577
      %v2581 = vlaneseq
      %v2582 = vshrl.u32 %v2581, 7
      %v2583 = vsub.s32 0, %v2582
      %v2584 = vrot.slane %v2559, %v2583
      %v2585 = vlaneseq
      %v2586 = vshrl.u32 %v2585, 7
      %v2587 = vsub.s32 1, %v2586
      %v2588 = vrot.slane %v2559, %v2587
      %v2589 = vlaneseq
      %v2590 = vshrl.u32 %v2589, 7
      %v2591 = vsub.s32 0, %v2590
      %v2592 = vrot.slane %v2560, %v2591
      %v2593 = vlaneseq
      %v2594 = vshrl.u32 %v2593, 7
      %v2595 = vsub.s32 1, %v2594
      %v2596 = vrot.slane %v2560, %v2595
      %v2601 = vpack.c.bf16 %v2584, %v2584
      %v2602 = vpack.c.bf16 %v2588, %v2588
      %v2603 = vpack.c.bf16 %v2592, %v2592
      %v2604 = vpack.c.bf16 %v2596, %v2596
      %v2605 = vld [vmem:[#allocation18] sm:$0xff]
      %v2606 = vld [vmem:[#allocation18 + $0x8] sm:$0xff]
      %v2607 = vld [vmem:[#allocation18 + $0x10] sm:$0xff]
      %v2608 = vld [vmem:[#allocation18 + $0x18] sm:$0xff]
      %v2609 = vld [vmem:[#allocation18 + $0x20] sm:$0xff]
      %v2610 = vld [vmem:[#allocation18 + $0x28] sm:$0xff]
      %v2611 = vld [vmem:[#allocation18 + $0x30] sm:$0xff]
      %v2612 = vld [vmem:[#allocation18 + $0x38] sm:$0xff]
      %v2613 = vld [vmem:[#allocation18 + $0x40] sm:$0xff]
      %v2614 = vld [vmem:[#allocation18 + $0x48] sm:$0xff]
      %v2615 = vld [vmem:[#allocation18 + $0x50] sm:$0xff]
      %v2616 = vld [vmem:[#allocation18 + $0x58] sm:$0xff]
      %v2617 = vld [vmem:[#allocation18 + $0x60] sm:$0xff]
      %v2618 = vld [vmem:[#allocation18 + $0x68] sm:$0xff]
      %v2619 = vld [vmem:[#allocation18 + $0x70] sm:$0xff]
      %v2620 = vld [vmem:[#allocation18 + $0x78] sm:$0xff]
      %v2621 = vld [vmem:[#allocation18 + $0x80] sm:$0xff]
      %v2622 = vld [vmem:[#allocation18 + $0x88] sm:$0xff]
      %v2623 = vld [vmem:[#allocation18 + $0x90] sm:$0xff]
      %v2624 = vld [vmem:[#allocation18 + $0x98] sm:$0xff]
      %v2625 = vld [vmem:[#allocation18 + $0xa0] sm:$0xff]
      %v2626 = vld [vmem:[#allocation18 + $0xa8] sm:$0xff]
      %v2627 = vld [vmem:[#allocation18 + $0xb0] sm:$0xff]
      %v2628 = vld [vmem:[#allocation18 + $0xb8] sm:$0xff]
      %v2629 = vld [vmem:[#allocation18 + $0xc0] sm:$0xff]
      %v2630 = vld [vmem:[#allocation18 + $0xc8] sm:$0xff]
      %v2631 = vld [vmem:[#allocation18 + $0xd0] sm:$0xff]
      %v2632 = vld [vmem:[#allocation18 + $0xd8] sm:$0xff]
      %v2633 = vld [vmem:[#allocation18 + $0xe0] sm:$0xff]
      %v2634 = vld [vmem:[#allocation18 + $0xe8] sm:$0xff]
      %v2635 = vld [vmem:[#allocation18 + $0xf0] sm:$0xff]
      %v2636 = vld [vmem:[#allocation18 + $0xf8] sm:$0xff]
      %v2637 = vld [vmem:[#allocation18 + $0x100] sm:$0xff]
      %v2638 = vld [vmem:[#allocation18 + $0x108] sm:$0xff]
      %v2639 = vld [vmem:[#allocation18 + $0x110] sm:$0xff]
      %v2640 = vld [vmem:[#allocation18 + $0x118] sm:$0xff]
      %v2641 = vld [vmem:[#allocation18 + $0x120] sm:$0xff]
      %v2642 = vld [vmem:[#allocation18 + $0x128] sm:$0xff]
      %v2643 = vld [vmem:[#allocation18 + $0x130] sm:$0xff]
      %v2644 = vld [vmem:[#allocation18 + $0x138] sm:$0xff]
      %v2645 = vld [vmem:[#allocation18 + $0x140] sm:$0xff]
      %v2646 = vld [vmem:[#allocation18 + $0x148] sm:$0xff]
      %v2647 = vld [vmem:[#allocation18 + $0x150] sm:$0xff]
      %v2648 = vld [vmem:[#allocation18 + $0x158] sm:$0xff]
      %v2649 = vld [vmem:[#allocation18 + $0x160] sm:$0xff]
      %v2650 = vld [vmem:[#allocation18 + $0x168] sm:$0xff]
      %v2651 = vld [vmem:[#allocation18 + $0x170] sm:$0xff]
      %v2652 = vld [vmem:[#allocation18 + $0x178] sm:$0xff]
      %v2653 = vld [vmem:[#allocation18 + $0x180] sm:$0xff]
      %v2654 = vld [vmem:[#allocation18 + $0x188] sm:$0xff]
      %v2655 = vld [vmem:[#allocation18 + $0x190] sm:$0xff]
      %v2656 = vld [vmem:[#allocation18 + $0x198] sm:$0xff]
      %v2657 = vld [vmem:[#allocation18 + $0x1a0] sm:$0xff]
      %v2658 = vld [vmem:[#allocation18 + $0x1a8] sm:$0xff]
      %v2659 = vld [vmem:[#allocation18 + $0x1b0] sm:$0xff]
      %v2660 = vld [vmem:[#allocation18 + $0x1b8] sm:$0xff]
      %v2661 = vld [vmem:[#allocation18 + $0x1c0] sm:$0xff]
      %v2662 = vld [vmem:[#allocation18 + $0x1c8] sm:$0xff]
      %v2663 = vld [vmem:[#allocation18 + $0x1d0] sm:$0xff]
      %v2664 = vld [vmem:[#allocation18 + $0x1d8] sm:$0xff]
      %v2665 = vld [vmem:[#allocation18 + $0x1e0] sm:$0xff]
      %v2666 = vld [vmem:[#allocation18 + $0x1e8] sm:$0xff]
      %v2667 = vld [vmem:[#allocation18 + $0x1f0] sm:$0xff]
      %v2668 = vld [vmem:[#allocation18 + $0x1f8] sm:$0xff]
      %v2669 = vld [vmem:[#allocation18 + $0x200] sm:$0xff]
      %v2670 = vld [vmem:[#allocation18 + $0x208] sm:$0xff]
      %v2671 = vld [vmem:[#allocation18 + $0x210] sm:$0xff]
      %v2672 = vld [vmem:[#allocation18 + $0x218] sm:$0xff]
      %v2673 = vld [vmem:[#allocation18 + $0x220] sm:$0xff]
      %v2674 = vld [vmem:[#allocation18 + $0x228] sm:$0xff]
      %v2675 = vld [vmem:[#allocation18 + $0x230] sm:$0xff]
      %v2676 = vld [vmem:[#allocation18 + $0x238] sm:$0xff]
      %v2677 = vld [vmem:[#allocation18 + $0x240] sm:$0xff]
      %v2678 = vld [vmem:[#allocation18 + $0x248] sm:$0xff]
      %v2679 = vld [vmem:[#allocation18 + $0x250] sm:$0xff]
      %v2680 = vld [vmem:[#allocation18 + $0x258] sm:$0xff]
      %v2681 = vld [vmem:[#allocation18 + $0x260] sm:$0xff]
      %v2682 = vld [vmem:[#allocation18 + $0x268] sm:$0xff]
      %v2683 = vld [vmem:[#allocation18 + $0x270] sm:$0xff]
      %v2684 = vld [vmem:[#allocation18 + $0x278] sm:$0xff]
      %v2685 = vld [vmem:[#allocation18 + $0x280] sm:$0xff]
      %v2686 = vld [vmem:[#allocation18 + $0x288] sm:$0xff]
      %v2687 = vld [vmem:[#allocation18 + $0x290] sm:$0xff]
      %v2688 = vld [vmem:[#allocation18 + $0x298] sm:$0xff]
      %v2689 = vld [vmem:[#allocation18 + $0x2a0] sm:$0xff]
      %v2690 = vld [vmem:[#allocation18 + $0x2a8] sm:$0xff]
      %v2691 = vld [vmem:[#allocation18 + $0x2b0] sm:$0xff]
      %v2692 = vld [vmem:[#allocation18 + $0x2b8] sm:$0xff]
      %v2693 = vld [vmem:[#allocation18 + $0x2c0] sm:$0xff]
      %v2694 = vld [vmem:[#allocation18 + $0x2c8] sm:$0xff]
      %v2695 = vld [vmem:[#allocation18 + $0x2d0] sm:$0xff]
      %v2696 = vld [vmem:[#allocation18 + $0x2d8] sm:$0xff]
      %v2697 = vld [vmem:[#allocation18 + $0x2e0] sm:$0xff]
      %v2698 = vld [vmem:[#allocation18 + $0x2e8] sm:$0xff]
      %v2699 = vld [vmem:[#allocation18 + $0x2f0] sm:$0xff]
      %v2700 = vld [vmem:[#allocation18 + $0x2f8] sm:$0xff]
      %v2701 = vld [vmem:[%s11] sm:$0x3f]
      %v2703 = vlaneseq
      %v2704 = vshrl.u32 %v2703, 7
      %v2705 = vsub.s32 0, %v2704
      %v2706 = vrot.slane %v2701, %v2705
      %v2707 = vlaneseq
      %v2708 = vshrl.u32 %v2707, 7
      %v2709 = vsub.s32 1, %v2708
      %v2710 = vrot.slane %v2701, %v2709
      %v2711 = vlaneseq
      %v2712 = vshrl.u32 %v2711, 7
      %v2713 = vsub.s32 2, %v2712
      %v2714 = vrot.slane %v2701, %v2713
      %v2715 = vlaneseq
      %v2716 = vshrl.u32 %v2715, 7
      %v2717 = vsub.s32 3, %v2716
      %v2718 = vrot.slane %v2701, %v2717
      %v2719 = vlaneseq
      %v2720 = vshrl.u32 %v2719, 7
      %v2721 = vsub.s32 4, %v2720
      %v2722 = vrot.slane %v2701, %v2721
      %v2723 = vlaneseq
      %v2724 = vshrl.u32 %v2723, 7
      %v2725 = vsub.s32 5, %v2724
      %v2726 = vrot.slane %v2701, %v2725
      %v2737 = vunpack.c.l.b16 %v2601
      %v2738 = vunpack.c.l.b16 %v2602
      %v2739 = vunpack.c.l.b16 %v2603
      %v2740 = vunpack.c.l.b16 %v2604
      %v2741 = vrot.slane %v2739, 7
      %vm2742 = vcmask 1041409
      %v2743 = vsel %vm2742, %v2741, %v2737
      %v2744 = vrot.slane %v2740, 7
      %v2745 = vsel %vm2742, %v2744, %v2738
      %v2746 = vpack.c.b16 %v2743, %v2743
      %v2747 = vpack.c.b16 %v2745, %v2745
      %v2846 = vunpack.c.l.b16 %v2605
      %v2847 = vunpack.c.h.b16 %v2605
      %v2848 = vunpack.c.l.b16 %v2606
      %v2849 = vunpack.c.h.b16 %v2606
      %v2850 = vunpack.c.l.b16 %v2607
      %v2851 = vunpack.c.h.b16 %v2607
      %v2852 = vunpack.c.l.b16 %v2608
      %v2853 = vunpack.c.h.b16 %v2608
      %v2854 = vunpack.c.l.b16 %v2609
      %v2855 = vunpack.c.h.b16 %v2609
      %v2856 = vunpack.c.l.b16 %v2610
      %v2857 = vunpack.c.h.b16 %v2610
      %v2858 = vunpack.c.l.b16 %v2611
      %v2859 = vunpack.c.h.b16 %v2611
      %v2860 = vunpack.c.l.b16 %v2612
      %v2861 = vunpack.c.h.b16 %v2612
      %v2862 = vunpack.c.l.b16 %v2613
      %v2863 = vunpack.c.h.b16 %v2613
      %v2864 = vunpack.c.l.b16 %v2614
      %v2865 = vunpack.c.h.b16 %v2614
      %v2866 = vunpack.c.l.b16 %v2615
      %v2867 = vunpack.c.h.b16 %v2615
      %v2868 = vunpack.c.l.b16 %v2616
      %v2869 = vunpack.c.h.b16 %v2616
      %v2870 = vunpack.c.l.b16 %v2617
      %v2871 = vunpack.c.h.b16 %v2617
      %v2872 = vunpack.c.l.b16 %v2618
      %v2873 = vunpack.c.h.b16 %v2618
      %v2874 = vunpack.c.l.b16 %v2619
      %v2875 = vunpack.c.h.b16 %v2619
      %v2876 = vunpack.c.l.b16 %v2620
      %v2877 = vunpack.c.h.b16 %v2620
      %v2878 = vunpack.c.l.b16 %v2621
      %v2879 = vunpack.c.h.b16 %v2621
      %v2880 = vunpack.c.l.b16 %v2622
      %v2881 = vunpack.c.h.b16 %v2622
      %v2882 = vunpack.c.l.b16 %v2623
      %v2883 = vunpack.c.h.b16 %v2623
      %v2884 = vunpack.c.l.b16 %v2624
      %v2885 = vunpack.c.h.b16 %v2624
      %v2886 = vunpack.c.l.b16 %v2625
      %v2887 = vunpack.c.h.b16 %v2625
      %v2888 = vunpack.c.l.b16 %v2626
      %v2889 = vunpack.c.h.b16 %v2626
      %v2890 = vunpack.c.l.b16 %v2627
      %v2891 = vunpack.c.h.b16 %v2627
      %v2892 = vunpack.c.l.b16 %v2628
      %v2893 = vunpack.c.h.b16 %v2628
      %v2894 = vunpack.c.l.b16 %v2629
      %v2895 = vunpack.c.h.b16 %v2629
      %v2896 = vunpack.c.l.b16 %v2630
      %v2897 = vunpack.c.h.b16 %v2630
      %v2898 = vunpack.c.l.b16 %v2631
      %v2899 = vunpack.c.h.b16 %v2631
      %v2900 = vunpack.c.l.b16 %v2632
      %v2901 = vunpack.c.h.b16 %v2632
      %v2902 = vunpack.c.l.b16 %v2633
      %v2903 = vunpack.c.h.b16 %v2633
      %v2904 = vunpack.c.l.b16 %v2634
      %v2905 = vunpack.c.h.b16 %v2634
      %v2906 = vunpack.c.l.b16 %v2635
      %v2907 = vunpack.c.h.b16 %v2635
      %v2908 = vunpack.c.l.b16 %v2636
      %v2909 = vunpack.c.h.b16 %v2636
      %v2910 = vunpack.c.l.b16 %v2637
      %v2911 = vunpack.c.h.b16 %v2637
      %v2912 = vunpack.c.l.b16 %v2638
      %v2913 = vunpack.c.h.b16 %v2638
      %v2914 = vunpack.c.l.b16 %v2639
      %v2915 = vunpack.c.h.b16 %v2639
      %v2916 = vunpack.c.l.b16 %v2640
      %v2917 = vunpack.c.h.b16 %v2640
      %v2918 = vunpack.c.l.b16 %v2641
      %v2919 = vunpack.c.h.b16 %v2641
      %v2920 = vunpack.c.l.b16 %v2642
      %v2921 = vunpack.c.h.b16 %v2642
      %v2922 = vunpack.c.l.b16 %v2643
      %v2923 = vunpack.c.h.b16 %v2643
      %v2924 = vunpack.c.l.b16 %v2644
      %v2925 = vunpack.c.h.b16 %v2644
      %v2926 = vunpack.c.l.b16 %v2645
      %v2927 = vunpack.c.h.b16 %v2645
      %v2928 = vunpack.c.l.b16 %v2646
      %v2929 = vunpack.c.h.b16 %v2646
      %v2930 = vunpack.c.l.b16 %v2647
      %v2931 = vunpack.c.h.b16 %v2647
      %v2932 = vunpack.c.l.b16 %v2648
      %v2933 = vunpack.c.h.b16 %v2648
      %v2934 = vunpack.c.l.b16 %v2649
      %v2935 = vunpack.c.h.b16 %v2649
      %v2936 = vunpack.c.l.b16 %v2650
      %v2937 = vunpack.c.h.b16 %v2650
      %v2938 = vunpack.c.l.b16 %v2651
      %v2939 = vunpack.c.h.b16 %v2651
      %v2940 = vunpack.c.l.b16 %v2652
      %v2941 = vunpack.c.h.b16 %v2652
      %v2942 = vunpack.c.l.b16 %v2653
      %v2943 = vunpack.c.h.b16 %v2653
      %v2944 = vunpack.c.l.b16 %v2654
      %v2945 = vunpack.c.h.b16 %v2654
      %v2946 = vunpack.c.l.b16 %v2655
      %v2947 = vunpack.c.h.b16 %v2655
      %v2948 = vunpack.c.l.b16 %v2656
      %v2949 = vunpack.c.h.b16 %v2656
      %v2950 = vunpack.c.l.b16 %v2657
      %v2951 = vunpack.c.h.b16 %v2657
      %v2952 = vunpack.c.l.b16 %v2658
      %v2953 = vunpack.c.h.b16 %v2658
      %v2954 = vunpack.c.l.b16 %v2659
      %v2955 = vunpack.c.h.b16 %v2659
      %v2956 = vunpack.c.l.b16 %v2660
      %v2957 = vunpack.c.h.b16 %v2660
      %v2958 = vunpack.c.l.b16 %v2661
      %v2959 = vunpack.c.h.b16 %v2661
      %v2960 = vunpack.c.l.b16 %v2662
      %v2961 = vunpack.c.h.b16 %v2662
      %v2962 = vunpack.c.l.b16 %v2663
      %v2963 = vunpack.c.h.b16 %v2663
      %v2964 = vunpack.c.l.b16 %v2664
      %v2965 = vunpack.c.h.b16 %v2664
      %v2966 = vunpack.c.l.b16 %v2665
      %v2967 = vunpack.c.h.b16 %v2665
      %v2968 = vunpack.c.l.b16 %v2666
      %v2969 = vunpack.c.h.b16 %v2666
      %v2970 = vunpack.c.l.b16 %v2667
      %v2971 = vunpack.c.h.b16 %v2667
      %v2972 = vunpack.c.l.b16 %v2668
      %v2973 = vunpack.c.h.b16 %v2668
      %v2974 = vunpack.c.l.b16 %v2669
      %v2975 = vunpack.c.h.b16 %v2669
      %v2976 = vunpack.c.l.b16 %v2670
      %v2977 = vunpack.c.h.b16 %v2670
      %v2978 = vunpack.c.l.b16 %v2671
      %v2979 = vunpack.c.h.b16 %v2671
      %v2980 = vunpack.c.l.b16 %v2672
      %v2981 = vunpack.c.h.b16 %v2672
      %v2982 = vunpack.c.l.b16 %v2673
      %v2983 = vunpack.c.h.b16 %v2673
      %v2984 = vunpack.c.l.b16 %v2674
      %v2985 = vunpack.c.h.b16 %v2674
      %v2986 = vunpack.c.l.b16 %v2675
      %v2987 = vunpack.c.h.b16 %v2675
      %v2988 = vunpack.c.l.b16 %v2676
      %v2989 = vunpack.c.h.b16 %v2676
      %v2990 = vunpack.c.l.b16 %v2677
      %v2991 = vunpack.c.h.b16 %v2677
      %v2992 = vunpack.c.l.b16 %v2678
      %v2993 = vunpack.c.h.b16 %v2678
      %v2994 = vunpack.c.l.b16 %v2679
      %v2995 = vunpack.c.h.b16 %v2679
      %v2996 = vunpack.c.l.b16 %v2680
      %v2997 = vunpack.c.h.b16 %v2680
      %v2998 = vunpack.c.l.b16 %v2681
      %v2999 = vunpack.c.h.b16 %v2681
      %v3000 = vunpack.c.l.b16 %v2682
      %v3001 = vunpack.c.h.b16 %v2682
      %v3002 = vunpack.c.l.b16 %v2683
      %v3003 = vunpack.c.h.b16 %v2683
      %v3004 = vunpack.c.l.b16 %v2684
      %v3005 = vunpack.c.h.b16 %v2684
      %v3006 = vunpack.c.l.b16 %v2685
      %v3007 = vunpack.c.h.b16 %v2685
      %v3008 = vunpack.c.l.b16 %v2686
      %v3009 = vunpack.c.h.b16 %v2686
      %v3010 = vunpack.c.l.b16 %v2687
      %v3011 = vunpack.c.h.b16 %v2687
      %v3012 = vunpack.c.l.b16 %v2688
      %v3013 = vunpack.c.h.b16 %v2688
      %v3014 = vunpack.c.l.b16 %v2689
      %v3015 = vunpack.c.h.b16 %v2689
      %v3016 = vunpack.c.l.b16 %v2690
      %v3017 = vunpack.c.h.b16 %v2690
      %v3018 = vunpack.c.l.b16 %v2691
      %v3019 = vunpack.c.h.b16 %v2691
      %v3020 = vunpack.c.l.b16 %v2692
      %v3021 = vunpack.c.h.b16 %v2692
      %v3022 = vunpack.c.l.b16 %v2693
      %v3023 = vunpack.c.h.b16 %v2693
      %v3024 = vunpack.c.l.b16 %v2694
      %v3025 = vunpack.c.h.b16 %v2694
      %v3026 = vunpack.c.l.b16 %v2695
      %v3027 = vunpack.c.h.b16 %v2695
      %v3028 = vunpack.c.l.b16 %v2696
      %v3029 = vunpack.c.h.b16 %v2696
      %v3030 = vunpack.c.l.b16 %v2697
      %v3031 = vunpack.c.h.b16 %v2697
      %v3032 = vunpack.c.l.b16 %v2698
      %v3033 = vunpack.c.h.b16 %v2698
      %v3034 = vunpack.c.l.b16 %v2699
      %v3035 = vunpack.c.h.b16 %v2699
      %v3036 = vunpack.c.l.b16 %v2700
      %v3037 = vunpack.c.h.b16 %v2700
      %v3038 = vpack.c.b16 %v2852, %v2846
      %v3039 = vpack.c.b16 %v2853, %v2847
      %v3040 = vpack.c.b16 %v2854, %v2848
      %v3041 = vpack.c.b16 %v2855, %v2849
      %v3042 = vpack.c.b16 %v2856, %v2850
      %v3043 = vpack.c.b16 %v2857, %v2851
      %v3044 = vpack.c.b16 %v2864, %v2858
      %v3045 = vpack.c.b16 %v2865, %v2859
      %v3046 = vpack.c.b16 %v2866, %v2860
      %v3047 = vpack.c.b16 %v2867, %v2861
      %v3048 = vpack.c.b16 %v2868, %v2862
      %v3049 = vpack.c.b16 %v2869, %v2863
      %v3050 = vpack.c.b16 %v2876, %v2870
      %v3051 = vpack.c.b16 %v2877, %v2871
      %v3052 = vpack.c.b16 %v2878, %v2872
      %v3053 = vpack.c.b16 %v2879, %v2873
      %v3054 = vpack.c.b16 %v2880, %v2874
      %v3055 = vpack.c.b16 %v2881, %v2875
      %v3056 = vpack.c.b16 %v2888, %v2882
      %v3057 = vpack.c.b16 %v2889, %v2883
      %v3058 = vpack.c.b16 %v2890, %v2884
      %v3059 = vpack.c.b16 %v2891, %v2885
      %v3060 = vpack.c.b16 %v2892, %v2886
      %v3061 = vpack.c.b16 %v2893, %v2887
      %v3062 = vpack.c.b16 %v2900, %v2894
      %v3063 = vpack.c.b16 %v2901, %v2895
      %v3064 = vpack.c.b16 %v2902, %v2896
      %v3065 = vpack.c.b16 %v2903, %v2897
      %v3066 = vpack.c.b16 %v2904, %v2898
      %v3067 = vpack.c.b16 %v2905, %v2899
      %v3068 = vpack.c.b16 %v2912, %v2906
      %v3069 = vpack.c.b16 %v2913, %v2907
      %v3070 = vpack.c.b16 %v2914, %v2908
      %v3071 = vpack.c.b16 %v2915, %v2909
      %v3072 = vpack.c.b16 %v2916, %v2910
      %v3073 = vpack.c.b16 %v2917, %v2911
      %v3074 = vpack.c.b16 %v2924, %v2918
      %v3075 = vpack.c.b16 %v2925, %v2919
      %v3076 = vpack.c.b16 %v2926, %v2920
      %v3077 = vpack.c.b16 %v2927, %v2921
      %v3078 = vpack.c.b16 %v2928, %v2922
      %v3079 = vpack.c.b16 %v2929, %v2923
      %v3080 = vpack.c.b16 %v2936, %v2930
      %v3081 = vpack.c.b16 %v2937, %v2931
      %v3082 = vpack.c.b16 %v2938, %v2932
      %v3083 = vpack.c.b16 %v2939, %v2933
      %v3084 = vpack.c.b16 %v2940, %v2934
      %v3085 = vpack.c.b16 %v2941, %v2935
      %v3086 = vpack.c.b16 %v2948, %v2942
      %v3087 = vpack.c.b16 %v2949, %v2943
      %v3088 = vpack.c.b16 %v2950, %v2944
      %v3089 = vpack.c.b16 %v2951, %v2945
      %v3090 = vpack.c.b16 %v2952, %v2946
      %v3091 = vpack.c.b16 %v2953, %v2947
      %v3092 = vpack.c.b16 %v2960, %v2954
      %v3093 = vpack.c.b16 %v2961, %v2955
      %v3094 = vpack.c.b16 %v2962, %v2956
      %v3095 = vpack.c.b16 %v2963, %v2957
      %v3096 = vpack.c.b16 %v2964, %v2958
      %v3097 = vpack.c.b16 %v2965, %v2959
      %v3098 = vpack.c.b16 %v2972, %v2966
      %v3099 = vpack.c.b16 %v2973, %v2967
      %v3100 = vpack.c.b16 %v2974, %v2968
      %v3101 = vpack.c.b16 %v2975, %v2969
      %v3102 = vpack.c.b16 %v2976, %v2970
      %v3103 = vpack.c.b16 %v2977, %v2971
      %v3104 = vpack.c.b16 %v2984, %v2978
      %v3105 = vpack.c.b16 %v2985, %v2979
      %v3106 = vpack.c.b16 %v2986, %v2980
      %v3107 = vpack.c.b16 %v2987, %v2981
      %v3108 = vpack.c.b16 %v2988, %v2982
      %v3109 = vpack.c.b16 %v2989, %v2983
      %v3110 = vpack.c.b16 %v2996, %v2990
      %v3111 = vpack.c.b16 %v2997, %v2991
      %v3112 = vpack.c.b16 %v2998, %v2992
      %v3113 = vpack.c.b16 %v2999, %v2993
      %v3114 = vpack.c.b16 %v3000, %v2994
      %v3115 = vpack.c.b16 %v3001, %v2995
      %v3116 = vpack.c.b16 %v3008, %v3002
      %v3117 = vpack.c.b16 %v3009, %v3003
      %v3118 = vpack.c.b16 %v3010, %v3004
      %v3119 = vpack.c.b16 %v3011, %v3005
      %v3120 = vpack.c.b16 %v3012, %v3006
      %v3121 = vpack.c.b16 %v3013, %v3007
      %v3122 = vpack.c.b16 %v3020, %v3014
      %v3123 = vpack.c.b16 %v3021, %v3015
      %v3124 = vpack.c.b16 %v3022, %v3016
      %v3125 = vpack.c.b16 %v3023, %v3017
      %v3126 = vpack.c.b16 %v3024, %v3018
      %v3127 = vpack.c.b16 %v3025, %v3019
      %v3128 = vpack.c.b16 %v3032, %v3026
      %v3129 = vpack.c.b16 %v3033, %v3027
      %v3130 = vpack.c.b16 %v3034, %v3028
      %v3131 = vpack.c.b16 %v3035, %v3029
      %v3132 = vpack.c.b16 %v3036, %v3030
      %v3133 = vpack.c.b16 %v3037, %v3031
      %3230 = vmatprep.subr.bf16.mxu0 %v3039
      %3231 = vmatpush1.bf16.msra.mxu0 %v3038
      %3232 = vmatprep.subr.bf16.mxu0 %v3045
      %3233 = vmatpush1.bf16.msra.mxu0 %v3044
      %3234 = vmatprep.subr.bf16.mxu0 %v3051
      %3235 = vmatpush1.bf16.msra.mxu0 %v3050
      %3236 = vmatprep.subr.bf16.mxu0 %v3057
      %3237 = vmatpush1.bf16.msra.mxu0 %v3056
      %3238 = vmatprep.subr.bf16.mxu0 %v3063
      %3239 = vmatpush1.bf16.msra.mxu0 %v3062
      %3240 = vmatprep.subr.bf16.mxu0 %v3069
      %3241 = vmatpush1.bf16.msra.mxu0 %v3068
      %3242 = vmatprep.subr.bf16.mxu0 %v3075
      %3243 = vmatpush1.bf16.msra.mxu0 %v3074
      %3244 = vmatprep.subr.bf16.mxu0 %v3081
      %3245 = vmatpush1.bf16.msra.mxu0 %v3080
      %3246 = vmatprep.subr.bf16.mxu0 %v3087
      %3247 = vmatpush1.bf16.msra.mxu0 %v3086
      %3248 = vmatprep.subr.bf16.mxu0 %v3093
      %3249 = vmatpush1.bf16.msra.mxu0 %v3092
      %3250 = vmatprep.subr.bf16.mxu0 %v3099
      %3251 = vmatpush1.bf16.msra.mxu0 %v3098
      %3252 = vmatprep.subr.bf16.mxu0 %v3105
      %3253 = vmatpush1.bf16.msra.mxu0 %v3104
      %3254 = vmatprep.subr.bf16.mxu0 %v3111
      %3255 = vmatpush1.bf16.msra.mxu0 %v3110
      %3256 = vmatprep.subr.bf16.mxu0 %v3117
      %3257 = vmatpush1.bf16.msra.mxu0 %v3116
      %3258 = vmatprep.subr.bf16.mxu0 %v3123
      %3259 = vmatpush1.bf16.msra.mxu0 %v3122
      %3260 = vmatprep.subr.bf16.mxu0 %v3129
      %3261 = vmatpush1.bf16.msra.mxu0 %v3128
      %3262 = vmatprep.mubr.bf16.mxu0 %v2747
      %3263 = vmatmul.mubr.bf16.gmra.mrb[0].mxu0 %v2746
      %v3264 = vpop.f32.mrb[0].mxu0
      %v3265 = vadd.f32 %v2706, %v3264
      %v3266 = vpop.f32.mrb[0].mxu0
      %v3267 = vadd.f32 %v2710, %v3266
      %v3268 = vpop.f32.mrb[0].mxu0
      %v3269 = vpop.f32.mrb[0].mxu0
      %3270 = vdwg.mxu0
      %3271 = vmatprep.subr.bf16.mxu0 %v3041
      %3272 = vmatpush1.bf16.msra.mxu0 %v3040
      %3273 = vmatprep.subr.bf16.mxu0 %v3047
      %3274 = vmatpush1.bf16.msra.mxu0 %v3046
      %3275 = vmatprep.subr.bf16.mxu0 %v3053
      %3276 = vmatpush1.bf16.msra.mxu0 %v3052
      %3277 = vmatprep.subr.bf16.mxu0 %v3059
      %3278 = vmatpush1.bf16.msra.mxu0 %v3058
      %3279 = vmatprep.subr.bf16.mxu0 %v3065
      %3280 = vmatpush1.bf16.msra.mxu0 %v3064
      %3281 = vmatprep.subr.bf16.mxu0 %v3071
      %3282 = vmatpush1.bf16.msra.mxu0 %v3070
      %3283 = vmatprep.subr.bf16.mxu0 %v3077
      %3284 = vmatpush1.bf16.msra.mxu0 %v3076
      %3285 = vmatprep.subr.bf16.mxu0 %v3083
      %3286 = vmatpush1.bf16.msra.mxu0 %v3082
      %3287 = vmatprep.subr.bf16.mxu0 %v3089
      %3288 = vmatpush1.bf16.msra.mxu0 %v3088
      %3289 = vmatprep.subr.bf16.mxu0 %v3095
      %3290 = vmatpush1.bf16.msra.mxu0 %v3094
      %3291 = vmatprep.subr.bf16.mxu0 %v3101
      %3292 = vmatpush1.bf16.msra.mxu0 %v3100
      %3293 = vmatprep.subr.bf16.mxu0 %v3107
      %3294 = vmatpush1.bf16.msra.mxu0 %v3106
      %3295 = vmatprep.subr.bf16.mxu0 %v3113
      %3296 = vmatpush1.bf16.msra.mxu0 %v3112
      %3297 = vmatprep.subr.bf16.mxu0 %v3119
      %3298 = vmatpush1.bf16.msra.mxu0 %v3118
      %3299 = vmatprep.subr.bf16.mxu0 %v3125
      %3300 = vmatpush1.bf16.msra.mxu0 %v3124
      %3301 = vmatprep.subr.bf16.mxu0 %v3131
      %3302 = vmatpush1.bf16.msra.mxu0 %v3130
      %3303 = vmatprep.mubr.bf16.mxu0 %v2747
      %3304 = vmatmul.mubr.bf16.gmra.mrb[0].mxu0 %v2746
      %v3305 = vpop.f32.mrb[0].mxu0
      %v3306 = vadd.f32 %v2714, %v3305
      %v3307 = vpop.f32.mrb[0].mxu0
      %v3308 = vadd.f32 %v2718, %v3307
      %v3309 = vpop.f32.mrb[0].mxu0
      %v3310 = vpop.f32.mrb[0].mxu0
      %3311 = vdwg.mxu0
      %3312 = vmatprep.subr.bf16.mxu0 %v3043
      %3313 = vmatpush1.bf16.msra.mxu0 %v3042
      %3314 = vmatprep.subr.bf16.mxu0 %v3049
      %3315 = vmatpush1.bf16.msra.mxu0 %v3048
      %3316 = vmatprep.subr.bf16.mxu0 %v3055
      %3317 = vmatpush1.bf16.msra.mxu0 %v3054
      %3318 = vmatprep.subr.bf16.mxu0 %v3061
      %3319 = vmatpush1.bf16.msra.mxu0 %v3060
      %3320 = vmatprep.subr.bf16.mxu0 %v3067
      %3321 = vmatpush1.bf16.msra.mxu0 %v3066
      %3322 = vmatprep.subr.bf16.mxu0 %v3073
      %3323 = vmatpush1.bf16.msra.mxu0 %v3072
      %3324 = vmatprep.subr.bf16.mxu0 %v3079
      %3325 = vmatpush1.bf16.msra.mxu0 %v3078
      %3326 = vmatprep.subr.bf16.mxu0 %v3085
      %3327 = vmatpush1.bf16.msra.mxu0 %v3084
      %3328 = vmatprep.subr.bf16.mxu0 %v3091
      %3329 = vmatpush1.bf16.msra.mxu0 %v3090
      %3330 = vmatprep.subr.bf16.mxu0 %v3097
      %3331 = vmatpush1.bf16.msra.mxu0 %v3096
      %3332 = vmatprep.subr.bf16.mxu0 %v3103
      %3333 = vmatpush1.bf16.msra.mxu0 %v3102
      %3334 = vmatprep.subr.bf16.mxu0 %v3109
      %3335 = vmatpush1.bf16.msra.mxu0 %v3108
      %3336 = vmatprep.subr.bf16.mxu0 %v3115
      %3337 = vmatpush1.bf16.msra.mxu0 %v3114
      %3338 = vmatprep.subr.bf16.mxu0 %v3121
      %3339 = vmatpush1.bf16.msra.mxu0 %v3120
      %3340 = vmatprep.subr.bf16.mxu0 %v3127
      %3341 = vmatpush1.bf16.msra.mxu0 %v3126
      %3342 = vmatprep.subr.bf16.mxu0 %v3133
      %3343 = vmatpush1.bf16.msra.mxu0 %v3132
      %3344 = vmatprep.mubr.bf16.mxu0 %v2747
      %3345 = vmatmul.mubr.bf16.gmra.mrb[0].mxu0 %v2746
      %v3346 = vpop.f32.mrb[0].mxu0
      %v3347 = vadd.f32 %v2722, %v3346
      %v3348 = vpop.f32.mrb[0].mxu0
      %v3349 = vadd.f32 %v2726, %v3348
      %v3350 = vpop.f32.mrb[0].mxu0
      %v3351 = vpop.f32.mrb[0].mxu0
      %3352 = vdwg.mxu0
      %v3353 = vpack.c.bf16 %v2561, %v2561
      %v3354 = vpack.c.bf16 %v2562, %v2562
      %v3355 = vld [vmem:[#allocation21] sm:$0xff]
      %v3356 = vld [vmem:[#allocation21 + $0x8] sm:$0xff]
      %v3357 = vld [vmem:[#allocation21 + $0x10] sm:$0xff]
      %v3358 = vld [vmem:[#allocation21 + $0x18] sm:$0xff]
      %v3359 = vld [vmem:[#allocation21 + $0x20] sm:$0xff]
      %v3360 = vld [vmem:[#allocation21 + $0x28] sm:$0xff]
      %v3361 = vld [vmem:[#allocation21 + $0x30] sm:$0xff]
      %v3362 = vld [vmem:[#allocation21 + $0x38] sm:$0xff]
      %v3363 = vld [vmem:[#allocation21 + $0x40] sm:$0xff]
      %v3364 = vld [vmem:[#allocation21 + $0x48] sm:$0xff]
      %v3365 = vld [vmem:[#allocation21 + $0x50] sm:$0xff]
      %v3366 = vld [vmem:[#allocation21 + $0x58] sm:$0xff]
      %v3367 = vld [vmem:[#allocation21 + $0x60] sm:$0xff]
      %v3368 = vld [vmem:[#allocation21 + $0x68] sm:$0xff]
      %v3369 = vld [vmem:[#allocation21 + $0x70] sm:$0xff]
      %v3370 = vld [vmem:[#allocation21 + $0x78] sm:$0xff]
      %v3371 = vld [vmem:[#allocation21 + $0x80] sm:$0xff]
      %v3372 = vld [vmem:[#allocation21 + $0x88] sm:$0xff]
      %v3373 = vld [vmem:[#allocation21 + $0x90] sm:$0xff]
      %v3374 = vld [vmem:[#allocation21 + $0x98] sm:$0xff]
      %v3375 = vld [vmem:[#allocation21 + $0xa0] sm:$0xff]
      %v3376 = vld [vmem:[#allocation21 + $0xa8] sm:$0xff]
      %v3377 = vld [vmem:[#allocation21 + $0xb0] sm:$0xff]
      %v3378 = vld [vmem:[#allocation21 + $0xb8] sm:$0xff]
      %v3379 = vld [vmem:[#allocation21 + $0xc0] sm:$0xff]
      %v3380 = vld [vmem:[#allocation21 + $0xc8] sm:$0xff]
      %v3381 = vld [vmem:[#allocation21 + $0xd0] sm:$0xff]
      %v3382 = vld [vmem:[#allocation21 + $0xd8] sm:$0xff]
      %v3383 = vld [vmem:[#allocation21 + $0xe0] sm:$0xff]
      %v3384 = vld [vmem:[#allocation21 + $0xe8] sm:$0xff]
      %v3385 = vld [vmem:[#allocation21 + $0xf0] sm:$0xff]
      %v3386 = vld [vmem:[#allocation21 + $0xf8] sm:$0xff]
      %v3387 = vld [vmem:[#allocation21 + $0x100] sm:$0xff]
      %v3388 = vld [vmem:[#allocation21 + $0x108] sm:$0xff]
      %v3389 = vld [vmem:[#allocation21 + $0x110] sm:$0xff]
      %v3390 = vld [vmem:[#allocation21 + $0x118] sm:$0xff]
      %v3391 = vld [vmem:[#allocation21 + $0x120] sm:$0xff]
      %v3392 = vld [vmem:[#allocation21 + $0x128] sm:$0xff]
      %v3393 = vld [vmem:[#allocation21 + $0x130] sm:$0xff]
      %v3394 = vld [vmem:[#allocation21 + $0x138] sm:$0xff]
      %v3395 = vld [vmem:[#allocation21 + $0x140] sm:$0xff]
      %v3396 = vld [vmem:[#allocation21 + $0x148] sm:$0xff]
      %v3397 = vld [vmem:[#allocation21 + $0x150] sm:$0xff]
      %v3398 = vld [vmem:[#allocation21 + $0x158] sm:$0xff]
      %v3399 = vld [vmem:[#allocation21 + $0x160] sm:$0xff]
      %v3400 = vld [vmem:[#allocation21 + $0x168] sm:$0xff]
      %v3401 = vld [vmem:[#allocation21 + $0x170] sm:$0xff]
      %v3402 = vld [vmem:[#allocation21 + $0x178] sm:$0xff]
      %v3403 = vld [vmem:[#allocation21 + $0x180] sm:$0xff]
      %v3404 = vld [vmem:[#allocation21 + $0x188] sm:$0xff]
      %v3405 = vld [vmem:[#allocation21 + $0x190] sm:$0xff]
      %v3406 = vld [vmem:[#allocation21 + $0x198] sm:$0xff]
      %v3407 = vld [vmem:[#allocation21 + $0x1a0] sm:$0xff]
      %v3408 = vld [vmem:[#allocation21 + $0x1a8] sm:$0xff]
      %v3409 = vld [vmem:[#allocation21 + $0x1b0] sm:$0xff]
      %v3410 = vld [vmem:[#allocation21 + $0x1b8] sm:$0xff]
      %v3411 = vld [vmem:[#allocation21 + $0x1c0] sm:$0xff]
      %v3412 = vld [vmem:[#allocation21 + $0x1c8] sm:$0xff]
      %v3413 = vld [vmem:[#allocation21 + $0x1d0] sm:$0xff]
      %v3414 = vld [vmem:[#allocation21 + $0x1d8] sm:$0xff]
      %v3415 = vld [vmem:[#allocation21 + $0x1e0] sm:$0xff]
      %v3416 = vld [vmem:[#allocation21 + $0x1e8] sm:$0xff]
      %v3417 = vld [vmem:[#allocation21 + $0x1f0] sm:$0xff]
      %v3418 = vld [vmem:[#allocation21 + $0x1f8] sm:$0xff]
      %v3419 = vld [vmem:[#allocation21 + $0x200] sm:$0xff]
      %v3420 = vld [vmem:[#allocation21 + $0x208] sm:$0xff]
      %v3421 = vld [vmem:[#allocation21 + $0x210] sm:$0xff]
      %v3422 = vld [vmem:[#allocation21 + $0x218] sm:$0xff]
      %v3423 = vld [vmem:[#allocation21 + $0x220] sm:$0xff]
      %v3424 = vld [vmem:[#allocation21 + $0x228] sm:$0xff]
      %v3425 = vld [vmem:[#allocation21 + $0x230] sm:$0xff]
      %v3426 = vld [vmem:[#allocation21 + $0x238] sm:$0xff]
      %v3427 = vld [vmem:[#allocation21 + $0x240] sm:$0xff]
      %v3428 = vld [vmem:[#allocation21 + $0x248] sm:$0xff]
      %v3429 = vld [vmem:[#allocation21 + $0x250] sm:$0xff]
      %v3430 = vld [vmem:[#allocation21 + $0x258] sm:$0xff]
      %v3431 = vld [vmem:[#allocation21 + $0x260] sm:$0xff]
      %v3432 = vld [vmem:[#allocation21 + $0x268] sm:$0xff]
      %v3433 = vld [vmem:[#allocation21 + $0x270] sm:$0xff]
      %v3434 = vld [vmem:[#allocation21 + $0x278] sm:$0xff]
      %v3435 = vld [vmem:[#allocation21 + $0x280] sm:$0xff]
      %v3436 = vld [vmem:[#allocation21 + $0x288] sm:$0xff]
      %v3437 = vld [vmem:[#allocation21 + $0x290] sm:$0xff]
      %v3438 = vld [vmem:[#allocation21 + $0x298] sm:$0xff]
      %v3439 = vld [vmem:[#allocation21 + $0x2a0] sm:$0xff]
      %v3440 = vld [vmem:[#allocation21 + $0x2a8] sm:$0xff]
      %v3441 = vld [vmem:[#allocation21 + $0x2b0] sm:$0xff]
      %v3442 = vld [vmem:[#allocation21 + $0x2b8] sm:$0xff]
      %v3443 = vld [vmem:[#allocation21 + $0x2c0] sm:$0xff]
      %v3444 = vld [vmem:[#allocation21 + $0x2c8] sm:$0xff]
      %v3445 = vld [vmem:[#allocation21 + $0x2d0] sm:$0xff]
      %v3446 = vld [vmem:[#allocation21 + $0x2d8] sm:$0xff]
      %v3447 = vld [vmem:[#allocation21 + $0x2e0] sm:$0xff]
      %v3448 = vld [vmem:[#allocation21 + $0x2e8] sm:$0xff]
      %v3449 = vld [vmem:[#allocation21 + $0x2f0] sm:$0xff]
      %v3450 = vld [vmem:[#allocation21 + $0x2f8] sm:$0xff]
      %v3451 = vld [vmem:[%s15] sm:$0x3f]
      %v3453 = vlaneseq
      %v3454 = vshrl.u32 %v3453, 7
      %v3455 = vsub.s32 0, %v3454
      %v3456 = vrot.slane %v3451, %v3455
      %v3457 = vlaneseq
      %v3458 = vshrl.u32 %v3457, 7
      %v3459 = vsub.s32 1, %v3458
      %v3460 = vrot.slane %v3451, %v3459
      %v3461 = vlaneseq
      %v3462 = vshrl.u32 %v3461, 7
      %v3463 = vsub.s32 2, %v3462
      %v3464 = vrot.slane %v3451, %v3463
      %v3465 = vlaneseq
      %v3466 = vshrl.u32 %v3465, 7
      %v3467 = vsub.s32 3, %v3466
      %v3468 = vrot.slane %v3451, %v3467
      %v3469 = vlaneseq
      %v3470 = vshrl.u32 %v3469, 7
      %v3471 = vsub.s32 4, %v3470
      %v3472 = vrot.slane %v3451, %v3471
      %v3473 = vlaneseq
      %v3474 = vshrl.u32 %v3473, 7
      %v3475 = vsub.s32 5, %v3474
      %v3476 = vrot.slane %v3451, %v3475
      %v3579 = vunpack.c.l.b16 %v3355
      %v3580 = vunpack.c.h.b16 %v3355
      %v3581 = vunpack.c.l.b16 %v3356
      %v3582 = vunpack.c.h.b16 %v3356
      %v3583 = vunpack.c.l.b16 %v3357
      %v3584 = vunpack.c.h.b16 %v3357
      %v3585 = vunpack.c.l.b16 %v3358
      %v3586 = vunpack.c.h.b16 %v3358
      %v3587 = vunpack.c.l.b16 %v3359
      %v3588 = vunpack.c.h.b16 %v3359
      %v3589 = vunpack.c.l.b16 %v3360
      %v3590 = vunpack.c.h.b16 %v3360
      %v3591 = vunpack.c.l.b16 %v3361
      %v3592 = vunpack.c.h.b16 %v3361
      %v3593 = vunpack.c.l.b16 %v3362
      %v3594 = vunpack.c.h.b16 %v3362
      %v3595 = vunpack.c.l.b16 %v3363
      %v3596 = vunpack.c.h.b16 %v3363
      %v3597 = vunpack.c.l.b16 %v3364
      %v3598 = vunpack.c.h.b16 %v3364
      %v3599 = vunpack.c.l.b16 %v3365
      %v3600 = vunpack.c.h.b16 %v3365
      %v3601 = vunpack.c.l.b16 %v3366
      %v3602 = vunpack.c.h.b16 %v3366
      %v3603 = vunpack.c.l.b16 %v3367
      %v3604 = vunpack.c.h.b16 %v3367
      %v3605 = vunpack.c.l.b16 %v3368
      %v3606 = vunpack.c.h.b16 %v3368
      %v3607 = vunpack.c.l.b16 %v3369
      %v3608 = vunpack.c.h.b16 %v3369
      %v3609 = vunpack.c.l.b16 %v3370
      %v3610 = vunpack.c.h.b16 %v3370
      %v3611 = vunpack.c.l.b16 %v3371
      %v3612 = vunpack.c.h.b16 %v3371
      %v3613 = vunpack.c.l.b16 %v3372
      %v3614 = vunpack.c.h.b16 %v3372
      %v3615 = vunpack.c.l.b16 %v3373
      %v3616 = vunpack.c.h.b16 %v3373
      %v3617 = vunpack.c.l.b16 %v3374
      %v3618 = vunpack.c.h.b16 %v3374
      %v3619 = vunpack.c.l.b16 %v3375
      %v3620 = vunpack.c.h.b16 %v3375
      %v3621 = vunpack.c.l.b16 %v3376
      %v3622 = vunpack.c.h.b16 %v3376
      %v3623 = vunpack.c.l.b16 %v3377
      %v3624 = vunpack.c.h.b16 %v3377
      %v3625 = vunpack.c.l.b16 %v3378
      %v3626 = vunpack.c.h.b16 %v3378
      %v3627 = vunpack.c.l.b16 %v3379
      %v3628 = vunpack.c.h.b16 %v3379
      %v3629 = vunpack.c.l.b16 %v3380
      %v3630 = vunpack.c.h.b16 %v3380
      %v3631 = vunpack.c.l.b16 %v3381
      %v3632 = vunpack.c.h.b16 %v3381
      %v3633 = vunpack.c.l.b16 %v3382
      %v3634 = vunpack.c.h.b16 %v3382
      %v3635 = vunpack.c.l.b16 %v3383
      %v3636 = vunpack.c.h.b16 %v3383
      %v3637 = vunpack.c.l.b16 %v3384
      %v3638 = vunpack.c.h.b16 %v3384
      %v3639 = vunpack.c.l.b16 %v3385
      %v3640 = vunpack.c.h.b16 %v3385
      %v3641 = vunpack.c.l.b16 %v3386
      %v3642 = vunpack.c.h.b16 %v3386
      %v3643 = vunpack.c.l.b16 %v3387
      %v3644 = vunpack.c.h.b16 %v3387
      %v3645 = vunpack.c.l.b16 %v3388
      %v3646 = vunpack.c.h.b16 %v3388
      %v3647 = vunpack.c.l.b16 %v3389
      %v3648 = vunpack.c.h.b16 %v3389
      %v3649 = vunpack.c.l.b16 %v3390
      %v3650 = vunpack.c.h.b16 %v3390
      %v3651 = vunpack.c.l.b16 %v3391
      %v3652 = vunpack.c.h.b16 %v3391
      %v3653 = vunpack.c.l.b16 %v3392
      %v3654 = vunpack.c.h.b16 %v3392
      %v3655 = vunpack.c.l.b16 %v3393
      %v3656 = vunpack.c.h.b16 %v3393
      %v3657 = vunpack.c.l.b16 %v3394
      %v3658 = vunpack.c.h.b16 %v3394
      %v3659 = vunpack.c.l.b16 %v3395
      %v3660 = vunpack.c.h.b16 %v3395
      %v3661 = vunpack.c.l.b16 %v3396
      %v3662 = vunpack.c.h.b16 %v3396
      %v3663 = vunpack.c.l.b16 %v3397
      %v3664 = vunpack.c.h.b16 %v3397
      %v3665 = vunpack.c.l.b16 %v3398
      %v3666 = vunpack.c.h.b16 %v3398
      %v3667 = vunpack.c.l.b16 %v3399
      %v3668 = vunpack.c.h.b16 %v3399
      %v3669 = vunpack.c.l.b16 %v3400
      %v3670 = vunpack.c.h.b16 %v3400
      %v3671 = vunpack.c.l.b16 %v3401
      %v3672 = vunpack.c.h.b16 %v3401
      %v3673 = vunpack.c.l.b16 %v3402
      %v3674 = vunpack.c.h.b16 %v3402
      %v3675 = vunpack.c.l.b16 %v3403
      %v3676 = vunpack.c.h.b16 %v3403
      %v3677 = vunpack.c.l.b16 %v3404
      %v3678 = vunpack.c.h.b16 %v3404
      %v3679 = vunpack.c.l.b16 %v3405
      %v3680 = vunpack.c.h.b16 %v3405
      %v3681 = vunpack.c.l.b16 %v3406
      %v3682 = vunpack.c.h.b16 %v3406
      %v3683 = vunpack.c.l.b16 %v3407
      %v3684 = vunpack.c.h.b16 %v3407
      %v3685 = vunpack.c.l.b16 %v3408
      %v3686 = vunpack.c.h.b16 %v3408
      %v3687 = vunpack.c.l.b16 %v3409
      %v3688 = vunpack.c.h.b16 %v3409
      %v3689 = vunpack.c.l.b16 %v3410
      %v3690 = vunpack.c.h.b16 %v3410
      %v3691 = vunpack.c.l.b16 %v3411
      %v3692 = vunpack.c.h.b16 %v3411
      %v3693 = vunpack.c.l.b16 %v3412
      %v3694 = vunpack.c.h.b16 %v3412
      %v3695 = vunpack.c.l.b16 %v3413
      %v3696 = vunpack.c.h.b16 %v3413
      %v3697 = vunpack.c.l.b16 %v3414
      %v3698 = vunpack.c.h.b16 %v3414
      %v3699 = vunpack.c.l.b16 %v3415
      %v3700 = vunpack.c.h.b16 %v3415
      %v3701 = vunpack.c.l.b16 %v3416
      %v3702 = vunpack.c.h.b16 %v3416
      %v3703 = vunpack.c.l.b16 %v3417
      %v3704 = vunpack.c.h.b16 %v3417
      %v3705 = vunpack.c.l.b16 %v3418
      %v3706 = vunpack.c.h.b16 %v3418
      %v3707 = vunpack.c.l.b16 %v3419
      %v3708 = vunpack.c.h.b16 %v3419
      %v3709 = vunpack.c.l.b16 %v3420
      %v3710 = vunpack.c.h.b16 %v3420
      %v3711 = vunpack.c.l.b16 %v3421
      %v3712 = vunpack.c.h.b16 %v3421
      %v3713 = vunpack.c.l.b16 %v3422
      %v3714 = vunpack.c.h.b16 %v3422
      %v3715 = vunpack.c.l.b16 %v3423
      %v3716 = vunpack.c.h.b16 %v3423
      %v3717 = vunpack.c.l.b16 %v3424
      %v3718 = vunpack.c.h.b16 %v3424
      %v3719 = vunpack.c.l.b16 %v3425
      %v3720 = vunpack.c.h.b16 %v3425
      %v3721 = vunpack.c.l.b16 %v3426
      %v3722 = vunpack.c.h.b16 %v3426
      %v3723 = vunpack.c.l.b16 %v3427
      %v3724 = vunpack.c.h.b16 %v3427
      %v3725 = vunpack.c.l.b16 %v3428
      %v3726 = vunpack.c.h.b16 %v3428
      %v3727 = vunpack.c.l.b16 %v3429
      %v3728 = vunpack.c.h.b16 %v3429
      %v3729 = vunpack.c.l.b16 %v3430
      %v3730 = vunpack.c.h.b16 %v3430
      %v3731 = vunpack.c.l.b16 %v3431
      %v3732 = vunpack.c.h.b16 %v3431
      %v3733 = vunpack.c.l.b16 %v3432
      %v3734 = vunpack.c.h.b16 %v3432
      %v3735 = vunpack.c.l.b16 %v3433
      %v3736 = vunpack.c.h.b16 %v3433
      %v3737 = vunpack.c.l.b16 %v3434
      %v3738 = vunpack.c.h.b16 %v3434
      %v3739 = vunpack.c.l.b16 %v3435
      %v3740 = vunpack.c.h.b16 %v3435
      %v3741 = vunpack.c.l.b16 %v3436
      %v3742 = vunpack.c.h.b16 %v3436
      %v3743 = vunpack.c.l.b16 %v3437
      %v3744 = vunpack.c.h.b16 %v3437
      %v3745 = vunpack.c.l.b16 %v3438
      %v3746 = vunpack.c.h.b16 %v3438
      %v3747 = vunpack.c.l.b16 %v3439
      %v3748 = vunpack.c.h.b16 %v3439
      %v3749 = vunpack.c.l.b16 %v3440
      %v3750 = vunpack.c.h.b16 %v3440
      %v3751 = vunpack.c.l.b16 %v3441
      %v3752 = vunpack.c.h.b16 %v3441
      %v3753 = vunpack.c.l.b16 %v3442
      %v3754 = vunpack.c.h.b16 %v3442
      %v3755 = vunpack.c.l.b16 %v3443
      %v3756 = vunpack.c.h.b16 %v3443
      %v3757 = vunpack.c.l.b16 %v3444
      %v3758 = vunpack.c.h.b16 %v3444
      %v3759 = vunpack.c.l.b16 %v3445
      %v3760 = vunpack.c.h.b16 %v3445
      %v3761 = vunpack.c.l.b16 %v3446
      %v3762 = vunpack.c.h.b16 %v3446
      %v3763 = vunpack.c.l.b16 %v3447
      %v3764 = vunpack.c.h.b16 %v3447
      %v3765 = vunpack.c.l.b16 %v3448
      %v3766 = vunpack.c.h.b16 %v3448
      %v3767 = vunpack.c.l.b16 %v3449
      %v3768 = vunpack.c.h.b16 %v3449
      %v3769 = vunpack.c.l.b16 %v3450
      %v3770 = vunpack.c.h.b16 %v3450
      %v3771 = vpack.c.b16 %v3585, %v3579
      %v3772 = vpack.c.b16 %v3586, %v3580
      %v3773 = vpack.c.b16 %v3587, %v3581
      %v3774 = vpack.c.b16 %v3588, %v3582
      %v3775 = vpack.c.b16 %v3589, %v3583
      %v3776 = vpack.c.b16 %v3590, %v3584
      %v3777 = vpack.c.b16 %v3597, %v3591
      %v3778 = vpack.c.b16 %v3598, %v3592
      %v3779 = vpack.c.b16 %v3599, %v3593
      %v3780 = vpack.c.b16 %v3600, %v3594
      %v3781 = vpack.c.b16 %v3601, %v3595
      %v3782 = vpack.c.b16 %v3602, %v3596
      %v3783 = vpack.c.b16 %v3609, %v3603
      %v3784 = vpack.c.b16 %v3610, %v3604
      %v3785 = vpack.c.b16 %v3611, %v3605
      %v3786 = vpack.c.b16 %v3612, %v3606
      %v3787 = vpack.c.b16 %v3613, %v3607
      %v3788 = vpack.c.b16 %v3614, %v3608
      %v3789 = vpack.c.b16 %v3621, %v3615
      %v3790 = vpack.c.b16 %v3622, %v3616
      %v3791 = vpack.c.b16 %v3623, %v3617
      %v3792 = vpack.c.b16 %v3624, %v3618
      %v3793 = vpack.c.b16 %v3625, %v3619
      %v3794 = vpack.c.b16 %v3626, %v3620
      %v3795 = vpack.c.b16 %v3633, %v3627
      %v3796 = vpack.c.b16 %v3634, %v3628
      %v3797 = vpack.c.b16 %v3635, %v3629
      %v3798 = vpack.c.b16 %v3636, %v3630
      %v3799 = vpack.c.b16 %v3637, %v3631
      %v3800 = vpack.c.b16 %v3638, %v3632
      %v3801 = vpack.c.b16 %v3645, %v3639
      %v3802 = vpack.c.b16 %v3646, %v3640
      %v3803 = vpack.c.b16 %v3647, %v3641
      %v3804 = vpack.c.b16 %v3648, %v3642
      %v3805 = vpack.c.b16 %v3649, %v3643
      %v3806 = vpack.c.b16 %v3650, %v3644
      %v3807 = vpack.c.b16 %v3657, %v3651
      %v3808 = vpack.c.b16 %v3658, %v3652
      %v3809 = vpack.c.b16 %v3659, %v3653
      %v3810 = vpack.c.b16 %v3660, %v3654
      %v3811 = vpack.c.b16 %v3661, %v3655
      %v3812 = vpack.c.b16 %v3662, %v3656
      %v3813 = vpack.c.b16 %v3669, %v3663
      %v3814 = vpack.c.b16 %v3670, %v3664
      %v3815 = vpack.c.b16 %v3671, %v3665
      %v3816 = vpack.c.b16 %v3672, %v3666
      %v3817 = vpack.c.b16 %v3673, %v3667
      %v3818 = vpack.c.b16 %v3674, %v3668
      %v3819 = vpack.c.b16 %v3681, %v3675
      %v3820 = vpack.c.b16 %v3682, %v3676
      %v3821 = vpack.c.b16 %v3683, %v3677
      %v3822 = vpack.c.b16 %v3684, %v3678
      %v3823 = vpack.c.b16 %v3685, %v3679
      %v3824 = vpack.c.b16 %v3686, %v3680
      %v3825 = vpack.c.b16 %v3693, %v3687
      %v3826 = vpack.c.b16 %v3694, %v3688
      %v3827 = vpack.c.b16 %v3695, %v3689
      %v3828 = vpack.c.b16 %v3696, %v3690
      %v3829 = vpack.c.b16 %v3697, %v3691
      %v3830 = vpack.c.b16 %v3698, %v3692
      %v3831 = vpack.c.b16 %v3705, %v3699
      %v3832 = vpack.c.b16 %v3706, %v3700
      %v3833 = vpack.c.b16 %v3707, %v3701
      %v3834 = vpack.c.b16 %v3708, %v3702
      %v3835 = vpack.c.b16 %v3709, %v3703
      %v3836 = vpack.c.b16 %v3710, %v3704
      %v3837 = vpack.c.b16 %v3717, %v3711
      %v3838 = vpack.c.b16 %v3718, %v3712
      %v3839 = vpack.c.b16 %v3719, %v3713
      %v3840 = vpack.c.b16 %v3720, %v3714
      %v3841 = vpack.c.b16 %v3721, %v3715
      %v3842 = vpack.c.b16 %v3722, %v3716
      %v3843 = vpack.c.b16 %v3729, %v3723
      %v3844 = vpack.c.b16 %v3730, %v3724
      %v3845 = vpack.c.b16 %v3731, %v3725
      %v3846 = vpack.c.b16 %v3732, %v3726
      %v3847 = vpack.c.b16 %v3733, %v3727
      %v3848 = vpack.c.b16 %v3734, %v3728
      %v3849 = vpack.c.b16 %v3741, %v3735
      %v3850 = vpack.c.b16 %v3742, %v3736
      %v3851 = vpack.c.b16 %v3743, %v3737
      %v3852 = vpack.c.b16 %v3744, %v3738
      %v3853 = vpack.c.b16 %v3745, %v3739
      %v3854 = vpack.c.b16 %v3746, %v3740
      %v3855 = vpack.c.b16 %v3753, %v3747
      %v3856 = vpack.c.b16 %v3754, %v3748
      %v3857 = vpack.c.b16 %v3755, %v3749
      %v3858 = vpack.c.b16 %v3756, %v3750
      %v3859 = vpack.c.b16 %v3757, %v3751
      %v3860 = vpack.c.b16 %v3758, %v3752
      %v3861 = vpack.c.b16 %v3765, %v3759
      %v3862 = vpack.c.b16 %v3766, %v3760
      %v3863 = vpack.c.b16 %v3767, %v3761
      %v3864 = vpack.c.b16 %v3768, %v3762
      %v3865 = vpack.c.b16 %v3769, %v3763
      %v3866 = vpack.c.b16 %v3770, %v3764
      %3963 = vmatprep.subr.bf16.mxu0 %v3772
      %3964 = vmatpush1.bf16.msra.mxu0 %v3771
      %3965 = vmatprep.subr.bf16.mxu0 %v3778
      %3966 = vmatpush1.bf16.msra.mxu0 %v3777
      %3967 = vmatprep.subr.bf16.mxu0 %v3784
      %3968 = vmatpush1.bf16.msra.mxu0 %v3783
      %3969 = vmatprep.subr.bf16.mxu0 %v3790
      %3970 = vmatpush1.bf16.msra.mxu0 %v3789
      %3971 = vmatprep.subr.bf16.mxu0 %v3796
      %3972 = vmatpush1.bf16.msra.mxu0 %v3795
      %3973 = vmatprep.subr.bf16.mxu0 %v3802
      %3974 = vmatpush1.bf16.msra.mxu0 %v3801
      %3975 = vmatprep.subr.bf16.mxu0 %v3808
      %3976 = vmatpush1.bf16.msra.mxu0 %v3807
      %3977 = vmatprep.subr.bf16.mxu0 %v3814
      %3978 = vmatpush1.bf16.msra.mxu0 %v3813
      %3979 = vmatprep.subr.bf16.mxu0 %v3820
      %3980 = vmatpush1.bf16.msra.mxu0 %v3819
      %3981 = vmatprep.subr.bf16.mxu0 %v3826
      %3982 = vmatpush1.bf16.msra.mxu0 %v3825
      %3983 = vmatprep.subr.bf16.mxu0 %v3832
      %3984 = vmatpush1.bf16.msra.mxu0 %v3831
      %3985 = vmatprep.subr.bf16.mxu0 %v3838
      %3986 = vmatpush1.bf16.msra.mxu0 %v3837
      %3987 = vmatprep.subr.bf16.mxu0 %v3844
      %3988 = vmatpush1.bf16.msra.mxu0 %v3843
      %3989 = vmatprep.subr.bf16.mxu0 %v3850
      %3990 = vmatpush1.bf16.msra.mxu0 %v3849
      %3991 = vmatprep.subr.bf16.mxu0 %v3856
      %3992 = vmatpush1.bf16.msra.mxu0 %v3855
      %3993 = vmatprep.subr.bf16.mxu0 %v3862
      %3994 = vmatpush1.bf16.msra.mxu0 %v3861
      %3995 = vmatprep.mubr.bf16.mxu0 %v3354
      %3996 = vmatmul.mubr.bf16.gmra.mrb[0].mxu0 %v3353
      %v3997 = vpop.f32.mrb[0].mxu0
      %v3998 = vadd.f32 %v3456, %v3997
      %v3999 = vpop.f32.mrb[0].mxu0
      %v4000 = vadd.f32 %v3460, %v3999
      %v4001 = vpop.f32.mrb[0].mxu0
      %v4002 = vpop.f32.mrb[0].mxu0
      %4003 = vdwg.mxu0
      %4004 = vmatprep.subr.bf16.mxu0 %v3774
      %4005 = vmatpush1.bf16.msra.mxu0 %v3773
      %4006 = vmatprep.subr.bf16.mxu0 %v3780
      %4007 = vmatpush1.bf16.msra.mxu0 %v3779
      %4008 = vmatprep.subr.bf16.mxu0 %v3786
      %4009 = vmatpush1.bf16.msra.mxu0 %v3785
      %4010 = vmatprep.subr.bf16.mxu0 %v3792
      %4011 = vmatpush1.bf16.msra.mxu0 %v3791
      %4012 = vmatprep.subr.bf16.mxu0 %v3798
      %4013 = vmatpush1.bf16.msra.mxu0 %v3797
      %4014 = vmatprep.subr.bf16.mxu0 %v3804
      %4015 = vmatpush1.bf16.msra.mxu0 %v3803
      %4016 = vmatprep.subr.bf16.mxu0 %v3810
      %4017 = vmatpush1.bf16.msra.mxu0 %v3809
      %4018 = vmatprep.subr.bf16.mxu0 %v3816
      %4019 = vmatpush1.bf16.msra.mxu0 %v3815
      %4020 = vmatprep.subr.bf16.mxu0 %v3822
      %4021 = vmatpush1.bf16.msra.mxu0 %v3821
      %4022 = vmatprep.subr.bf16.mxu0 %v3828
      %4023 = vmatpush1.bf16.msra.mxu0 %v3827
      %4024 = vmatprep.subr.bf16.mxu0 %v3834
      %4025 = vmatpush1.bf16.msra.mxu0 %v3833
      %4026 = vmatprep.subr.bf16.mxu0 %v3840
      %4027 = vmatpush1.bf16.msra.mxu0 %v3839
      %4028 = vmatprep.subr.bf16.mxu0 %v3846
      %4029 = vmatpush1.bf16.msra.mxu0 %v3845
      %4030 = vmatprep.subr.bf16.mxu0 %v3852
      %4031 = vmatpush1.bf16.msra.mxu0 %v3851
      %4032 = vmatprep.subr.bf16.mxu0 %v3858
      %4033 = vmatpush1.bf16.msra.mxu0 %v3857
      %4034 = vmatprep.subr.bf16.mxu0 %v3864
      %4035 = vmatpush1.bf16.msra.mxu0 %v3863
      %4036 = vmatprep.mubr.bf16.mxu0 %v3354
      %4037 = vmatmul.mubr.bf16.gmra.mrb[0].mxu0 %v3353
      %v4038 = vpop.f32.mrb[0].mxu0
      %v4039 = vadd.f32 %v3464, %v4038
      %v4040 = vpop.f32.mrb[0].mxu0
      %v4041 = vadd.f32 %v3468, %v4040
      %v4042 = vpop.f32.mrb[0].mxu0
      %v4043 = vpop.f32.mrb[0].mxu0
      %4044 = vdwg.mxu0
      %4045 = vmatprep.subr.bf16.mxu0 %v3776
      %4046 = vmatpush1.bf16.msra.mxu0 %v3775
      %4047 = vmatprep.subr.bf16.mxu0 %v3782
      %4048 = vmatpush1.bf16.msra.mxu0 %v3781
      %4049 = vmatprep.subr.bf16.mxu0 %v3788
      %4050 = vmatpush1.bf16.msra.mxu0 %v3787
      %4051 = vmatprep.subr.bf16.mxu0 %v3794
      %4052 = vmatpush1.bf16.msra.mxu0 %v3793
      %4053 = vmatprep.subr.bf16.mxu0 %v3800
      %4054 = vmatpush1.bf16.msra.mxu0 %v3799
      %4055 = vmatprep.subr.bf16.mxu0 %v3806
      %4056 = vmatpush1.bf16.msra.mxu0 %v3805
      %4057 = vmatprep.subr.bf16.mxu0 %v3812
      %4058 = vmatpush1.bf16.msra.mxu0 %v3811
      %4059 = vmatprep.subr.bf16.mxu0 %v3818
      %4060 = vmatpush1.bf16.msra.mxu0 %v3817
      %4061 = vmatprep.subr.bf16.mxu0 %v3824
      %4062 = vmatpush1.bf16.msra.mxu0 %v3823
      %4063 = vmatprep.subr.bf16.mxu0 %v3830
      %4064 = vmatpush1.bf16.msra.mxu0 %v3829
      %4065 = vmatprep.subr.bf16.mxu0 %v3836
      %4066 = vmatpush1.bf16.msra.mxu0 %v3835
      %4067 = vmatprep.subr.bf16.mxu0 %v3842
      %4068 = vmatpush1.bf16.msra.mxu0 %v3841
      %4069 = vmatprep.subr.bf16.mxu0 %v3848
      %4070 = vmatpush1.bf16.msra.mxu0 %v3847
      %4071 = vmatprep.subr.bf16.mxu0 %v3854
      %4072 = vmatpush1.bf16.msra.mxu0 %v3853
      %4073 = vmatprep.subr.bf16.mxu0 %v3860
      %4074 = vmatpush1.bf16.msra.mxu0 %v3859
      %4075 = vmatprep.subr.bf16.mxu0 %v3866
      %4076 = vmatpush1.bf16.msra.mxu0 %v3865
      %4077 = vmatprep.mubr.bf16.mxu0 %v3354
      %4078 = vmatmul.mubr.bf16.gmra.mrb[0].mxu0 %v3353
      %v4079 = vpop.f32.mrb[0].mxu0
      %v4080 = vadd.f32 %v3472, %v4079
      %v4081 = vpop.f32.mrb[0].mxu0
      %v4082 = vadd.f32 %v3476, %v4081
      %v4083 = vpop.f32.mrb[0].mxu0
      %v4084 = vpop.f32.mrb[0].mxu0
      %4085 = vdwg.mxu0
      %v4088 = vcombine.low %v3265, %v3267
      %v4090 = vunpack.c.l.s4 1966171168
      %v4091 = vunpack.c.0.s8 %v4090
      %v4092 = vlaneseq
      %v4093 = vshrl.u32 %v4092, 7
      %v4094 = vsub.s32 %v4091, %v4093
      %v4095 = vrot.slane %v4088, %v4094
      %v4096 = vcombine.high %v4095, %v4095
      %v4098 = vunpack.c.l.s4 1966171168
      %v4099 = vunpack.c.0.s8 %v4098
      %v4100 = vlaneseq
      %v4101 = vshrl.u32 %v4100, 7
      %v4102 = vsub.s32 %v4099, %v4101
      %v4103 = vrot.slane %v4095, %v4102
      %v4105 = vunpack.c.l.s4 1966171168
      %v4106 = vunpack.c.0.s8 %v4105
      %v4107 = vlaneseq
      %v4108 = vshrl.u32 %v4107, 7
      %v4109 = vsub.s32 %v4106, %v4108
      %v4110 = vrot.slane %v4096, %v4109
      %v4113 = vadd.f32 %v2573, %v4103
      %v4114 = vadd.f32 %v2578, %v4110
      %v4115 = vxor.u32 %v4113, 2147483648
      %v4116 = vxor.u32 %v4114, 2147483648
      %v4117 = vmul.f32 %v4115, 1.442695
      %v4118 = vpow.pop %v4117
      %v4119 = vmul.f32 %v4116, 1.442695
      %v4120 = vpow.pop %v4119
      %v4121 = vadd.f32 %v4118, 1.0
      %v4122 = vadd.f32 %v4120, 1.0
      %v4123 = vrcp.pop %v4121
      %v4124 = vmul.f32 1.0, %v4123
      %v4125 = vrcp.pop %v4122
      %v4126 = vmul.f32 1.0, %v4125
      %v4129 = vrot.slane %v2573, 2
      %v4130 = vrot.slane %v2578, 2
      %v4135 = vcombine.low %v3306, %v3308
      %v4137 = vunpack.c.l.s4 1966171168
      %v4138 = vunpack.c.0.s8 %v4137
      %v4139 = vlaneseq
      %v4140 = vshrl.u32 %v4139, 7
      %v4141 = vsub.s32 %v4138, %v4140
      %v4142 = vrot.slane %v4135, %v4141
      %v4143 = vcombine.high %v4142, %v4142
      %v4145 = vunpack.c.l.s4 1966171168
      %v4146 = vunpack.c.0.s8 %v4145
      %v4147 = vlaneseq
      %v4148 = vshrl.u32 %v4147, 7
      %v4149 = vsub.s32 %v4146, %v4148
      %v4150 = vrot.slane %v4142, %v4149
      %v4152 = vunpack.c.l.s4 1966171168
      %v4153 = vunpack.c.0.s8 %v4152
      %v4154 = vlaneseq
      %v4155 = vshrl.u32 %v4154, 7
      %v4156 = vsub.s32 %v4153, %v4155
      %v4157 = vrot.slane %v4143, %v4156
      %v4160 = vadd.f32 %v4129, %v4150
      %v4161 = vadd.f32 %v4130, %v4157
      %v4162 = vxor.u32 %v4160, 2147483648
      %v4163 = vxor.u32 %v4161, 2147483648
      %v4164 = vmul.f32 %v4162, 1.442695
      %v4165 = vpow.pop %v4164
      %v4166 = vmul.f32 %v4163, 1.442695
      %v4167 = vpow.pop %v4166
      %v4168 = vadd.f32 %v4165, 1.0
      %v4169 = vadd.f32 %v4167, 1.0
      %v4170 = vrcp.pop %v4168
      %v4171 = vmul.f32 1.0, %v4170
      %v4172 = vrcp.pop %v4169
      %v4173 = vmul.f32 1.0, %v4172
      %v4176 = vcombine.low %v3347, %v3349
      %v4178 = vunpack.c.l.s4 1966171168
      %v4179 = vunpack.c.0.s8 %v4178
      %v4180 = vlaneseq
      %v4181 = vshrl.u32 %v4180, 7
      %v4182 = vsub.s32 %v4179, %v4181
      %v4183 = vrot.slane %v4176, %v4182
      %v4184 = vcombine.high %v4183, %v4183
      %v4186 = vunpack.c.l.s4 1966171168
      %v4187 = vunpack.c.0.s8 %v4186
      %v4188 = vlaneseq
      %v4189 = vshrl.u32 %v4188, 7
      %v4190 = vsub.s32 %v4187, %v4189
      %v4191 = vrot.slane %v4183, %v4190
      %v4193 = vunpack.c.l.s4 1966171168
      %v4194 = vunpack.c.0.s8 %v4193
      %v4195 = vlaneseq
      %v4196 = vshrl.u32 %v4195, 7
      %v4197 = vsub.s32 %v4194, %v4196
      %v4198 = vrot.slane %v4184, %v4197
      %v4201 = vmul.f32 %v4124, %v4191
      %v4202 = vmul.f32 %v4126, %v4198
      %v4203 = vrot.slane %v2573, 4
      %v4204 = vrot.slane %v2578, 4
      %v4207 = vadd.f32 %v4203, %v4201
      %v4208 = vadd.f32 %v4204, %v4202
      %v4209 = vtanh.pop %v4207
      %v4210 = vtanh.pop %v4208
      %v4211 = vsub.f32 1.0, %v4171
      %v4212 = vsub.f32 1.0, %v4173
      %v4213 = vmul.f32 %v4211, %v4209
      %v4214 = vmul.f32 %v4212, %v4210
      %v4215 = vmul.f32 %v4171, %v2559
      %v4216 = vmul.f32 %v4173, %v2560
      %v4217 = vadd.f32 %v4213, %v4215
      %v4218 = vadd.f32 %v4214, %v4216
      %v4221 = vlaneseq
      %v4222 = vshrl.u32 %v4221, 7
      %v4223 = vsub.s32 0, %v4222
      %v4224 = vrot.slane %v4217, %v4223
      %v4225 = vlaneseq
      %v4226 = vshrl.u32 %v4225, 7
      %v4227 = vsub.s32 1, %v4226
      %v4228 = vrot.slane %v4217, %v4227
      %v4229 = vlaneseq
      %v4230 = vshrl.u32 %v4229, 7
      %v4231 = vsub.s32 0, %v4230
      %v4232 = vrot.slane %v4218, %v4231
      %v4233 = vlaneseq
      %v4234 = vshrl.u32 %v4233, 7
      %v4235 = vsub.s32 1, %v4234
      %v4236 = vrot.slane %v4218, %v4235
      %v4241 = vpack.c.bf16 %v4224, %v4224
      %v4242 = vpack.c.bf16 %v4228, %v4228
      %v4243 = vpack.c.bf16 %v4232, %v4232
      %v4244 = vpack.c.bf16 %v4236, %v4236
      %v4245 = vld [vmem:[#allocation19] sm:$0xff]
      %v4246 = vld [vmem:[#allocation19 + $0x8] sm:$0xff]
      %v4247 = vld [vmem:[#allocation19 + $0x10] sm:$0xff]
      %v4248 = vld [vmem:[#allocation19 + $0x18] sm:$0xff]
      %v4249 = vld [vmem:[#allocation19 + $0x20] sm:$0xff]
      %v4250 = vld [vmem:[#allocation19 + $0x28] sm:$0xff]
      %v4251 = vld [vmem:[#allocation19 + $0x30] sm:$0xff]
      %v4252 = vld [vmem:[#allocation19 + $0x38] sm:$0xff]
      %v4253 = vld [vmem:[#allocation19 + $0x40] sm:$0xff]
      %v4254 = vld [vmem:[#allocation19 + $0x48] sm:$0xff]
      %v4255 = vld [vmem:[#allocation19 + $0x50] sm:$0xff]
      %v4256 = vld [vmem:[#allocation19 + $0x58] sm:$0xff]
      %v4257 = vld [vmem:[#allocation19 + $0x60] sm:$0xff]
      %v4258 = vld [vmem:[#allocation19 + $0x68] sm:$0xff]
      %v4259 = vld [vmem:[#allocation19 + $0x70] sm:$0xff]
      %v4260 = vld [vmem:[#allocation19 + $0x78] sm:$0xff]
      %v4261 = vld [vmem:[#allocation19 + $0x80] sm:$0xff]
      %v4262 = vld [vmem:[#allocation19 + $0x88] sm:$0xff]
      %v4263 = vld [vmem:[#allocation19 + $0x90] sm:$0xff]
      %v4264 = vld [vmem:[#allocation19 + $0x98] sm:$0xff]
      %v4265 = vld [vmem:[#allocation19 + $0xa0] sm:$0xff]
      %v4266 = vld [vmem:[#allocation19 + $0xa8] sm:$0xff]
      %v4267 = vld [vmem:[#allocation19 + $0xb0] sm:$0xff]
      %v4268 = vld [vmem:[#allocation19 + $0xb8] sm:$0xff]
      %v4269 = vld [vmem:[#allocation19 + $0xc0] sm:$0xff]
      %v4270 = vld [vmem:[#allocation19 + $0xc8] sm:$0xff]
      %v4271 = vld [vmem:[#allocation19 + $0xd0] sm:$0xff]
      %v4272 = vld [vmem:[#allocation19 + $0xd8] sm:$0xff]
      %v4273 = vld [vmem:[#allocation19 + $0xe0] sm:$0xff]
      %v4274 = vld [vmem:[#allocation19 + $0xe8] sm:$0xff]
      %v4275 = vld [vmem:[#allocation19 + $0xf0] sm:$0xff]
      %v4276 = vld [vmem:[#allocation19 + $0xf8] sm:$0xff]
      %v4277 = vld [vmem:[#allocation19 + $0x100] sm:$0xff]
      %v4278 = vld [vmem:[#allocation19 + $0x108] sm:$0xff]
      %v4279 = vld [vmem:[#allocation19 + $0x110] sm:$0xff]
      %v4280 = vld [vmem:[#allocation19 + $0x118] sm:$0xff]
      %v4281 = vld [vmem:[#allocation19 + $0x120] sm:$0xff]
      %v4282 = vld [vmem:[#allocation19 + $0x128] sm:$0xff]
      %v4283 = vld [vmem:[#allocation19 + $0x130] sm:$0xff]
      %v4284 = vld [vmem:[#allocation19 + $0x138] sm:$0xff]
      %v4285 = vld [vmem:[#allocation19 + $0x140] sm:$0xff]
      %v4286 = vld [vmem:[#allocation19 + $0x148] sm:$0xff]
      %v4287 = vld [vmem:[#allocation19 + $0x150] sm:$0xff]
      %v4288 = vld [vmem:[#allocation19 + $0x158] sm:$0xff]
      %v4289 = vld [vmem:[#allocation19 + $0x160] sm:$0xff]
      %v4290 = vld [vmem:[#allocation19 + $0x168] sm:$0xff]
      %v4291 = vld [vmem:[#allocation19 + $0x170] sm:$0xff]
      %v4292 = vld [vmem:[#allocation19 + $0x178] sm:$0xff]
      %v4293 = vld [vmem:[#allocation19 + $0x180] sm:$0xff]
      %v4294 = vld [vmem:[#allocation19 + $0x188] sm:$0xff]
      %v4295 = vld [vmem:[#allocation19 + $0x190] sm:$0xff]
      %v4296 = vld [vmem:[#allocation19 + $0x198] sm:$0xff]
      %v4297 = vld [vmem:[#allocation19 + $0x1a0] sm:$0xff]
      %v4298 = vld [vmem:[#allocation19 + $0x1a8] sm:$0xff]
      %v4299 = vld [vmem:[#allocation19 + $0x1b0] sm:$0xff]
      %v4300 = vld [vmem:[#allocation19 + $0x1b8] sm:$0xff]
      %v4301 = vld [vmem:[#allocation19 + $0x1c0] sm:$0xff]
      %v4302 = vld [vmem:[#allocation19 + $0x1c8] sm:$0xff]
      %v4303 = vld [vmem:[#allocation19 + $0x1d0] sm:$0xff]
      %v4304 = vld [vmem:[#allocation19 + $0x1d8] sm:$0xff]
      %v4305 = vld [vmem:[#allocation19 + $0x1e0] sm:$0xff]
      %v4306 = vld [vmem:[#allocation19 + $0x1e8] sm:$0xff]
      %v4307 = vld [vmem:[#allocation19 + $0x1f0] sm:$0xff]
      %v4308 = vld [vmem:[#allocation19 + $0x1f8] sm:$0xff]
      %v4309 = vld [vmem:[#allocation19 + $0x200] sm:$0xff]
      %v4310 = vld [vmem:[#allocation19 + $0x208] sm:$0xff]
      %v4311 = vld [vmem:[#allocation19 + $0x210] sm:$0xff]
      %v4312 = vld [vmem:[#allocation19 + $0x218] sm:$0xff]
      %v4313 = vld [vmem:[#allocation19 + $0x220] sm:$0xff]
      %v4314 = vld [vmem:[#allocation19 + $0x228] sm:$0xff]
      %v4315 = vld [vmem:[#allocation19 + $0x230] sm:$0xff]
      %v4316 = vld [vmem:[#allocation19 + $0x238] sm:$0xff]
      %v4317 = vld [vmem:[#allocation19 + $0x240] sm:$0xff]
      %v4318 = vld [vmem:[#allocation19 + $0x248] sm:$0xff]
      %v4319 = vld [vmem:[#allocation19 + $0x250] sm:$0xff]
      %v4320 = vld [vmem:[#allocation19 + $0x258] sm:$0xff]
      %v4321 = vld [vmem:[#allocation19 + $0x260] sm:$0xff]
      %v4322 = vld [vmem:[#allocation19 + $0x268] sm:$0xff]
      %v4323 = vld [vmem:[#allocation19 + $0x270] sm:$0xff]
      %v4324 = vld [vmem:[#allocation19 + $0x278] sm:$0xff]
      %v4325 = vld [vmem:[#allocation19 + $0x280] sm:$0xff]
      %v4326 = vld [vmem:[#allocation19 + $0x288] sm:$0xff]
      %v4327 = vld [vmem:[#allocation19 + $0x290] sm:$0xff]
      %v4328 = vld [vmem:[#allocation19 + $0x298] sm:$0xff]
      %v4329 = vld [vmem:[#allocation19 + $0x2a0] sm:$0xff]
      %v4330 = vld [vmem:[#allocation19 + $0x2a8] sm:$0xff]
      %v4331 = vld [vmem:[#allocation19 + $0x2b0] sm:$0xff]
      %v4332 = vld [vmem:[#allocation19 + $0x2b8] sm:$0xff]
      %v4333 = vld [vmem:[#allocation19 + $0x2c0] sm:$0xff]
      %v4334 = vld [vmem:[#allocation19 + $0x2c8] sm:$0xff]
      %v4335 = vld [vmem:[#allocation19 + $0x2d0] sm:$0xff]
      %v4336 = vld [vmem:[#allocation19 + $0x2d8] sm:$0xff]
      %v4337 = vld [vmem:[#allocation19 + $0x2e0] sm:$0xff]
      %v4338 = vld [vmem:[#allocation19 + $0x2e8] sm:$0xff]
      %v4339 = vld [vmem:[#allocation19 + $0x2f0] sm:$0xff]
      %v4340 = vld [vmem:[#allocation19 + $0x2f8] sm:$0xff]
      %v4341 = vld [vmem:[%s14] sm:$0x3f]
      %v4343 = vlaneseq
      %v4344 = vshrl.u32 %v4343, 7
      %v4345 = vsub.s32 0, %v4344
      %v4346 = vrot.slane %v4341, %v4345
      %v4347 = vlaneseq
      %v4348 = vshrl.u32 %v4347, 7
      %v4349 = vsub.s32 1, %v4348
      %v4350 = vrot.slane %v4341, %v4349
      %v4351 = vlaneseq
      %v4352 = vshrl.u32 %v4351, 7
      %v4353 = vsub.s32 2, %v4352
      %v4354 = vrot.slane %v4341, %v4353
      %v4355 = vlaneseq
      %v4356 = vshrl.u32 %v4355, 7
      %v4357 = vsub.s32 3, %v4356
      %v4358 = vrot.slane %v4341, %v4357
      %v4359 = vlaneseq
      %v4360 = vshrl.u32 %v4359, 7
      %v4361 = vsub.s32 4, %v4360
      %v4362 = vrot.slane %v4341, %v4361
      %v4363 = vlaneseq
      %v4364 = vshrl.u32 %v4363, 7
      %v4365 = vsub.s32 5, %v4364
      %v4366 = vrot.slane %v4341, %v4365
      %v4377 = vunpack.c.l.b16 %v4241
      %v4378 = vunpack.c.l.b16 %v4242
      %v4379 = vunpack.c.l.b16 %v4243
      %v4380 = vunpack.c.l.b16 %v4244
      %v4381 = vrot.slane %v4379, 7
      %v4382 = vsel %vm2742, %v4381, %v4377
      %v4383 = vrot.slane %v4380, 7
      %v4384 = vsel %vm2742, %v4383, %v4378
      %v4385 = vpack.c.b16 %v4382, %v4382
      %v4386 = vpack.c.b16 %v4384, %v4384
      %v4485 = vunpack.c.l.b16 %v4245
      %v4486 = vunpack.c.h.b16 %v4245
      %v4487 = vunpack.c.l.b16 %v4246
      %v4488 = vunpack.c.h.b16 %v4246
      %v4489 = vunpack.c.l.b16 %v4247
      %v4490 = vunpack.c.h.b16 %v4247
      %v4491 = vunpack.c.l.b16 %v4248
      %v4492 = vunpack.c.h.b16 %v4248
      %v4493 = vunpack.c.l.b16 %v4249
      %v4494 = vunpack.c.h.b16 %v4249
      %v4495 = vunpack.c.l.b16 %v4250
      %v4496 = vunpack.c.h.b16 %v4250
      %v4497 = vunpack.c.l.b16 %v4251
      %v4498 = vunpack.c.h.b16 %v4251
      %v4499 = vunpack.c.l.b16 %v4252
      %v4500 = vunpack.c.h.b16 %v4252
      %v4501 = vunpack.c.l.b16 %v4253
      %v4502 = vunpack.c.h.b16 %v4253
      %v4503 = vunpack.c.l.b16 %v4254
      %v4504 = vunpack.c.h.b16 %v4254
      %v4505 = vunpack.c.l.b16 %v4255
      %v4506 = vunpack.c.h.b16 %v4255
      %v4507 = vunpack.c.l.b16 %v4256
      %v4508 = vunpack.c.h.b16 %v4256
      %v4509 = vunpack.c.l.b16 %v4257
      %v4510 = vunpack.c.h.b16 %v4257
      %v4511 = vunpack.c.l.b16 %v4258
      %v4512 = vunpack.c.h.b16 %v4258
      %v4513 = vunpack.c.l.b16 %v4259
      %v4514 = vunpack.c.h.b16 %v4259
      %v4515 = vunpack.c.l.b16 %v4260
      %v4516 = vunpack.c.h.b16 %v4260
      %v4517 = vunpack.c.l.b16 %v4261
      %v4518 = vunpack.c.h.b16 %v4261
      %v4519 = vunpack.c.l.b16 %v4262
      %v4520 = vunpack.c.h.b16 %v4262
      %v4521 = vunpack.c.l.b16 %v4263
      %v4522 = vunpack.c.h.b16 %v4263
      %v4523 = vunpack.c.l.b16 %v4264
      %v4524 = vunpack.c.h.b16 %v4264
      %v4525 = vunpack.c.l.b16 %v4265
      %v4526 = vunpack.c.h.b16 %v4265
      %v4527 = vunpack.c.l.b16 %v4266
      %v4528 = vunpack.c.h.b16 %v4266
      %v4529 = vunpack.c.l.b16 %v4267
      %v4530 = vunpack.c.h.b16 %v4267
      %v4531 = vunpack.c.l.b16 %v4268
      %v4532 = vunpack.c.h.b16 %v4268
      %v4533 = vunpack.c.l.b16 %v4269
      %v4534 = vunpack.c.h.b16 %v4269
      %v4535 = vunpack.c.l.b16 %v4270
      %v4536 = vunpack.c.h.b16 %v4270
      %v4537 = vunpack.c.l.b16 %v4271
      %v4538 = vunpack.c.h.b16 %v4271
      %v4539 = vunpack.c.l.b16 %v4272
      %v4540 = vunpack.c.h.b16 %v4272
      %v4541 = vunpack.c.l.b16 %v4273
      %v4542 = vunpack.c.h.b16 %v4273
      %v4543 = vunpack.c.l.b16 %v4274
      %v4544 = vunpack.c.h.b16 %v4274
      %v4545 = vunpack.c.l.b16 %v4275
      %v4546 = vunpack.c.h.b16 %v4275
      %v4547 = vunpack.c.l.b16 %v4276
      %v4548 = vunpack.c.h.b16 %v4276
      %v4549 = vunpack.c.l.b16 %v4277
      %v4550 = vunpack.c.h.b16 %v4277
      %v4551 = vunpack.c.l.b16 %v4278
      %v4552 = vunpack.c.h.b16 %v4278
      %v4553 = vunpack.c.l.b16 %v4279
      %v4554 = vunpack.c.h.b16 %v4279
      %v4555 = vunpack.c.l.b16 %v4280
      %v4556 = vunpack.c.h.b16 %v4280
      %v4557 = vunpack.c.l.b16 %v4281
      %v4558 = vunpack.c.h.b16 %v4281
      %v4559 = vunpack.c.l.b16 %v4282
      %v4560 = vunpack.c.h.b16 %v4282
      %v4561 = vunpack.c.l.b16 %v4283
      %v4562 = vunpack.c.h.b16 %v4283
      %v4563 = vunpack.c.l.b16 %v4284
      %v4564 = vunpack.c.h.b16 %v4284
      %v4565 = vunpack.c.l.b16 %v4285
      %v4566 = vunpack.c.h.b16 %v4285
      %v4567 = vunpack.c.l.b16 %v4286
      %v4568 = vunpack.c.h.b16 %v4286
      %v4569 = vunpack.c.l.b16 %v4287
      %v4570 = vunpack.c.h.b16 %v4287
      %v4571 = vunpack.c.l.b16 %v4288
      %v4572 = vunpack.c.h.b16 %v4288
      %v4573 = vunpack.c.l.b16 %v4289
      %v4574 = vunpack.c.h.b16 %v4289
      %v4575 = vunpack.c.l.b16 %v4290
      %v4576 = vunpack.c.h.b16 %v4290
      %v4577 = vunpack.c.l.b16 %v4291
      %v4578 = vunpack.c.h.b16 %v4291
      %v4579 = vunpack.c.l.b16 %v4292
      %v4580 = vunpack.c.h.b16 %v4292
      %v4581 = vunpack.c.l.b16 %v4293
      %v4582 = vunpack.c.h.b16 %v4293
      %v4583 = vunpack.c.l.b16 %v4294
      %v4584 = vunpack.c.h.b16 %v4294
      %v4585 = vunpack.c.l.b16 %v4295
      %v4586 = vunpack.c.h.b16 %v4295
      %v4587 = vunpack.c.l.b16 %v4296
      %v4588 = vunpack.c.h.b16 %v4296
      %v4589 = vunpack.c.l.b16 %v4297
      %v4590 = vunpack.c.h.b16 %v4297
      %v4591 = vunpack.c.l.b16 %v4298
      %v4592 = vunpack.c.h.b16 %v4298
      %v4593 = vunpack.c.l.b16 %v4299
      %v4594 = vunpack.c.h.b16 %v4299
      %v4595 = vunpack.c.l.b16 %v4300
      %v4596 = vunpack.c.h.b16 %v4300
      %v4597 = vunpack.c.l.b16 %v4301
      %v4598 = vunpack.c.h.b16 %v4301
      %v4599 = vunpack.c.l.b16 %v4302
      %v4600 = vunpack.c.h.b16 %v4302
      %v4601 = vunpack.c.l.b16 %v4303
      %v4602 = vunpack.c.h.b16 %v4303
      %v4603 = vunpack.c.l.b16 %v4304
      %v4604 = vunpack.c.h.b16 %v4304
      %v4605 = vunpack.c.l.b16 %v4305
      %v4606 = vunpack.c.h.b16 %v4305
      %v4607 = vunpack.c.l.b16 %v4306
      %v4608 = vunpack.c.h.b16 %v4306
      %v4609 = vunpack.c.l.b16 %v4307
      %v4610 = vunpack.c.h.b16 %v4307
      %v4611 = vunpack.c.l.b16 %v4308
      %v4612 = vunpack.c.h.b16 %v4308
      %v4613 = vunpack.c.l.b16 %v4309
      %v4614 = vunpack.c.h.b16 %v4309
      %v4615 = vunpack.c.l.b16 %v4310
      %v4616 = vunpack.c.h.b16 %v4310
      %v4617 = vunpack.c.l.b16 %v4311
      %v4618 = vunpack.c.h.b16 %v4311
      %v4619 = vunpack.c.l.b16 %v4312
      %v4620 = vunpack.c.h.b16 %v4312
      %v4621 = vunpack.c.l.b16 %v4313
      %v4622 = vunpack.c.h.b16 %v4313
      %v4623 = vunpack.c.l.b16 %v4314
      %v4624 = vunpack.c.h.b16 %v4314
      %v4625 = vunpack.c.l.b16 %v4315
      %v4626 = vunpack.c.h.b16 %v4315
      %v4627 = vunpack.c.l.b16 %v4316
      %v4628 = vunpack.c.h.b16 %v4316
      %v4629 = vunpack.c.l.b16 %v4317
      %v4630 = vunpack.c.h.b16 %v4317
      %v4631 = vunpack.c.l.b16 %v4318
      %v4632 = vunpack.c.h.b16 %v4318
      %v4633 = vunpack.c.l.b16 %v4319
      %v4634 = vunpack.c.h.b16 %v4319
      %v4635 = vunpack.c.l.b16 %v4320
      %v4636 = vunpack.c.h.b16 %v4320
      %v4637 = vunpack.c.l.b16 %v4321
      %v4638 = vunpack.c.h.b16 %v4321
      %v4639 = vunpack.c.l.b16 %v4322
      %v4640 = vunpack.c.h.b16 %v4322
      %v4641 = vunpack.c.l.b16 %v4323
      %v4642 = vunpack.c.h.b16 %v4323
      %v4643 = vunpack.c.l.b16 %v4324
      %v4644 = vunpack.c.h.b16 %v4324
      %v4645 = vunpack.c.l.b16 %v4325
      %v4646 = vunpack.c.h.b16 %v4325
      %v4647 = vunpack.c.l.b16 %v4326
      %v4648 = vunpack.c.h.b16 %v4326
      %v4649 = vunpack.c.l.b16 %v4327
      %v4650 = vunpack.c.h.b16 %v4327
      %v4651 = vunpack.c.l.b16 %v4328
      %v4652 = vunpack.c.h.b16 %v4328
      %v4653 = vunpack.c.l.b16 %v4329
      %v4654 = vunpack.c.h.b16 %v4329
      %v4655 = vunpack.c.l.b16 %v4330
      %v4656 = vunpack.c.h.b16 %v4330
      %v4657 = vunpack.c.l.b16 %v4331
      %v4658 = vunpack.c.h.b16 %v4331
      %v4659 = vunpack.c.l.b16 %v4332
      %v4660 = vunpack.c.h.b16 %v4332
      %v4661 = vunpack.c.l.b16 %v4333
      %v4662 = vunpack.c.h.b16 %v4333
      %v4663 = vunpack.c.l.b16 %v4334
      %v4664 = vunpack.c.h.b16 %v4334
      %v4665 = vunpack.c.l.b16 %v4335
      %v4666 = vunpack.c.h.b16 %v4335
      %v4667 = vunpack.c.l.b16 %v4336
      %v4668 = vunpack.c.h.b16 %v4336
      %v4669 = vunpack.c.l.b16 %v4337
      %v4670 = vunpack.c.h.b16 %v4337
      %v4671 = vunpack.c.l.b16 %v4338
      %v4672 = vunpack.c.h.b16 %v4338
      %v4673 = vunpack.c.l.b16 %v4339
      %v4674 = vunpack.c.h.b16 %v4339
      %v4675 = vunpack.c.l.b16 %v4340
      %v4676 = vunpack.c.h.b16 %v4340
      %v4677 = vpack.c.b16 %v4491, %v4485
      %v4678 = vpack.c.b16 %v4492, %v4486
      %v4679 = vpack.c.b16 %v4493, %v4487
      %v4680 = vpack.c.b16 %v4494, %v4488
      %v4681 = vpack.c.b16 %v4495, %v4489
      %v4682 = vpack.c.b16 %v4496, %v4490
      %v4683 = vpack.c.b16 %v4503, %v4497
      %v4684 = vpack.c.b16 %v4504, %v4498
      %v4685 = vpack.c.b16 %v4505, %v4499
      %v4686 = vpack.c.b16 %v4506, %v4500
      %v4687 = vpack.c.b16 %v4507, %v4501
      %v4688 = vpack.c.b16 %v4508, %v4502
      %v4689 = vpack.c.b16 %v4515, %v4509
      %v4690 = vpack.c.b16 %v4516, %v4510
      %v4691 = vpack.c.b16 %v4517, %v4511
      %v4692 = vpack.c.b16 %v4518, %v4512
      %v4693 = vpack.c.b16 %v4519, %v4513
      %v4694 = vpack.c.b16 %v4520, %v4514
      %v4695 = vpack.c.b16 %v4527, %v4521
      %v4696 = vpack.c.b16 %v4528, %v4522
      %v4697 = vpack.c.b16 %v4529, %v4523
      %v4698 = vpack.c.b16 %v4530, %v4524
      %v4699 = vpack.c.b16 %v4531, %v4525
      %v4700 = vpack.c.b16 %v4532, %v4526
      %v4701 = vpack.c.b16 %v4539, %v4533
      %v4702 = vpack.c.b16 %v4540, %v4534
      %v4703 = vpack.c.b16 %v4541, %v4535
      %v4704 = vpack.c.b16 %v4542, %v4536
      %v4705 = vpack.c.b16 %v4543, %v4537
      %v4706 = vpack.c.b16 %v4544, %v4538
      %v4707 = vpack.c.b16 %v4551, %v4545
      %v4708 = vpack.c.b16 %v4552, %v4546
      %v4709 = vpack.c.b16 %v4553, %v4547
      %v4710 = vpack.c.b16 %v4554, %v4548
      %v4711 = vpack.c.b16 %v4555, %v4549
      %v4712 = vpack.c.b16 %v4556, %v4550
      %v4713 = vpack.c.b16 %v4563, %v4557
      %v4714 = vpack.c.b16 %v4564, %v4558
      %v4715 = vpack.c.b16 %v4565, %v4559
      %v4716 = vpack.c.b16 %v4566, %v4560
      %v4717 = vpack.c.b16 %v4567, %v4561
      %v4718 = vpack.c.b16 %v4568, %v4562
      %v4719 = vpack.c.b16 %v4575, %v4569
      %v4720 = vpack.c.b16 %v4576, %v4570
      %v4721 = vpack.c.b16 %v4577, %v4571
      %v4722 = vpack.c.b16 %v4578, %v4572
      %v4723 = vpack.c.b16 %v4579, %v4573
      %v4724 = vpack.c.b16 %v4580, %v4574
      %v4725 = vpack.c.b16 %v4587, %v4581
      %v4726 = vpack.c.b16 %v4588, %v4582
      %v4727 = vpack.c.b16 %v4589, %v4583
      %v4728 = vpack.c.b16 %v4590, %v4584
      %v4729 = vpack.c.b16 %v4591, %v4585
      %v4730 = vpack.c.b16 %v4592, %v4586
      %v4731 = vpack.c.b16 %v4599, %v4593
      %v4732 = vpack.c.b16 %v4600, %v4594
      %v4733 = vpack.c.b16 %v4601, %v4595
      %v4734 = vpack.c.b16 %v4602, %v4596
      %v4735 = vpack.c.b16 %v4603, %v4597
      %v4736 = vpack.c.b16 %v4604, %v4598
      %v4737 = vpack.c.b16 %v4611, %v4605
      %v4738 = vpack.c.b16 %v4612, %v4606
      %v4739 = vpack.c.b16 %v4613, %v4607
      %v4740 = vpack.c.b16 %v4614, %v4608
      %v4741 = vpack.c.b16 %v4615, %v4609
      %v4742 = vpack.c.b16 %v4616, %v4610
      %v4743 = vpack.c.b16 %v4623, %v4617
      %v4744 = vpack.c.b16 %v4624, %v4618
      %v4745 = vpack.c.b16 %v4625, %v4619
      %v4746 = vpack.c.b16 %v4626, %v4620
      %v4747 = vpack.c.b16 %v4627, %v4621
      %v4748 = vpack.c.b16 %v4628, %v4622
      %v4749 = vpack.c.b16 %v4635, %v4629
      %v4750 = vpack.c.b16 %v4636, %v4630
      %v4751 = vpack.c.b16 %v4637, %v4631
      %v4752 = vpack.c.b16 %v4638, %v4632
      %v4753 = vpack.c.b16 %v4639, %v4633
      %v4754 = vpack.c.b16 %v4640, %v4634
      %v4755 = vpack.c.b16 %v4647, %v4641
      %v4756 = vpack.c.b16 %v4648, %v4642
      %v4757 = vpack.c.b16 %v4649, %v4643
      %v4758 = vpack.c.b16 %v4650, %v4644
      %v4759 = vpack.c.b16 %v4651, %v4645
      %v4760 = vpack.c.b16 %v4652, %v4646
      %v4761 = vpack.c.b16 %v4659, %v4653
      %v4762 = vpack.c.b16 %v4660, %v4654
      %v4763 = vpack.c.b16 %v4661, %v4655
      %v4764 = vpack.c.b16 %v4662, %v4656
      %v4765 = vpack.c.b16 %v4663, %v4657
      %v4766 = vpack.c.b16 %v4664, %v4658
      %v4767 = vpack.c.b16 %v4671, %v4665
      %v4768 = vpack.c.b16 %v4672, %v4666
      %v4769 = vpack.c.b16 %v4673, %v4667
      %v4770 = vpack.c.b16 %v4674, %v4668
      %v4771 = vpack.c.b16 %v4675, %v4669
      %v4772 = vpack.c.b16 %v4676, %v4670
      %4869 = vmatprep.subr.bf16.mxu0 %v4678
      %4870 = vmatpush1.bf16.msra.mxu0 %v4677
      %4871 = vmatprep.subr.bf16.mxu0 %v4684
      %4872 = vmatpush1.bf16.msra.mxu0 %v4683
      %4873 = vmatprep.subr.bf16.mxu0 %v4690
      %4874 = vmatpush1.bf16.msra.mxu0 %v4689
      %4875 = vmatprep.subr.bf16.mxu0 %v4696
      %4876 = vmatpush1.bf16.msra.mxu0 %v4695
      %4877 = vmatprep.subr.bf16.mxu0 %v4702
      %4878 = vmatpush1.bf16.msra.mxu0 %v4701
      %4879 = vmatprep.subr.bf16.mxu0 %v4708
      %4880 = vmatpush1.bf16.msra.mxu0 %v4707
      %4881 = vmatprep.subr.bf16.mxu0 %v4714
      %4882 = vmatpush1.bf16.msra.mxu0 %v4713
      %4883 = vmatprep.subr.bf16.mxu0 %v4720
      %4884 = vmatpush1.bf16.msra.mxu0 %v4719
      %4885 = vmatprep.subr.bf16.mxu0 %v4726
      %4886 = vmatpush1.bf16.msra.mxu0 %v4725
      %4887 = vmatprep.subr.bf16.mxu0 %v4732
      %4888 = vmatpush1.bf16.msra.mxu0 %v4731
      %4889 = vmatprep.subr.bf16.mxu0 %v4738
      %4890 = vmatpush1.bf16.msra.mxu0 %v4737
      %4891 = vmatprep.subr.bf16.mxu0 %v4744
      %4892 = vmatpush1.bf16.msra.mxu0 %v4743
      %4893 = vmatprep.subr.bf16.mxu0 %v4750
      %4894 = vmatpush1.bf16.msra.mxu0 %v4749
      %4895 = vmatprep.subr.bf16.mxu0 %v4756
      %4896 = vmatpush1.bf16.msra.mxu0 %v4755
      %4897 = vmatprep.subr.bf16.mxu0 %v4762
      %4898 = vmatpush1.bf16.msra.mxu0 %v4761
      %4899 = vmatprep.subr.bf16.mxu0 %v4768
      %4900 = vmatpush1.bf16.msra.mxu0 %v4767
      %4901 = vmatprep.mubr.bf16.mxu0 %v4386
      %4902 = vmatmul.mubr.bf16.gmra.mrb[0].mxu0 %v4385
      %v4903 = vpop.f32.mrb[0].mxu0
      %v4904 = vadd.f32 %v4346, %v4903
      %v4905 = vpop.f32.mrb[0].mxu0
      %v4906 = vadd.f32 %v4350, %v4905
      %v4907 = vpop.f32.mrb[0].mxu0
      %v4908 = vpop.f32.mrb[0].mxu0
      %4909 = vdwg.mxu0
      %4910 = vmatprep.subr.bf16.mxu0 %v4680
      %4911 = vmatpush1.bf16.msra.mxu0 %v4679
      %4912 = vmatprep.subr.bf16.mxu0 %v4686
      %4913 = vmatpush1.bf16.msra.mxu0 %v4685
      %4914 = vmatprep.subr.bf16.mxu0 %v4692
      %4915 = vmatpush1.bf16.msra.mxu0 %v4691
      %4916 = vmatprep.subr.bf16.mxu0 %v4698
      %4917 = vmatpush1.bf16.msra.mxu0 %v4697
      %4918 = vmatprep.subr.bf16.mxu0 %v4704
      %4919 = vmatpush1.bf16.msra.mxu0 %v4703
      %4920 = vmatprep.subr.bf16.mxu0 %v4710
      %4921 = vmatpush1.bf16.msra.mxu0 %v4709
      %4922 = vmatprep.subr.bf16.mxu0 %v4716
      %4923 = vmatpush1.bf16.msra.mxu0 %v4715
      %4924 = vmatprep.subr.bf16.mxu0 %v4722
      %4925 = vmatpush1.bf16.msra.mxu0 %v4721
      %4926 = vmatprep.subr.bf16.mxu0 %v4728
      %4927 = vmatpush1.bf16.msra.mxu0 %v4727
      %4928 = vmatprep.subr.bf16.mxu0 %v4734
      %4929 = vmatpush1.bf16.msra.mxu0 %v4733
      %4930 = vmatprep.subr.bf16.mxu0 %v4740
      %4931 = vmatpush1.bf16.msra.mxu0 %v4739
      %4932 = vmatprep.subr.bf16.mxu0 %v4746
      %4933 = vmatpush1.bf16.msra.mxu0 %v4745
      %4934 = vmatprep.subr.bf16.mxu0 %v4752
      %4935 = vmatpush1.bf16.msra.mxu0 %v4751
      %4936 = vmatprep.subr.bf16.mxu0 %v4758
      %4937 = vmatpush1.bf16.msra.mxu0 %v4757
      %4938 = vmatprep.subr.bf16.mxu0 %v4764
      %4939 = vmatpush1.bf16.msra.mxu0 %v4763
      %4940 = vmatprep.subr.bf16.mxu0 %v4770
      %4941 = vmatpush1.bf16.msra.mxu0 %v4769
      %4942 = vmatprep.mubr.bf16.mxu0 %v4386
      %4943 = vmatmul.mubr.bf16.gmra.mrb[0].mxu0 %v4385
      %v4944 = vpop.f32.mrb[0].mxu0
      %v4945 = vadd.f32 %v4354, %v4944
      %v4946 = vpop.f32.mrb[0].mxu0
      %v4947 = vadd.f32 %v4358, %v4946
      %v4948 = vpop.f32.mrb[0].mxu0
      %v4949 = vpop.f32.mrb[0].mxu0
      %4950 = vdwg.mxu0
      %4951 = vmatprep.subr.bf16.mxu0 %v4682
      %4952 = vmatpush1.bf16.msra.mxu0 %v4681
      %4953 = vmatprep.subr.bf16.mxu0 %v4688
      %4954 = vmatpush1.bf16.msra.mxu0 %v4687
      %4955 = vmatprep.subr.bf16.mxu0 %v4694
      %4956 = vmatpush1.bf16.msra.mxu0 %v4693
      %4957 = vmatprep.subr.bf16.mxu0 %v4700
      %4958 = vmatpush1.bf16.msra.mxu0 %v4699
      %4959 = vmatprep.subr.bf16.mxu0 %v4706
      %4960 = vmatpush1.bf16.msra.mxu0 %v4705
      %4961 = vmatprep.subr.bf16.mxu0 %v4712
      %4962 = vmatpush1.bf16.msra.mxu0 %v4711
      %4963 = vmatprep.subr.bf16.mxu0 %v4718
      %4964 = vmatpush1.bf16.msra.mxu0 %v4717
      %4965 = vmatprep.subr.bf16.mxu0 %v4724
      %4966 = vmatpush1.bf16.msra.mxu0 %v4723
      %4967 = vmatprep.subr.bf16.mxu0 %v4730
      %4968 = vmatpush1.bf16.msra.mxu0 %v4729
      %4969 = vmatprep.subr.bf16.mxu0 %v4736
      %4970 = vmatpush1.bf16.msra.mxu0 %v4735
      %4971 = vmatprep.subr.bf16.mxu0 %v4742
      %4972 = vmatpush1.bf16.msra.mxu0 %v4741
      %4973 = vmatprep.subr.bf16.mxu0 %v4748
      %4974 = vmatpush1.bf16.msra.mxu0 %v4747
      %4975 = vmatprep.subr.bf16.mxu0 %v4754
      %4976 = vmatpush1.bf16.msra.mxu0 %v4753
      %4977 = vmatprep.subr.bf16.mxu0 %v4760
      %4978 = vmatpush1.bf16.msra.mxu0 %v4759
      %4979 = vmatprep.subr.bf16.mxu0 %v4766
      %4980 = vmatpush1.bf16.msra.mxu0 %v4765
      %4981 = vmatprep.subr.bf16.mxu0 %v4772
      %4982 = vmatpush1.bf16.msra.mxu0 %v4771
      %4983 = vmatprep.mubr.bf16.mxu0 %v4386
      %4984 = vmatmul.mubr.bf16.gmra.mrb[0].mxu0 %v4385
      %v4985 = vpop.f32.mrb[0].mxu0
      %v4986 = vadd.f32 %v4362, %v4985
      %v4987 = vpop.f32.mrb[0].mxu0
      %v4988 = vadd.f32 %v4366, %v4987
      %v4989 = vpop.f32.mrb[0].mxu0
      %v4990 = vpop.f32.mrb[0].mxu0
      %4991 = vdwg.mxu0
      %v4992 = vadd.f32 %v4904, %v3998
      %v4993 = vadd.f32 %v4906, %v4000
      %v4994 = vxor.u32 %v4992, 2147483648
      %v4995 = vxor.u32 %v4993, 2147483648
      %v4996 = vmul.f32 %v4994, 1.442695
      %v4997 = vpow.pop %v4996
      %v4998 = vmul.f32 %v4995, 1.442695
      %v4999 = vpow.pop %v4998
      %v5000 = vadd.f32 %v4997, 1.0
      %v5001 = vadd.f32 %v4999, 1.0
      %v5002 = vrcp.pop %v5000
      %v5003 = vmul.f32 1.0, %v5002
      %v5004 = vrcp.pop %v5001
      %v5005 = vmul.f32 1.0, %v5004
      %v5006 = vadd.f32 %v4945, %v4039
      %v5007 = vadd.f32 %v4947, %v4041
      %v5008 = vxor.u32 %v5006, 2147483648
      %v5009 = vxor.u32 %v5007, 2147483648
      %v5010 = vmul.f32 %v5008, 1.442695
      %v5011 = vpow.pop %v5010
      %v5012 = vmul.f32 %v5009, 1.442695
      %v5013 = vpow.pop %v5012
      %v5014 = vadd.f32 %v5011, 1.0
      %v5015 = vadd.f32 %v5013, 1.0
      %v5016 = vrcp.pop %v5014
      %v5017 = vmul.f32 1.0, %v5016
      %v5018 = vrcp.pop %v5015
      %v5019 = vmul.f32 1.0, %v5018
      %v5020 = vmul.f32 %v5003, %v4080
      %v5021 = vmul.f32 %v5005, %v4082
      %v5022 = vadd.f32 %v4986, %v5020
      %v5023 = vadd.f32 %v4988, %v5021
      %v5024 = vtanh.pop %v5022
      %v5025 = vtanh.pop %v5023
      %v5026 = vsub.f32 1.0, %v5017
      %v5027 = vsub.f32 1.0, %v5019
      %v5028 = vmul.f32 %v5026, %v5024
      %v5029 = vmul.f32 %v5027, %v5025
      %v5030 = vmul.f32 %v5017, %v2561
      %v5031 = vmul.f32 %v5019, %v2562
      %v5032 = vadd.f32 %v5028, %v5030
      %v5033 = vadd.f32 %v5029, %v5031
      %v5036 = vcombine.low %v5032, %v5033
      %v5038 = vunpack.c.l.s4 1966171168
      %v5039 = vunpack.c.0.s8 %v5038
      %v5040 = vlaneseq
      %v5041 = vshrl.u32 %v5040, 7
      %v5042 = vsub.s32 %v5039, %v5041
      %v5043 = vrot.slane %v5036, %v5042
      %v5044 = vcombine.high %v5043, %v5043
      %v5046 = vunpack.c.l.s4 1966171168
      %v5047 = vunpack.c.0.s8 %v5046
      %v5048 = vlaneseq
      %v5049 = vshrl.u32 %v5048, 7
      %v5050 = vsub.s32 %v5047, %v5049
      %v5051 = vrot.slane %v5043, %v5050
      %v5053 = vunpack.c.l.s4 1966171168
      %v5054 = vunpack.c.0.s8 %v5053
      %v5055 = vlaneseq
      %v5056 = vshrl.u32 %v5055, 7
      %v5057 = vsub.s32 %v5054, %v5056
      %v5058 = vrot.slane %v5044, %v5057
      %v5061 = vlaneseq
      %vm5062 = vcmp.ge.s32.totalorder %v5061, 0
      %vm5063 = vcmp.lt.s32.totalorder %v5061, 256
      %vm5064 = vmand %vm5062, %vm5063
      %s5065 = smul.u32 %s2563, 2
      %s5066 = smul.u32 %s5065, 8
      %s5067 = sadd.s32 %s5066, %s2566
      %s5068 = scalar_lea.vmem [#allocation23], %s5067
      %5069 = vst.msk [vmem:[%s5068] ss:$8 sm:$0x3] %vm5064, %v5051
      %5070 = vst.msk [vmem:[%s5068] ss:$8 sm:$0x0] %vm5064, %v5051
      %s5071 = sadd.s32 48, %s5067
      %s5072 = scalar_lea.vmem [#allocation23], %s5071
      %5073 = vst.msk [vmem:[%s5072] ss:$8 sm:$0x3] %vm5064, %v5058
      %5074 = vst.msk [vmem:[%s5072] ss:$8 sm:$0x0] %vm5064, %v5058
    $region106: #{tpu_custom_call.1} parent=1 // loop_footer
      %s2556 = sadd.s32 %s2554, 1
    $region107: #{tpu_custom_call.1} parent=1 // loop_footer_branch
      %2553 = sbr.rel target = $region103
    $region108: #{tpu_custom_call.1} parent=1 // loop_exit
      _
    // Predicated region
    $region109: #{tpu_custom_call.1} parent=1 // pred_check
      _
    $region110: #{tpu_custom_call.1} parent=1 // pred_check_branch
      %5076 = sbr.rel (0) target = $region112
    $region111: #{tpu_custom_call.1} parent=1 // pred_region
      %s5078 = ssub.s32 1024, 1024
      %5079 = vsyncadd [#allocation9], %s5078
      %s5080 = sshll.u32 [#allocation22], 4
      %s5081 = int_to_ptr.vmem [resolvable:$true] %s5080
      %5086 = dma.vmem_to_hbm [thread:$0]  %s5081, 1024, %s16, [#allocation9], 128, 128, 8
    $region112: #{tpu_custom_call.1} parent=1 // pred_fallthru
      _
    // Predicated region
    $region113: #{tpu_custom_call.1} parent=1 // pred_check
      _
    $region114: #{tpu_custom_call.1} parent=1 // pred_check_branch
      %5088 = sbr.rel (0) target = $region116
    $region115: #{tpu_custom_call.1} parent=1 // pred_region
      %s5090 = ssub.s32 1536, 1536
      %5091 = vsyncadd [#allocation24], %s5090
      %s5092 = sshll.u32 [#allocation23], 4
      %s5093 = int_to_ptr.vmem [resolvable:$true] %s5092
      %5098 = dma.vmem_to_hbm [thread:$0]  %s5093, 1536, %s17, [#allocation24], 256, 256, 16
    $region116: #{tpu_custom_call.1} parent=1 // pred_fallthru
      _
    // Predicated region
    $region117: #{tpu_custom_call.1} parent=1 // pred_check
      _
    $region118: #{tpu_custom_call.1} parent=1 // pred_check_branch
      %5100 = sbr.rel (0) target = $region120
    $region119: #{tpu_custom_call.1} parent=1 // pred_region
      %5101 = dma.done [#allocation9], 1024
    $region120: #{tpu_custom_call.1} parent=1 // pred_fallthru
      _
    // Predicated region
    $region121: #{tpu_custom_call.1} parent=1 // pred_check
      _
    $region122: #{tpu_custom_call.1} parent=1 // pred_check_branch
      %5103 = sbr.rel (0) target = $region124
    $region123: #{tpu_custom_call.1} parent=1 // pred_region
      %5104 = dma.done [#allocation24], 1536
    $region124: #{tpu_custom_call.1} parent=1 // pred_fallthru
      _
    %5105 = vsyncpa [#allocation8], 1
    %5106 = vsyncpa [#allocation11], 1
    %5107 = vsyncpa [#allocation14], 1
    %5108 = vsyncpa [#allocation17], 1
    %5109 = vsyncpa [#allocation20], 1
    %5110 = vsyncpa [#allocation9], 1
    %5111 = vsyncpa [#allocation24], 1

</llo_original>
